<compile_context>
chip_gen: v5e
topology: v5e:2x2
jax: 0.10.0
libtpu: 0.0.40
codegen_flags: <defaults>
</compile_context>

<pallas_src>
import functools

import jax
import jax.numpy as jnp
import numpy as np
from jax.experimental import pallas as pl
from jax.experimental.pallas import tpu as pltpu


# ----------------------------------------------------------------------------
# Model dims
# ----------------------------------------------------------------------------
AUX_FEATURE_DIM = 32      # aux_backbone.get_feature_dim()
BASE_FEATURE_DIM = 16
NUM_TRANSFORMS = 4        # transform_head = nn.Linear(feature_dim, 4)
NUM_CLASSES = 10          # base_model output classes

NC = 128                  # packed conv-output lanes: [aux 32 | base 16 | 0-pad]
NH = 128                  # packed head-output lanes: [transform 4 | classes 10 | 0-pad]


def _cpad(c):
    """Pad channel count to a multiple of 8 (sublane-friendly matmul K)."""
    return ((c + 7) // 8) * 8


# ----------------------------------------------------------------------------
# Fused kernel: in-VMEM im2col conv + bias + ReLU + GAP + both packed heads
# ----------------------------------------------------------------------------
def _fused_ttt_kernel(x_ref, wc_ref, bc_ref, wh_ref, bh_ref, o_ref, *,
                      bb, H, W, rc, inv_hw):
    """One grid step = `bb` images. Everything (conv, GAP, heads) in one step,
    so there is no cross-step accumulator and no reduction grid axis."""
    xb = x_ref[...]                                   # (bb, H+2, W+2, Cp) bf16
    cp = xb.shape[-1]
    acc = jnp.zeros((bb, NC), jnp.float32)            # per-image GAP sum

    # Row-chunked so the f32 conv-activation temp stays within a VMEM budget.
    for r0 in range(0, H, rc):
        m = bb * rc * W
        hc = jnp.zeros((m, NC), jnp.float32)
        # 3x3 "same" conv as 9 accumulating K=Cp matmuls over shifted slices
        # (fused im2col — the 9x-expanded patches never exist in HBM).
        for t in range(9):
            dy, dx = t // 3, t % 3
            a_t = xb[:, r0 + dy:r0 + dy + rc, dx:dx + W, :].reshape(m, cp)
            hc = hc + jnp.dot(a_t, wc_ref[t],
                              preferred_element_type=jnp.float32)
        hc = jnp.maximum(hc + bc_ref[...], 0.0)       # f32 epilogue (v5e-safe)
        # GAP partial sum: XLU cross-sublane reduce (MXU stays on the conv).
        acc = acc + jnp.sum(hc.reshape(bb, rc * W, NC), axis=1)

    feat = (acc * inv_hw).astype(jnp.bfloat16)        # (bb, NC) GAP features
    heads = jnp.dot(feat, wh_ref[...],
                    preferred_element_type=jnp.float32) + bh_ref[...]
    o_ref[...] = heads[None]                          # (1, bb, 128) lane-dense store


def _pick_batch_block(B):
    """Images per grid step; keep >=2 parallel blocks when B >= 2 (v7x has 2 TCs)."""
    if B < 2:
        return 1
    bb = min(8, max(1, B // 2))
    while B % bb:
        bb -= 1
    return bb


def _pick_row_chunk(H, W, bb, budget_bytes=2 << 20):
    """Largest divisor of H whose f32 conv-activation chunk fits the budget."""
    rc = H
    while rc > 1 and bb * rc * W * NC * 4 > budget_bytes:
        rc -= 1
        while rc > 1 and H % rc:
            rc -= 1
    return rc


@jax.jit
def _packed_forward(x_nchw, wc, bc, wh, bh):
    """x: (B, C, H, W) -> (B, 128) packed [transform(4) | logits(10) | pad] f32."""
    B, C, H, W = x_nchw.shape
    cp = _cpad(C)
    # NCHW -> NHWC; cast to bf16 BEFORE padding so the producer moves half the bytes.
    x = jnp.transpose(x_nchw, (0, 2, 3, 1)).astype(jnp.bfloat16)
    # 3x3 "same" halo pad + zero-pad channels to cp (8-aligned matmul K).
    x = jnp.pad(x, ((0, 0), (1, 1), (1, 1), (0, cp - C)))

    bb = _pick_batch_block(B)
    rc = _pick_row_chunk(H, W, bb)
    nb = B // bb
    kernel = functools.partial(_fused_ttt_kernel, bb=bb, H=H, W=W, rc=rc,
                               inv_hw=1.0 / (H * W))

    out = pl.pallas_call(
        kernel,
        out_shape=jax.ShapeDtypeStruct((nb, bb, NH), jnp.float32),
        grid=(nb,),
        in_specs=[
            # raw-sized padded image block (per batch block), bf16
            pl.BlockSpec((bb, H + 2, W + 2, cp), lambda b: (b, 0, 0, 0)),
            pl.BlockSpec((9, cp, NC), lambda b: (0, 0, 0)),   # packed conv w (bf16)
            pl.BlockSpec((1, NC), lambda b: (0, 0)),          # packed conv b (f32)
            pl.BlockSpec((NC, NH), lambda b: (0, 0)),         # packed head w (bf16)
            pl.BlockSpec((1, NH), lambda b: (0, 0)),          # packed head b (f32)
        ],
        out_specs=pl.BlockSpec((1, bb, NH), lambda b: (b, 0, 0)),
        compiler_params=pltpu.CompilerParams(
            dimension_semantics=("parallel",),
            # let XLA fold the transpose/pad/bf16-cast producer into the input DMA
            allow_input_fusion=[True, False, False, False, False],
        ),
    )(x, wc, bc, wh, bh)
    return out.reshape(B, NH)   # contiguous reshape: free, no slice/relayout


# ----------------------------------------------------------------------------
# Parameters
# ----------------------------------------------------------------------------
def init_params(cin, key):
    ks = jax.random.split(key, 8)
    scale = 0.05
    return {
        # aux backbone conv3x3, weight laid out as (kh*kw*cin, cout)
        "aux_conv_w": scale * jax.random.normal(ks[0], (9 * cin, AUX_FEATURE_DIM), jnp.float32),
        "aux_conv_b": 0.01 * jax.random.normal(ks[1], (AUX_FEATURE_DIM,), jnp.float32),
        # transform_head: Linear(feature_dim, 4)
        "head_w": scale * jax.random.normal(ks[2], (AUX_FEATURE_DIM, NUM_TRANSFORMS), jnp.float32),
        "head_b": 0.01 * jax.random.normal(ks[3], (NUM_TRANSFORMS,), jnp.float32),
        # frozen base_model: conv3x3 -> relu -> GAP -> Linear(16, 10)
        "base_conv_w": scale * jax.random.normal(ks[4], (9 * cin, BASE_FEATURE_DIM), jnp.float32),
        "base_conv_b": 0.01 * jax.random.normal(ks[5], (BASE_FEATURE_DIM,), jnp.float32),
        "base_fc_w": scale * jax.random.normal(ks[6], (BASE_FEATURE_DIM, NUM_CLASSES), jnp.float32),
        "base_fc_b": 0.01 * jax.random.normal(ks[7], (NUM_CLASSES,), jnp.float32),
    }


def pack_params(p, cin):
    """Concat aux/base conv weights along N (lane-padded to 128) per 3x3 tap,
    and pack both heads block-diagonally into one lane-dense (128,128) weight."""
    cp = _cpad(cin)
    wc = jnp.zeros((9, cp, NC), jnp.float32)
    wc = wc.at[:, :cin, :AUX_FEATURE_DIM].set(
        p["aux_conv_w"].reshape(9, cin, AUX_FEATURE_DIM))
    wc = wc.at[:, :cin, AUX_FEATURE_DIM:AUX_FEATURE_DIM + BASE_FEATURE_DIM].set(
        p["base_conv_w"].reshape(9, cin, BASE_FEATURE_DIM))

    bc = jnp.zeros((1, NC), jnp.float32)
    bc = bc.at[0, :AUX_FEATURE_DIM].set(p["aux_conv_b"])
    bc = bc.at[0, AUX_FEATURE_DIM:AUX_FEATURE_DIM + BASE_FEATURE_DIM].set(p["base_conv_b"])

    wh = jnp.zeros((NC, NH), jnp.float32)
    wh = wh.at[:AUX_FEATURE_DIM, :NUM_TRANSFORMS].set(p["head_w"])
    wh = wh.at[AUX_FEATURE_DIM:AUX_FEATURE_DIM + BASE_FEATURE_DIM,
               NUM_TRANSFORMS:NUM_TRANSFORMS + NUM_CLASSES].set(p["base_fc_w"])

    bh = jnp.zeros((1, NH), jnp.float32)
    bh = bh.at[0, :NUM_TRANSFORMS].set(p["head_b"])
    bh = bh.at[0, NUM_TRANSFORMS:NUM_TRANSFORMS + NUM_CLASSES].set(p["base_fc_b"])

    return {"wc": wc.astype(jnp.bfloat16), "bc": bc,
            "wh": wh.astype(jnp.bfloat16), "bh": bh}


# ----------------------------------------------------------------------------
# Forward pass of FlexibleTestTimeTrainer
# ----------------------------------------------------------------------------
def flexible_ttt_forward(x_nchw, packed, aux_only=False):
    """Returns transform_logits if aux_only else (logits, transform_logits)."""
    out = _packed_forward(x_nchw, packed["wc"], packed["bc"],
                          packed["wh"], packed["bh"])            # (B, 128)
    transform_logits = out[:, :NUM_TRANSFORMS]
    if aux_only:
        return transform_logits
    logits = out[:, NUM_TRANSFORMS:NUM_TRANSFORMS + NUM_CLASSES]
    return logits, transform_logits


# Pure-JAX f32 reference (module semantics) for a correctness check.
def _im2col_3x3(x_nhwc):
    B, H, W, C = x_nhwc.shape
    xp = jnp.pad(x_nhwc, ((0, 0), (1, 1), (1, 1), (0, 0)))
    cols = [xp[:, dy:dy + H, dx:dx + W, :] for dy in range(3) for dx in range(3)]
    return jnp.concatenate(cols, axis=-1).reshape(B, H * W, 9 * C)


def reference_forward(x_nchw, p):
    x = jnp.transpose(x_nchw, (0, 2, 3, 1)).astype(jnp.float32)
    patches = _im2col_3x3(x)                                      # (B, HW, 9*Cin)
    aux = jnp.maximum(patches @ p["aux_conv_w"] + p["aux_conv_b"], 0.0)
    transform_logits = aux.mean(axis=1) @ p["head_w"] + p["head_b"]
    base = jnp.maximum(patches @ p["base_conv_w"] + p["base_conv_b"], 0.0)
    logits = base.mean(axis=1) @ p["base_fc_w"] + p["base_fc_b"]
    return logits, transform_logits


# ----------------------------------------------------------------------------
if __name__ == "__main__":
    B, Cin, H, W = 2, 4, 16, 16
    key = jax.random.PRNGKey(0)
    kx, kp = jax.random.split(key)
    x = jax.random.normal(kx, (B, Cin, H, W), jnp.float32)        # NCHW like PyTorch

    raw_params = init_params(Cin, kp)
    packed = pack_params(raw_params, Cin)

    logits, transform_logits = flexible_ttt_forward(x, packed, aux_only=False)
    jax.block_until_ready((logits, transform_logits))
    assert logits.shape == (B, NUM_CLASSES)
    assert transform_logits.shape == (B, NUM_TRANSFORMS)

    # correctness vs f32 reference (bf16 matmul inputs -> loose tolerance)
    ref_logits, ref_tl = reference_forward(x, raw_params)
    np.testing.assert_allclose(np.asarray(logits), np.asarray(ref_logits),
                               atol=5e-2, rtol=5e-2)
    np.testing.assert_allclose(np.asarray(transform_logits), np.asarray(ref_tl),
                               atol=5e-2, rtol=5e-2)

    # aux_only path
    t_only = flexible_ttt_forward(x, packed, aux_only=True)
    jax.block_until_ready(t_only)
    assert t_only.shape == (B, NUM_TRANSFORMS)

    print("KERNEL_OK")
</pallas_src>

<mosaic_0001>
module attributes {stable_mosaic.version = 11 : i64} {
  func.func @_fused_ttt_kernel(%arg0: i32, %arg1: memref<1x18x18x8xbf16, #tpu.memory_space<vmem>>, %arg2: memref<9x8x128xbf16, #tpu.memory_space<vmem>>, %arg3: memref<1x128xf32, #tpu.memory_space<vmem>>, %arg4: memref<128x128xbf16, #tpu.memory_space<vmem>>, %arg5: memref<1x128xf32, #tpu.memory_space<vmem>>, %arg6: memref<1x1x128xf32, #tpu.memory_space<vmem>>) attributes {dimension_semantics = [#tpu.dimension_semantics<parallel>], iteration_bounds = array<i64: 2>, scalar_prefetch = 0 : i64, scratch_operands = 0 : i64, tpu.core_type = #tpu.core_type<tc>, window_params = [{transform_indices = @transform_0, window_bounds = array<i64: 1, 18, 18, 8>}, {pipeline_mode = #tpu.pipeline_mode<synchronous>, transform_indices = @transform_1, window_bounds = array<i64: 9, 8, 128>}, {pipeline_mode = #tpu.pipeline_mode<synchronous>, transform_indices = @transform_2, window_bounds = array<i64: 1, 128>}, {pipeline_mode = #tpu.pipeline_mode<synchronous>, transform_indices = @transform_3, window_bounds = array<i64: 128, 128>}, {pipeline_mode = #tpu.pipeline_mode<synchronous>, transform_indices = @transform_4, window_bounds = array<i64: 1, 128>}, {transform_indices = @transform_5, window_bounds = array<i64: 1, 1, 128>}]} {
    %c0 = arith.constant 0 : index
    %c0_0 = arith.constant 0 : index
    %c0_1 = arith.constant 0 : index
    %c0_2 = arith.constant 0 : index
    %0 = vector.load %arg1[%c0, %c0_0, %c0_1, %c0_2] : memref<1x18x18x8xbf16, #tpu.memory_space<vmem>>, vector<1x18x18x8xbf16>
    %cst = arith.constant 0.000000e+00 : f32
    %1 = vector.broadcast %cst : f32 to vector<1x128xf32>
    %cst_3 = arith.constant 0.000000e+00 : f32
    %2 = vector.broadcast %cst_3 : f32 to vector<256x128xf32>
    %3 = vector.extract_strided_slice %0 {offsets = [0, 0, 0, 0], sizes = [1, 16, 16, 8], strides = [1, 1, 1, 1]} : vector<1x18x18x8xbf16> to vector<1x16x16x8xbf16>
    %4 = vector.shape_cast %3 : vector<1x16x16x8xbf16> to vector<256x8xbf16>
    %c0_4 = arith.constant 0 : index
    %c0_5 = arith.constant 0 : index
    %c0_6 = arith.constant 0 : index
    %5 = vector.load %arg2[%c0_4, %c0_5, %c0_6] : memref<9x8x128xbf16, #tpu.memory_space<vmem>>, vector<1x8x128xbf16>
    %6 = vector.shape_cast %5 : vector<1x8x128xbf16> to vector<8x128xbf16>
    %cst_7 = arith.constant dense<0.000000e+00> : vector<256x128xf32>
    %7 = tpu.matmul %4, %6, %cst_7 {dimension_numbers = #tpu.dot_dimension_numbers<[1], [0], [0], [1], [0, 0, 1, 1], [], []>} : vector<256x8xbf16>, vector<8x128xbf16>, vector<256x128xf32> -> vector<256x128xf32>
    %8 = arith.addf %2, %7 : vector<256x128xf32>
    %9 = vector.extract_strided_slice %0 {offsets = [0, 0, 1, 0], sizes = [1, 16, 16, 8], strides = [1, 1, 1, 1]} : vector<1x18x18x8xbf16> to vector<1x16x16x8xbf16>
    %10 = vector.shape_cast %9 : vector<1x16x16x8xbf16> to vector<256x8xbf16>
    %c1 = arith.constant 1 : index
    %c0_8 = arith.constant 0 : index
    %c0_9 = arith.constant 0 : index
    %11 = vector.load %arg2[%c1, %c0_8, %c0_9] : memref<9x8x128xbf16, #tpu.memory_space<vmem>>, vector<1x8x128xbf16>
    %12 = vector.shape_cast %11 : vector<1x8x128xbf16> to vector<8x128xbf16>
    %cst_10 = arith.constant dense<0.000000e+00> : vector<256x128xf32>
    %13 = tpu.matmul %10, %12, %cst_10 {dimension_numbers = #tpu.dot_dimension_numbers<[1], [0], [0], [1], [0, 0, 1, 1], [], []>} : vector<256x8xbf16>, vector<8x128xbf16>, vector<256x128xf32> -> vector<256x128xf32>
    %14 = arith.addf %8, %13 : vector<256x128xf32>
    %15 = vector.extract_strided_slice %0 {offsets = [0, 0, 2, 0], sizes = [1, 16, 16, 8], strides = [1, 1, 1, 1]} : vector<1x18x18x8xbf16> to vector<1x16x16x8xbf16>
    %16 = vector.shape_cast %15 : vector<1x16x16x8xbf16> to vector<256x8xbf16>
    %c2 = arith.constant 2 : index
    %c0_11 = arith.constant 0 : index
    %c0_12 = arith.constant 0 : index
    %17 = vector.load %arg2[%c2, %c0_11, %c0_12] : memref<9x8x128xbf16, #tpu.memory_space<vmem>>, vector<1x8x128xbf16>
    %18 = vector.shape_cast %17 : vector<1x8x128xbf16> to vector<8x128xbf16>
    %cst_13 = arith.constant dense<0.000000e+00> : vector<256x128xf32>
    %19 = tpu.matmul %16, %18, %cst_13 {dimension_numbers = #tpu.dot_dimension_numbers<[1], [0], [0], [1], [0, 0, 1, 1], [], []>} : vector<256x8xbf16>, vector<8x128xbf16>, vector<256x128xf32> -> vector<256x128xf32>
    %20 = arith.addf %14, %19 : vector<256x128xf32>
    %21 = vector.extract_strided_slice %0 {offsets = [0, 1, 0, 0], sizes = [1, 16, 16, 8], strides = [1, 1, 1, 1]} : vector<1x18x18x8xbf16> to vector<1x16x16x8xbf16>
    %22 = vector.shape_cast %21 : vector<1x16x16x8xbf16> to vector<256x8xbf16>
    %c3 = arith.constant 3 : index
    %c0_14 = arith.constant 0 : index
    %c0_15 = arith.constant 0 : index
    %23 = vector.load %arg2[%c3, %c0_14, %c0_15] : memref<9x8x128xbf16, #tpu.memory_space<vmem>>, vector<1x8x128xbf16>
    %24 = vector.shape_cast %23 : vector<1x8x128xbf16> to vector<8x128xbf16>
    %cst_16 = arith.constant dense<0.000000e+00> : vector<256x128xf32>
    %25 = tpu.matmul %22, %24, %cst_16 {dimension_numbers = #tpu.dot_dimension_numbers<[1], [0], [0], [1], [0, 0, 1, 1], [], []>} : vector<256x8xbf16>, vector<8x128xbf16>, vector<256x128xf32> -> vector<256x128xf32>
    %26 = arith.addf %20, %25 : vector<256x128xf32>
    %27 = vector.extract_strided_slice %0 {offsets = [0, 1, 1, 0], sizes = [1, 16, 16, 8], strides = [1, 1, 1, 1]} : vector<1x18x18x8xbf16> to vector<1x16x16x8xbf16>
    %28 = vector.shape_cast %27 : vector<1x16x16x8xbf16> to vector<256x8xbf16>
    %c4 = arith.constant 4 : index
    %c0_17 = arith.constant 0 : index
    %c0_18 = arith.constant 0 : index
    %29 = vector.load %arg2[%c4, %c0_17, %c0_18] : memref<9x8x128xbf16, #tpu.memory_space<vmem>>, vector<1x8x128xbf16>
    %30 = vector.shape_cast %29 : vector<1x8x128xbf16> to vector<8x128xbf16>
    %cst_19 = arith.constant dense<0.000000e+00> : vector<256x128xf32>
    %31 = tpu.matmul %28, %30, %cst_19 {dimension_numbers = #tpu.dot_dimension_numbers<[1], [0], [0], [1], [0, 0, 1, 1], [], []>} : vector<256x8xbf16>, vector<8x128xbf16>, vector<256x128xf32> -> vector<256x128xf32>
    %32 = arith.addf %26, %31 : vector<256x128xf32>
    %33 = vector.extract_strided_slice %0 {offsets = [0, 1, 2, 0], sizes = [1, 16, 16, 8], strides = [1, 1, 1, 1]} : vector<1x18x18x8xbf16> to vector<1x16x16x8xbf16>
    %34 = vector.shape_cast %33 : vector<1x16x16x8xbf16> to vector<256x8xbf16>
    %c5 = arith.constant 5 : index
    %c0_20 = arith.constant 0 : index
    %c0_21 = arith.constant 0 : index
    %35 = vector.load %arg2[%c5, %c0_20, %c0_21] : memref<9x8x128xbf16, #tpu.memory_space<vmem>>, vector<1x8x128xbf16>
    %36 = vector.shape_cast %35 : vector<1x8x128xbf16> to vector<8x128xbf16>
    %cst_22 = arith.constant dense<0.000000e+00> : vector<256x128xf32>
    %37 = tpu.matmul %34, %36, %cst_22 {dimension_numbers = #tpu.dot_dimension_numbers<[1], [0], [0], [1], [0, 0, 1, 1], [], []>} : vector<256x8xbf16>, vector<8x128xbf16>, vector<256x128xf32> -> vector<256x128xf32>
    %38 = arith.addf %32, %37 : vector<256x128xf32>
    %39 = vector.extract_strided_slice %0 {offsets = [0, 2, 0, 0], sizes = [1, 16, 16, 8], strides = [1, 1, 1, 1]} : vector<1x18x18x8xbf16> to vector<1x16x16x8xbf16>
    %40 = vector.shape_cast %39 : vector<1x16x16x8xbf16> to vector<256x8xbf16>
    %c6 = arith.constant 6 : index
    %c0_23 = arith.constant 0 : index
    %c0_24 = arith.constant 0 : index
    %41 = vector.load %arg2[%c6, %c0_23, %c0_24] : memref<9x8x128xbf16, #tpu.memory_space<vmem>>, vector<1x8x128xbf16>
    %42 = vector.shape_cast %41 : vector<1x8x128xbf16> to vector<8x128xbf16>
    %cst_25 = arith.constant dense<0.000000e+00> : vector<256x128xf32>
    %43 = tpu.matmul %40, %42, %cst_25 {dimension_numbers = #tpu.dot_dimension_numbers<[1], [0], [0], [1], [0, 0, 1, 1], [], []>} : vector<256x8xbf16>, vector<8x128xbf16>, vector<256x128xf32> -> vector<256x128xf32>
    %44 = arith.addf %38, %43 : vector<256x128xf32>
    %45 = vector.extract_strided_slice %0 {offsets = [0, 2, 1, 0], sizes = [1, 16, 16, 8], strides = [1, 1, 1, 1]} : vector<1x18x18x8xbf16> to vector<1x16x16x8xbf16>
    %46 = vector.shape_cast %45 : vector<1x16x16x8xbf16> to vector<256x8xbf16>
    %c7 = arith.constant 7 : index
    %c0_26 = arith.constant 0 : index
    %c0_27 = arith.constant 0 : index
    %47 = vector.load %arg2[%c7, %c0_26, %c0_27] : memref<9x8x128xbf16, #tpu.memory_space<vmem>>, vector<1x8x128xbf16>
    %48 = vector.shape_cast %47 : vector<1x8x128xbf16> to vector<8x128xbf16>
    %cst_28 = arith.constant dense<0.000000e+00> : vector<256x128xf32>
    %49 = tpu.matmul %46, %48, %cst_28 {dimension_numbers = #tpu.dot_dimension_numbers<[1], [0], [0], [1], [0, 0, 1, 1], [], []>} : vector<256x8xbf16>, vector<8x128xbf16>, vector<256x128xf32> -> vector<256x128xf32>
    %50 = arith.addf %44, %49 : vector<256x128xf32>
    %51 = vector.extract_strided_slice %0 {offsets = [0, 2, 2, 0], sizes = [1, 16, 16, 8], strides = [1, 1, 1, 1]} : vector<1x18x18x8xbf16> to vector<1x16x16x8xbf16>
    %52 = vector.shape_cast %51 : vector<1x16x16x8xbf16> to vector<256x8xbf16>
    %c8 = arith.constant 8 : index
    %c0_29 = arith.constant 0 : index
    %c0_30 = arith.constant 0 : index
    %53 = vector.load %arg2[%c8, %c0_29, %c0_30] : memref<9x8x128xbf16, #tpu.memory_space<vmem>>, vector<1x8x128xbf16>
    %54 = vector.shape_cast %53 : vector<1x8x128xbf16> to vector<8x128xbf16>
    %cst_31 = arith.constant dense<0.000000e+00> : vector<256x128xf32>
    %55 = tpu.matmul %52, %54, %cst_31 {dimension_numbers = #tpu.dot_dimension_numbers<[1], [0], [0], [1], [0, 0, 1, 1], [], []>} : vector<256x8xbf16>, vector<8x128xbf16>, vector<256x128xf32> -> vector<256x128xf32>
    %56 = arith.addf %50, %55 : vector<256x128xf32>
    %c0_32 = arith.constant 0 : index
    %c0_33 = arith.constant 0 : index
    %57 = vector.load %arg3[%c0_32, %c0_33] : memref<1x128xf32, #tpu.memory_space<vmem>>, vector<1x128xf32>
    %58 = vector.broadcast %57 : vector<1x128xf32> to vector<256x128xf32>
    %59 = arith.addf %56, %58 : vector<256x128xf32>
    %cst_34 = arith.constant 0.000000e+00 : f32
    %60 = vector.broadcast %cst_34 : f32 to vector<256x128xf32>
    %61 = arith.maximumf %59, %60 : vector<256x128xf32>
    %62 = vector.shape_cast %61 : vector<256x128xf32> to vector<1x256x128xf32>
    %cst_35 = arith.constant dense<0.000000e+00> : vector<1x128xf32>
    %63 = vector.multi_reduction <add>, %62, %cst_35 [1] : vector<1x256x128xf32> to vector<1x128xf32>
    %64 = arith.addf %1, %63 : vector<1x128xf32>
    %cst_36 = arith.constant 3.906250e-03 : f32
    %65 = vector.broadcast %cst_36 : f32 to vector<1x128xf32>
    %66 = arith.mulf %64, %65 : vector<1x128xf32>
    %67 = arith.truncf %66 : vector<1x128xf32> to vector<1x128xbf16>
    %c0_37 = arith.constant 0 : index
    %c0_38 = arith.constant 0 : index
    %68 = vector.load %arg4[%c0_37, %c0_38] : memref<128x128xbf16, #tpu.memory_space<vmem>>, vector<128x128xbf16>
    %cst_39 = arith.constant dense<0.000000e+00> : vector<1x128xf32>
    %69 = tpu.matmul %67, %68, %cst_39 {dimension_numbers = #tpu.dot_dimension_numbers<[1], [0], [0], [1], [0, 0, 1, 1], [], []>} : vector<1x128xbf16>, vector<128x128xbf16>, vector<1x128xf32> -> vector<1x128xf32>
    %c0_40 = arith.constant 0 : index
    %c0_41 = arith.constant 0 : index
    %70 = vector.load %arg5[%c0_40, %c0_41] : memref<1x128xf32, #tpu.memory_space<vmem>>, vector<1x128xf32>
    %71 = arith.addf %69, %70 : vector<1x128xf32>
    %72 = vector.shape_cast %71 : vector<1x128xf32> to vector<1x1x128xf32>
    %c0_42 = arith.constant 0 : index
    %c0_43 = arith.constant 0 : index
    %c0_44 = arith.constant 0 : index
    %73 = vector.load %arg6[%c0_42, %c0_43, %c0_44] : memref<1x1x128xf32, #tpu.memory_space<vmem>>, vector<1x1x128xf32>
    tpu.vector_store %arg6[%c0_42, %c0_43, %c0_44], %72 {strides = array<i32>} : memref<1x1x128xf32, #tpu.memory_space<vmem>>, vector<1x1x128xf32>,
    return
  }
  func.func @transform_0(%arg0: i32) -> (i32, i32, i32, i32) {
    %c0_i32 = arith.constant 0 : i32
    %c0_i32_0 = arith.constant 0 : i32
    %c0_i32_1 = arith.constant 0 : i32
    %c0_i32_2 = arith.constant 0 : i32
    return %arg0, %c0_i32, %c0_i32_0, %c0_i32_1 : i32, i32, i32, i32
  }
  func.func @transform_1(%arg0: i32) -> (i32, i32, i32) {
    %c0_i32 = arith.constant 0 : i32
    %c0_i32_0 = arith.constant 0 : i32
    %c0_i32_1 = arith.constant 0 : i32
    %c0_i32_2 = arith.constant 0 : i32
    return %c0_i32, %c0_i32_0, %c0_i32_1 : i32, i32, i32
  }
  func.func @transform_2(%arg0: i32) -> (i32, i32) {
    %c0_i32 = arith.constant 0 : i32
    %c0_i32_0 = arith.constant 0 : i32
    %c0_i32_1 = arith.constant 0 : i32
    return %c0_i32, %c0_i32_0 : i32, i32
  }
  func.func @transform_3(%arg0: i32) -> (i32, i32) {
    %c0_i32 = arith.constant 0 : i32
    %c0_i32_0 = arith.constant 0 : i32
    %c0_i32_1 = arith.constant 0 : i32
    return %c0_i32, %c0_i32_0 : i32, i32
  }
  func.func @transform_4(%arg0: i32) -> (i32, i32) {
    %c0_i32 = arith.constant 0 : i32
    %c0_i32_0 = arith.constant 0 : i32
    %c0_i32_1 = arith.constant 0 : i32
    return %c0_i32, %c0_i32_0 : i32, i32
  }
  func.func @transform_5(%arg0: i32) -> (i32, i32, i32) {
    %c0_i32 = arith.constant 0 : i32
    %c0_i32_0 = arith.constant 0 : i32
    %c0_i32_1 = arith.constant 0 : i32
    return %arg0, %c0_i32, %c0_i32_0 : i32, i32, i32
  }
}

</mosaic_0001>

<llo_original>
// kernel: _packed_forward.2
$region0: #{_packed_forward.2}
  #allocation0 [shape = 'u32[]', space=smem, size = 0x4, offset = 0x4, fixed_abs, tag = 'smem constant byte address 0x4 - core index']
  #allocation1 [shape = 'u32[72,128]{1,0:T(1,128)}', space=vmem, size = 0x9000, scoped, tag = 'internal scratch']
  #allocation2 [shape = 'u32[2048]{0}', space=vmem, size = 0x2000, scoped, tag = 'scoped memory for _packed_forward.2']
  #allocation3 [shape = 'u32[2048]{0}', space=vmem, size = 0x2000, scoped, tag = 'scoped memory for _packed_forward.2']
  #allocation4 [shape = 'u32[2048]{0}', space=vmem, size = 0x2000, scoped, tag = 'scoped memory for _packed_forward.2']
  #allocation5 [shape = 'u32[2048]{0}', space=vmem, size = 0x2000, scoped, tag = 'scoped memory for _packed_forward.2']
  #allocation6 [shape = 'u32[2048]{0}', space=vmem, size = 0x2000, scoped, tag = 'scoped memory for _packed_forward.2']
  %s0 = inlined_call_operand.vmem [shape: bf16[9,8,128], index: 0, kind: input, shape index: {}]
  %s1 = inlined_call_operand.vmem [shape: f32[1,128], index: 1, kind: input, shape index: {}]
  %s2 = inlined_call_operand.vmem [shape: bf16[128,128], index: 2, kind: input, shape index: {}]
  %s3 = inlined_call_operand.vmem [shape: f32[1,128], index: 3, kind: input, shape index: {}]
  %s4 = inlined_call_operand.vmem [shape: bf16[2,16,16,4], index: 4, kind: input, shape index: {}]
  %s5 = inlined_call_operand.<no memory space> [shape: bf16[], index: 5, kind: input, shape index: {}]
  %s6 = inlined_call_operand.hbm [shape: f32[2,1,128], index: 6, kind: output, shape index: {}]
  %s7 = sld [smem:[#allocation0]]
  $region53: #{_packed_forward.2} parent=0
    _
  %s9 = ssub.s32 1, %s7
  %s10 = scalar_select 0, %s9, %s7
  %v11 = vstv %s5
  %v12 = vunpack.i.l.bf16 %v11
  %v14 = vunpack.i.h.bf16 %v11
  $region1: #{_packed_forward.2} parent=0
    #allocation7 [shape = 'u8[1024]{0}', space=vmem, size = 0x400, scoped, tag = 'output window, operand 0']
    #allocation8 [shape = 's32[2]{0}', space=sflag, size = 0x8, scoped, tag = 'scoped memory for _packed_forward.2']
    %16 = vsyncpa [#allocation8], 0
    %s17 = scalar_lea.sflag [#allocation8], 1
    %18 = vsyncpa %s17, 0
    loop: start=0, step=1, limit=4
    $region2: #{_packed_forward.2} parent=1 // loop_pre_header
      _
    $region3: #{_packed_forward.2} parent=1 // loop_header
      %s20 = sphi 0, %s24
      %p21 = scmp.ge.s32.totalorder %s20, 4
      %s30 = sphi 0, %s32
      %s33 = sphi 0, %s30
      %s34 = sphi 0, %s33
      %s50 = sphi 0, %s34
      %s54 = sphi 0, %s54
      %s56 = sphi 0, %s54
      %s57 = sphi 0, %s56
      %s71 = sphi 0, %s57
      %s75 = sphi 0, %s75
      %s77 = sphi 0, %s75
      %s78 = sphi 0, %s77
      %s92 = sphi 0, %s78
      %s96 = sphi 0, %s96
      %s98 = sphi 0, %s96
      %s99 = sphi 0, %s98
      %s113 = sphi 0, %s99
      %s117 = sphi 0, %s117
      %s119 = sphi 0, %s117
      %s120 = sphi 0, %s119
      %s134 = sphi 0, %s120
      %s140 = sphi 0, %s142
      %s143 = sphi 0, %s140
      %s144 = sphi 0, %s143
      %s160 = sphi 0, %s144
    $region4: #{_packed_forward.2} parent=1 // loop_header_branch
      %23 = sbr.rel (%p21) target = $region8
    $region5: #{_packed_forward.2} parent=1 // loop_body
      %s25 = ssub.s32 %s20, 1
      %s26 = ssub.s32 %s20, 2
      %s27 = sadd.s32 %s20, 1
      %s28 = ssub.s32 %s20, %s27
      %p29 = scmp.eq.s32.totalorder %s28, 0
      %s31 = sadd.s32 %s30, 1
      %s32 = scalar_select %p29, %s30, %s31
      %p35 = pneg %p29
      %p36 = scmp.eq.s32.totalorder %s20, 1
      %p37 = por %p35, %p36
      %p38 = scmp.ne.s32.totalorder %s30, %s33
      %p39 = scmp.eq.s32.totalorder %s20, 0
      %p40 = por %p38, %p39
      %p41 = scmp.ne.s32.totalorder %s30, %s33
      %p42 = scmp.eq.s32.totalorder %s25, 1
      %p43 = por %p41, %p42
      %p44 = scmp.ne.s32.totalorder %s33, %s34
      %p45 = scmp.eq.s32.totalorder %s25, 0
      %p46 = por %p44, %p45
      %p47 = scmp.ne.s32.totalorder %s33, %s34
      %p48 = scmp.eq.s32.totalorder %s26, 1
      %p49 = por %p47, %p48
      %p51 = scmp.ne.s32.totalorder %s34, %s50
      %p52 = scmp.eq.s32.totalorder %s26, 0
      %p53 = por %p51, %p52
      %s55 = sadd.s32 %s54, 1
      %p58 = scmp.eq.s32.totalorder %s20, 1
      %p59 = scmp.ne.s32.totalorder %s54, %s56
      %p60 = scmp.eq.s32.totalorder %s20, 0
      %p61 = por %p59, %p60
      %p62 = scmp.ne.s32.totalorder %s54, %s56
      %p63 = scmp.eq.s32.totalorder %s25, 1
      %p64 = por %p62, %p63
      %p65 = scmp.ne.s32.totalorder %s56, %s57
      %p66 = scmp.eq.s32.totalorder %s25, 0
      %p67 = por %p65, %p66
      %p68 = scmp.ne.s32.totalorder %s56, %s57
      %p69 = scmp.eq.s32.totalorder %s26, 1
      %p70 = por %p68, %p69
      %p72 = scmp.ne.s32.totalorder %s57, %s71
      %p73 = scmp.eq.s32.totalorder %s26, 0
      %p74 = por %p72, %p73
      %s76 = sadd.s32 %s75, 1
      %p79 = scmp.eq.s32.totalorder %s20, 1
      %p80 = scmp.ne.s32.totalorder %s75, %s77
      %p81 = scmp.eq.s32.totalorder %s20, 0
      %p82 = por %p80, %p81
      %p83 = scmp.ne.s32.totalorder %s75, %s77
      %p84 = scmp.eq.s32.totalorder %s25, 1
      %p85 = por %p83, %p84
      %p86 = scmp.ne.s32.totalorder %s77, %s78
      %p87 = scmp.eq.s32.totalorder %s25, 0
      %p88 = por %p86, %p87
      %p89 = scmp.ne.s32.totalorder %s77, %s78
      %p90 = scmp.eq.s32.totalorder %s26, 1
      %p91 = por %p89, %p90
      %p93 = scmp.ne.s32.totalorder %s78, %s92
      %p94 = scmp.eq.s32.totalorder %s26, 0
      %p95 = por %p93, %p94
      %s97 = sadd.s32 %s96, 1
      %p100 = scmp.eq.s32.totalorder %s20, 1
      %p101 = scmp.ne.s32.totalorder %s96, %s98
      %p102 = scmp.eq.s32.totalorder %s20, 0
      %p103 = por %p101, %p102
      %p104 = scmp.ne.s32.totalorder %s96, %s98
      %p105 = scmp.eq.s32.totalorder %s25, 1
      %p106 = por %p104, %p105
      %p107 = scmp.ne.s32.totalorder %s98, %s99
      %p108 = scmp.eq.s32.totalorder %s25, 0
      %p109 = por %p107, %p108
      %p110 = scmp.ne.s32.totalorder %s98, %s99
      %p111 = scmp.eq.s32.totalorder %s26, 1
      %p112 = por %p110, %p111
      %p114 = scmp.ne.s32.totalorder %s99, %s113
      %p115 = scmp.eq.s32.totalorder %s26, 0
      %p116 = por %p114, %p115
      %s118 = sadd.s32 %s117, 1
      %p121 = scmp.eq.s32.totalorder %s20, 1
      %p122 = scmp.ne.s32.totalorder %s117, %s119
      %p123 = scmp.eq.s32.totalorder %s20, 0
      %p124 = por %p122, %p123
      %p125 = scmp.ne.s32.totalorder %s117, %s119
      %p126 = scmp.eq.s32.totalorder %s25, 1
      %p127 = por %p125, %p126
      %p128 = scmp.ne.s32.totalorder %s119, %s120
      %p129 = scmp.eq.s32.totalorder %s25, 0
      %p130 = por %p128, %p129
      %p131 = scmp.ne.s32.totalorder %s119, %s120
      %p132 = scmp.eq.s32.totalorder %s26, 1
      %p133 = por %p131, %p132
      %p135 = scmp.ne.s32.totalorder %s120, %s134
      %p136 = scmp.eq.s32.totalorder %s26, 0
      %p137 = por %p135, %p136
      %s138 = ssub.s32 %s20, %s27
      %p139 = scmp.eq.s32.totalorder %s138, 0
      %s141 = sadd.s32 %s140, 1
      %s142 = scalar_select %p139, %s140, %s141
      %p145 = pneg %p139
      %p146 = scmp.eq.s32.totalorder %s20, 1
      %p147 = por %p145, %p146
      %p148 = scmp.ne.s32.totalorder %s140, %s143
      %p149 = scmp.eq.s32.totalorder %s20, 0
      %p150 = por %p148, %p149
      %p151 = scmp.ne.s32.totalorder %s140, %s143
      %p152 = scmp.eq.s32.totalorder %s25, 1
      %p153 = por %p151, %p152
      %p154 = scmp.ne.s32.totalorder %s143, %s144
      %p155 = scmp.eq.s32.totalorder %s25, 0
      %p156 = por %p154, %p155
      %p157 = scmp.ne.s32.totalorder %s143, %s144
      %p158 = scmp.eq.s32.totalorder %s26, 1
      %p159 = por %p157, %p158
      %p161 = scmp.ne.s32.totalorder %s144, %s160
      %p162 = scmp.eq.s32.totalorder %s26, 0
      %p163 = por %p161, %p162
      %p164 = scmp.le.s32.totalorder 1, %s20
      %p165 = scmp.lt.s32.totalorder %s20, 3
      %p166 = pnand %p164, %p165
      %p167 = pneg %p166
      // Predicated region
      $region9: #{_packed_forward.2} parent=5 // pred_check
        _
      $region10: #{_packed_forward.2} parent=5 // pred_check_branch
        %169 = sbr.rel (%p166) target = $region12
      $region11: #{_packed_forward.2} parent=5 // pred_region
        %s170 = ssub.s32 %s20, 1
        // Predicated region
        $region13: #{_packed_forward.2} parent=11 // pred_check
          %p171 = pneg %p67
        $region14: #{_packed_forward.2} parent=11 // pred_check_branch
          %173 = sbr.rel (%p171) target = $region16
        $region15: #{_packed_forward.2} parent=11 // pred_region
          _
        $region16: #{_packed_forward.2} parent=11 // pred_fallthru
          _
        // Predicated region
        $region17: #{_packed_forward.2} parent=11 // pred_check
          %p174 = pneg %p88
        $region18: #{_packed_forward.2} parent=11 // pred_check_branch
          %176 = sbr.rel (%p174) target = $region20
        $region19: #{_packed_forward.2} parent=11 // pred_region
          _
        $region20: #{_packed_forward.2} parent=11 // pred_fallthru
          _
        // Predicated region
        $region21: #{_packed_forward.2} parent=11 // pred_check
          %p177 = pneg %p109
        $region22: #{_packed_forward.2} parent=11 // pred_check_branch
          %179 = sbr.rel (%p177) target = $region24
        $region23: #{_packed_forward.2} parent=11 // pred_region
          _
        $region24: #{_packed_forward.2} parent=11 // pred_fallthru
          _
        // Predicated region
        $region25: #{_packed_forward.2} parent=11 // pred_check
          %p180 = pneg %p130
        $region26: #{_packed_forward.2} parent=11 // pred_check_branch
          %182 = sbr.rel (%p180) target = $region28
        $region27: #{_packed_forward.2} parent=11 // pred_region
          _
        $region28: #{_packed_forward.2} parent=11 // pred_fallthru
          _
      $region12: #{_packed_forward.2} parent=5 // pred_fallthru
        _
      %p183 = scmp.lt.s32.totalorder %s20, 2
      // Predicated region
      $region29: #{_packed_forward.2} parent=5 // pred_check
        %p184 = pneg %p183
      $region30: #{_packed_forward.2} parent=5 // pred_check_branch
        %186 = sbr.rel (%p184) target = $region32
      $region31: #{_packed_forward.2} parent=5 // pred_region
        // Predicated region
        $region33: #{_packed_forward.2} parent=31 // pred_check
          %p187 = pneg %p40
        $region34: #{_packed_forward.2} parent=31 // pred_check_branch
          %189 = sbr.rel (%p187) target = $region36
        $region35: #{_packed_forward.2} parent=31 // pred_region
          %p190 = scmp.lt.s32.totalorder %s20, 1
          %s191 = scalar_select %p190, %s20, 1
          %s192 = smul.addr %s191, 32
          %s193 = sadd.s32 4294967293, %s192
          %s194 = smul.addr %s193, 4
          %s195 = scalar_lea.vmem %s4, %s194
        $region36: #{_packed_forward.2} parent=31 // pred_fallthru
          _
      $region32: #{_packed_forward.2} parent=5 // pred_fallthru
        _
      %p196 = scmp.le.s32.totalorder 1, %s20
      %p197 = scmp.lt.s32.totalorder %s20, 3
      %p198 = pnand %p196, %p197
      %p199 = pneg %p198
      // Predicated region
      $region37: #{_packed_forward.2} parent=5 // pred_check
        _
      $region38: #{_packed_forward.2} parent=5 // pred_check_branch
        %201 = sbr.rel (%p198) target = $region40
      $region39: #{_packed_forward.2} parent=5 // pred_region
        #allocation9 [shape = 'u8[110592]{0}', space=vmem, size = 0x1b000, dematerialized = true, scoped, tag = 'FusionAdapter Buffer %fusion.1 = bf16[2,18,18,8]{3,2,1,0:T(8,128)(2,1)} fusion(%param_4.1, %param_5), kind=kLoop, calls=%fused_computation.1.clone, metadata={op_name="jit(_packed_forward)/jit(_pad)/pad" stack_frame_id=9}']
        %s202 = ssub.s32 %s20, 1
        %p203 = scmp.lt.s32.totalorder %s25, 1
        %s204 = scalar_select %p203, %s25, 1
        %s205 = smul.addr %s204, 32
        %s206 = sadd.s32 4294967293, %s205
        %s207 = smul.addr %s206, 4
        %s208 = scalar_lea.vmem %s4, %s207
        %p209 = pneg %p46
        %p210 = pneg %p43
        %p211 = pneg %p67
        %p212 = pneg %p64
        %p213 = pneg %p88
        %p214 = pneg %p85
        %p215 = pneg %p109
        %p216 = pneg %p106
        %p217 = pneg %p130
        %p218 = pneg %p127
        %p219 = pneg %p156
        %p220 = pneg %p153
        %s221 = sand.u32 %s143, 1
        %s222 = scalar_lea.sflag [#allocation8], %s221
        %s223 = sand.u32 %s143, 1
        %s224 = scalar_lea.vmem [#allocation7], %s223
        %p225 = scmp.lt.s32.totalorder %s25, 1
        %s226 = scalar_select %p225, %s25, 1
        %s227 = smul.addr %s226, 32
        %s228 = sadd.s32 4294967293, %s227
        %s229 = smul.addr %s228, 4
        %s230 = scalar_lea.vmem %s4, %s229
        %s232 = sand.u32 0, 85
        %s233 = sshrl.u32 %s232, 1
        %s234 = sor.u32 %s232, %s233
        %s235 = sand.u32 51, %s234
        %s236 = sshrl.u32 %s235, 2
        %s237 = sor.u32 %s235, %s236
        %s238 = sand.u32 15, %s237
        %v239 = vld [vmem:[%s230] sm:%s238]
        %v240 = vunpack.c.l.bf16 %v239
        %v241 = vunpack.c.h.bf16 %v239
        %s242 = scalar_lea.vmem %s230, 4
        %s244 = sand.u32 0, 85
        %s245 = sshrl.u32 %s244, 1
        %s246 = sor.u32 %s244, %s245
        %s247 = sand.u32 51, %s246
        %s248 = sshrl.u32 %s247, 2
        %s249 = sor.u32 %s247, %s248
        %s250 = sand.u32 15, %s249
        %v251 = vld [vmem:[%s242] sm:%s250]
        %v252 = vunpack.c.l.bf16 %v251
        %v253 = vunpack.c.h.bf16 %v251
        %v254 = vpack.c.bf16 0.0, %v12
        %s256 = ssub.s32 16, 1
        %257 = vst [vmem:[#allocation9] sm:%s256] %v254
        %s258 = scalar_lea.vmem %s230, 8
        %s260 = sand.u32 0, 85
        %s261 = sshrl.u32 %s260, 1
        %s262 = sor.u32 %s260, %s261
        %s263 = sand.u32 51, %s262
        %s264 = sshrl.u32 %s263, 2
        %s265 = sor.u32 %s263, %s264
        %s266 = sand.u32 15, %s265
        %v267 = vld [vmem:[%s258] sm:%s266]
        %v268 = vunpack.c.l.bf16 %v267
        %v269 = vunpack.c.h.bf16 %v267
        %s270 = scalar_lea.vmem [#allocation9], 4
        %v271 = vpack.c.bf16 0.0, %v12
        %s273 = ssub.s32 16, 1
        %274 = vst [vmem:[%s270] sm:%s273] %v271
        %s275 = scalar_lea.vmem [#allocation9], 8
        %v276 = vpack.c.bf16 0.0, %v12
        %s278 = ssub.s32 16, 1
        %279 = vst [vmem:[%s275] sm:%s278] %v276
        %s280 = scalar_lea.vmem %s230, 8
        %s282 = sand.u32 0, 85
        %s283 = sshrl.u32 %s282, 1
        %s284 = sor.u32 %s282, %s283
        %s285 = sand.u32 51, %s284
        %s286 = sshrl.u32 %s285, 2
        %s287 = sor.u32 %s285, %s286
        %s288 = sand.u32 15, %s287
        %v289 = vld [vmem:[%s280] sm:%s288]
        %v290 = vunpack.c.l.bf16 %v289
        %v291 = vunpack.c.h.bf16 %v289
        %s292 = scalar_lea.vmem %s230, 12
        %s294 = sor.u32 255, 127
        %s295 = sand.u32 %s294, 85
        %s296 = sshrl.u32 %s295, 1
        %s297 = sor.u32 %s295, %s296
        %s298 = sand.u32 51, %s297
        %s299 = sshrl.u32 %s298, 2
        %s300 = sor.u32 %s298, %s299
        %s301 = sand.u32 15, %s300
        %v302 = vld [vmem:[%s292] sm:%s301]
        %v303 = vunpack.c.l.bf16 %v302
        %v304 = vunpack.c.h.bf16 %v302
        %v305 = vlaneseq
        %v306 = vand.u32 %v305, 127
        %vm308 = vcmp.lt.s32.totalorder %v306, 4
        %v309 = vsel %vm308, %v303, %v12
        %vm310 = vcmask 1046528
        %v311 = vsel %vm310, %v309, %v12
        %v312 = vrot.slane %v311, 7
        %s313 = scalar_lea.vmem [#allocation9], 12
        %v314 = vpack.c.bf16 0.0, %v312
        %s316 = ssub.s32 16, 1
        %317 = vst [vmem:[%s313] sm:%s316] %v314
        %s318 = scalar_lea.vmem %s230, 16
        %s320 = sor.u32 255, 127
        %s321 = sand.u32 %s320, 85
        %s322 = sshrl.u32 %s321, 1
        %s323 = sor.u32 %s321, %s322
        %s324 = sand.u32 51, %s323
        %s325 = sshrl.u32 %s324, 2
        %s326 = sor.u32 %s324, %s325
        %s327 = sand.u32 15, %s326
        %v328 = vld [vmem:[%s318] sm:%s327]
        %v329 = vunpack.c.l.bf16 %v328
        %v330 = vunpack.c.h.bf16 %v328
        %v331 = vlaneseq
        %v332 = vand.u32 %v331, 127
        %vm334 = vcmp.lt.s32.totalorder %v332, 4
        %v335 = vsel %vm334, %v329, %v12
        %vm336 = vcmask 1046528
        %v337 = vsel %vm336, %v335, %v309
        %v338 = vrot.slane %v337, 7
        %s339 = scalar_lea.vmem [#allocation9], 16
        %v340 = vpack.c.bf16 0.0, %v338
        %s342 = ssub.s32 16, 1
        %343 = vst [vmem:[%s339] sm:%s342] %v340
        %vm344 = vcmask 1046528
        %v345 = vsel %vm344, %v12, %v335
        %v346 = vrot.slane %v345, 7
        %s347 = scalar_lea.vmem [#allocation9], 20
        %v348 = vpack.c.bf16 0.0, %v346
        %s350 = ssub.s32 16, 1
        %351 = vst [vmem:[%s347] sm:%s350] %v348
        %s352 = scalar_lea.vmem %s230, 16
        %s354 = sand.u32 0, 85
        %s355 = sshrl.u32 %s354, 1
        %s356 = sor.u32 %s354, %s355
        %s357 = sand.u32 51, %s356
        %s358 = sshrl.u32 %s357, 2
        %s359 = sor.u32 %s357, %s358
        %s360 = sand.u32 15, %s359
        %v361 = vld [vmem:[%s352] sm:%s360]
        %v362 = vunpack.c.l.bf16 %v361
        %v363 = vunpack.c.h.bf16 %v361
        %s364 = scalar_lea.vmem %s230, 20
        %s366 = sor.u32 255, 127
        %s367 = sand.u32 %s366, 85
        %s368 = sshrl.u32 %s367, 1
        %s369 = sor.u32 %s367, %s368
        %s370 = sand.u32 51, %s369
        %s371 = sshrl.u32 %s370, 2
        %s372 = sor.u32 %s370, %s371
        %s373 = sand.u32 15, %s372
        %v374 = vld [vmem:[%s364] sm:%s373]
        %v375 = vunpack.c.l.bf16 %v374
        %v376 = vunpack.c.h.bf16 %v374
        %v377 = vlaneseq
        %v378 = vand.u32 %v377, 127
        %vm380 = vcmp.lt.s32.totalorder %v378, 4
        %v381 = vsel %vm380, %v375, %v12
        %vm382 = vcmask 1046528
        %v383 = vsel %vm382, %v381, %v12
        %v384 = vrot.slane %v383, 7
        %s385 = scalar_lea.vmem [#allocation9], 24
        %v386 = vpack.c.bf16 0.0, %v384
        %s388 = ssub.s32 16, 1
        %389 = vst [vmem:[%s385] sm:%s388] %v386
        %s390 = scalar_lea.vmem %s230, 24
        %s392 = sor.u32 255, 127
        %s393 = sand.u32 %s392, 85
        %s394 = sshrl.u32 %s393, 1
        %s395 = sor.u32 %s393, %s394
        %s396 = sand.u32 51, %s395
        %s397 = sshrl.u32 %s396, 2
        %s398 = sor.u32 %s396, %s397
        %s399 = sand.u32 15, %s398
        %v400 = vld [vmem:[%s390] sm:%s399]
        %v401 = vunpack.c.l.bf16 %v400
        %v402 = vunpack.c.h.bf16 %v400
        %v403 = vlaneseq
        %v404 = vand.u32 %v403, 127
        %vm406 = vcmp.lt.s32.totalorder %v404, 4
        %v407 = vsel %vm406, %v401, %v12
        %vm408 = vcmask 1046528
        %v409 = vsel %vm408, %v407, %v381
        %v410 = vrot.slane %v409, 7
        %s411 = scalar_lea.vmem [#allocation9], 28
        %v412 = vpack.c.bf16 0.0, %v410
        %s414 = ssub.s32 16, 1
        %415 = vst [vmem:[%s411] sm:%s414] %v412
        %vm416 = vcmask 1046528
        %v417 = vsel %vm416, %v12, %v407
        %v418 = vrot.slane %v417, 7
        %s419 = scalar_lea.vmem [#allocation9], 32
        %v420 = vpack.c.bf16 0.0, %v418
        %s422 = ssub.s32 16, 1
        %423 = vst [vmem:[%s419] sm:%s422] %v420
        %s424 = scalar_lea.vmem %s230, 24
        %s426 = sand.u32 0, 85
        %s427 = sshrl.u32 %s426, 1
        %s428 = sor.u32 %s426, %s427
        %s429 = sand.u32 51, %s428
        %s430 = sshrl.u32 %s429, 2
        %s431 = sor.u32 %s429, %s430
        %s432 = sand.u32 15, %s431
        %v433 = vld [vmem:[%s424] sm:%s432]
        %v434 = vunpack.c.l.bf16 %v433
        %v435 = vunpack.c.h.bf16 %v433
        %s436 = scalar_lea.vmem %s230, 28
        %s438 = sor.u32 255, 127
        %s439 = sand.u32 %s438, 85
        %s440 = sshrl.u32 %s439, 1
        %s441 = sor.u32 %s439, %s440
        %s442 = sand.u32 51, %s441
        %s443 = sshrl.u32 %s442, 2
        %s444 = sor.u32 %s442, %s443
        %s445 = sand.u32 15, %s444
        %v446 = vld [vmem:[%s436] sm:%s445]
        %v447 = vunpack.c.l.bf16 %v446
        %v448 = vunpack.c.h.bf16 %v446
        %v449 = vlaneseq
        %v450 = vand.u32 %v449, 127
        %vm452 = vcmp.lt.s32.totalorder %v450, 4
        %v453 = vsel %vm452, %v447, %v12
        %vm454 = vcmask 1046528
        %v455 = vsel %vm454, %v453, %v12
        %v456 = vrot.slane %v455, 7
        %s457 = scalar_lea.vmem [#allocation9], 36
        %v458 = vpack.c.bf16 0.0, %v456
        %s460 = ssub.s32 16, 1
        %461 = vst [vmem:[%s457] sm:%s460] %v458
        %s462 = scalar_lea.vmem %s230, 32
        %s464 = sor.u32 255, 127
        %s465 = sand.u32 %s464, 85
        %s466 = sshrl.u32 %s465, 1
        %s467 = sor.u32 %s465, %s466
        %s468 = sand.u32 51, %s467
        %s469 = sshrl.u32 %s468, 2
        %s470 = sor.u32 %s468, %s469
        %s471 = sand.u32 15, %s470
        %v472 = vld [vmem:[%s462] sm:%s471]
        %v473 = vunpack.c.l.bf16 %v472
        %v474 = vunpack.c.h.bf16 %v472
        %v475 = vlaneseq
        %v476 = vand.u32 %v475, 127
        %vm478 = vcmp.lt.s32.totalorder %v476, 4
        %v479 = vsel %vm478, %v473, %v12
        %vm480 = vcmask 1046528
        %v481 = vsel %vm480, %v479, %v453
        %v482 = vrot.slane %v481, 7
        %s483 = scalar_lea.vmem [#allocation9], 40
        %v484 = vpack.c.bf16 0.0, %v482
        %s486 = ssub.s32 16, 1
        %487 = vst [vmem:[%s483] sm:%s486] %v484
        %vm488 = vcmask 1046528
        %v489 = vsel %vm488, %v12, %v479
        %v490 = vrot.slane %v489, 7
        %s491 = scalar_lea.vmem [#allocation9], 44
        %v492 = vpack.c.bf16 0.0, %v490
        %s494 = ssub.s32 16, 1
        %495 = vst [vmem:[%s491] sm:%s494] %v492
        %s496 = scalar_lea.vmem %s230, 32
        %s498 = sand.u32 0, 85
        %s499 = sshrl.u32 %s498, 1
        %s500 = sor.u32 %s498, %s499
        %s501 = sand.u32 51, %s500
        %s502 = sshrl.u32 %s501, 2
        %s503 = sor.u32 %s501, %s502
        %s504 = sand.u32 15, %s503
        %v505 = vld [vmem:[%s496] sm:%s504]
        %v506 = vunpack.c.l.bf16 %v505
        %v507 = vunpack.c.h.bf16 %v505
        %s508 = scalar_lea.vmem %s230, 36
        %s510 = sor.u32 255, 127
        %s511 = sand.u32 %s510, 85
        %s512 = sshrl.u32 %s511, 1
        %s513 = sor.u32 %s511, %s512
        %s514 = sand.u32 51, %s513
        %s515 = sshrl.u32 %s514, 2
        %s516 = sor.u32 %s514, %s515
        %s517 = sand.u32 15, %s516
        %v518 = vld [vmem:[%s508] sm:%s517]
        %v519 = vunpack.c.l.bf16 %v518
        %v520 = vunpack.c.h.bf16 %v518
        %v521 = vlaneseq
        %v522 = vand.u32 %v521, 127
        %vm524 = vcmp.lt.s32.totalorder %v522, 4
        %v525 = vsel %vm524, %v519, %v12
        %vm526 = vcmask 1046528
        %v527 = vsel %vm526, %v525, %v12
        %v528 = vrot.slane %v527, 7
        %s529 = scalar_lea.vmem [#allocation9], 48
        %v530 = vpack.c.bf16 0.0, %v528
        %s532 = ssub.s32 16, 1
        %533 = vst [vmem:[%s529] sm:%s532] %v530
        %s534 = scalar_lea.vmem %s230, 40
        %s536 = sor.u32 255, 127
        %s537 = sand.u32 %s536, 85
        %s538 = sshrl.u32 %s537, 1
        %s539 = sor.u32 %s537, %s538
        %s540 = sand.u32 51, %s539
        %s541 = sshrl.u32 %s540, 2
        %s542 = sor.u32 %s540, %s541
        %s543 = sand.u32 15, %s542
        %v544 = vld [vmem:[%s534] sm:%s543]
        %v545 = vunpack.c.l.bf16 %v544
        %v546 = vunpack.c.h.bf16 %v544
        %v547 = vlaneseq
        %v548 = vand.u32 %v547, 127
        %vm550 = vcmp.lt.s32.totalorder %v548, 4
        %v551 = vsel %vm550, %v545, %v12
        %vm552 = vcmask 1046528
        %v553 = vsel %vm552, %v551, %v525
        %v554 = vrot.slane %v553, 7
        %s555 = scalar_lea.vmem [#allocation9], 52
        %v556 = vpack.c.bf16 0.0, %v554
        %s558 = ssub.s32 16, 1
        %559 = vst [vmem:[%s555] sm:%s558] %v556
        %vm560 = vcmask 1046528
        %v561 = vsel %vm560, %v12, %v551
        %v562 = vrot.slane %v561, 7
        %s563 = scalar_lea.vmem [#allocation9], 56
        %v564 = vpack.c.bf16 0.0, %v562
        %s566 = ssub.s32 16, 1
        %567 = vst [vmem:[%s563] sm:%s566] %v564
        %s568 = scalar_lea.vmem %s230, 40
        %s570 = sand.u32 0, 85
        %s571 = sshrl.u32 %s570, 1
        %s572 = sor.u32 %s570, %s571
        %s573 = sand.u32 51, %s572
        %s574 = sshrl.u32 %s573, 2
        %s575 = sor.u32 %s573, %s574
        %s576 = sand.u32 15, %s575
        %v577 = vld [vmem:[%s568] sm:%s576]
        %v578 = vunpack.c.l.bf16 %v577
        %v579 = vunpack.c.h.bf16 %v577
        %s580 = scalar_lea.vmem %s230, 44
        %s582 = sor.u32 255, 127
        %s583 = sand.u32 %s582, 85
        %s584 = sshrl.u32 %s583, 1
        %s585 = sor.u32 %s583, %s584
        %s586 = sand.u32 51, %s585
        %s587 = sshrl.u32 %s586, 2
        %s588 = sor.u32 %s586, %s587
        %s589 = sand.u32 15, %s588
        %v590 = vld [vmem:[%s580] sm:%s589]
        %v591 = vunpack.c.l.bf16 %v590
        %v592 = vunpack.c.h.bf16 %v590
        %v593 = vlaneseq
        %v594 = vand.u32 %v593, 127
        %vm596 = vcmp.lt.s32.totalorder %v594, 4
        %v597 = vsel %vm596, %v591, %v12
        %vm598 = vcmask 1046528
        %v599 = vsel %vm598, %v597, %v12
        %v600 = vrot.slane %v599, 7
        %s601 = scalar_lea.vmem [#allocation9], 60
        %v602 = vpack.c.bf16 0.0, %v600
        %s604 = ssub.s32 16, 1
        %605 = vst [vmem:[%s601] sm:%s604] %v602
        %s606 = scalar_lea.vmem %s230, 48
        %s608 = sor.u32 255, 127
        %s609 = sand.u32 %s608, 85
        %s610 = sshrl.u32 %s609, 1
        %s611 = sor.u32 %s609, %s610
        %s612 = sand.u32 51, %s611
        %s613 = sshrl.u32 %s612, 2
        %s614 = sor.u32 %s612, %s613
        %s615 = sand.u32 15, %s614
        %v616 = vld [vmem:[%s606] sm:%s615]
        %v617 = vunpack.c.l.bf16 %v616
        %v618 = vunpack.c.h.bf16 %v616
        %v619 = vlaneseq
        %v620 = vand.u32 %v619, 127
        %vm622 = vcmp.lt.s32.totalorder %v620, 4
        %v623 = vsel %vm622, %v617, %v12
        %vm624 = vcmask 1046528
        %v625 = vsel %vm624, %v623, %v597
        %v626 = vrot.slane %v625, 7
        %s627 = scalar_lea.vmem [#allocation9], 64
        %v628 = vpack.c.bf16 0.0, %v626
        %s630 = ssub.s32 16, 1
        %631 = vst [vmem:[%s627] sm:%s630] %v628
        %vm632 = vcmask 1046528
        %v633 = vsel %vm632, %v12, %v623
        %v634 = vrot.slane %v633, 7
        %s635 = scalar_lea.vmem [#allocation9], 68
        %v636 = vpack.c.bf16 0.0, %v634
        %s638 = ssub.s32 16, 1
        %639 = vst [vmem:[%s635] sm:%s638] %v636
        %s640 = scalar_lea.vmem %s230, 48
        %s642 = sand.u32 0, 85
        %s643 = sshrl.u32 %s642, 1
        %s644 = sor.u32 %s642, %s643
        %s645 = sand.u32 51, %s644
        %s646 = sshrl.u32 %s645, 2
        %s647 = sor.u32 %s645, %s646
        %s648 = sand.u32 15, %s647
        %v649 = vld [vmem:[%s640] sm:%s648]
        %v650 = vunpack.c.l.bf16 %v649
        %v651 = vunpack.c.h.bf16 %v649
        %s652 = scalar_lea.vmem %s230, 52
        %s654 = sor.u32 255, 127
        %s655 = sand.u32 %s654, 85
        %s656 = sshrl.u32 %s655, 1
        %s657 = sor.u32 %s655, %s656
        %s658 = sand.u32 51, %s657
        %s659 = sshrl.u32 %s658, 2
        %s660 = sor.u32 %s658, %s659
        %s661 = sand.u32 15, %s660
        %v662 = vld [vmem:[%s652] sm:%s661]
        %v663 = vunpack.c.l.bf16 %v662
        %v664 = vunpack.c.h.bf16 %v662
        %v665 = vlaneseq
        %v666 = vand.u32 %v665, 127
        %vm668 = vcmp.lt.s32.totalorder %v666, 4
        %v669 = vsel %vm668, %v663, %v12
        %vm670 = vcmask 1046528
        %v671 = vsel %vm670, %v669, %v12
        %v672 = vrot.slane %v671, 7
        %s673 = scalar_lea.vmem [#allocation9], 72
        %v674 = vpack.c.bf16 0.0, %v672
        %s676 = ssub.s32 16, 1
        %677 = vst [vmem:[%s673] sm:%s676] %v674
        %s678 = scalar_lea.vmem %s230, 56
        %s680 = sor.u32 255, 127
        %s681 = sand.u32 %s680, 85
        %s682 = sshrl.u32 %s681, 1
        %s683 = sor.u32 %s681, %s682
        %s684 = sand.u32 51, %s683
        %s685 = sshrl.u32 %s684, 2
        %s686 = sor.u32 %s684, %s685
        %s687 = sand.u32 15, %s686
        %v688 = vld [vmem:[%s678] sm:%s687]
        %v689 = vunpack.c.l.bf16 %v688
        %v690 = vunpack.c.h.bf16 %v688
        %v691 = vlaneseq
        %v692 = vand.u32 %v691, 127
        %vm694 = vcmp.lt.s32.totalorder %v692, 4
        %v695 = vsel %vm694, %v689, %v12
        %vm696 = vcmask 1046528
        %v697 = vsel %vm696, %v695, %v669
        %v698 = vrot.slane %v697, 7
        %s699 = scalar_lea.vmem [#allocation9], 76
        %v700 = vpack.c.bf16 0.0, %v698
        %s702 = ssub.s32 16, 1
        %703 = vst [vmem:[%s699] sm:%s702] %v700
        %vm704 = vcmask 1046528
        %v705 = vsel %vm704, %v12, %v695
        %v706 = vrot.slane %v705, 7
        %s707 = scalar_lea.vmem [#allocation9], 80
        %v708 = vpack.c.bf16 0.0, %v706
        %s710 = ssub.s32 16, 1
        %711 = vst [vmem:[%s707] sm:%s710] %v708
        %s712 = scalar_lea.vmem %s230, 56
        %s714 = sand.u32 0, 85
        %s715 = sshrl.u32 %s714, 1
        %s716 = sor.u32 %s714, %s715
        %s717 = sand.u32 51, %s716
        %s718 = sshrl.u32 %s717, 2
        %s719 = sor.u32 %s717, %s718
        %s720 = sand.u32 15, %s719
        %v721 = vld [vmem:[%s712] sm:%s720]
        %v722 = vunpack.c.l.bf16 %v721
        %v723 = vunpack.c.h.bf16 %v721
        %s724 = scalar_lea.vmem %s230, 60
        %s726 = sor.u32 255, 127
        %s727 = sand.u32 %s726, 85
        %s728 = sshrl.u32 %s727, 1
        %s729 = sor.u32 %s727, %s728
        %s730 = sand.u32 51, %s729
        %s731 = sshrl.u32 %s730, 2
        %s732 = sor.u32 %s730, %s731
        %s733 = sand.u32 15, %s732
        %v734 = vld [vmem:[%s724] sm:%s733]
        %v735 = vunpack.c.l.bf16 %v734
        %v736 = vunpack.c.h.bf16 %v734
        %v737 = vlaneseq
        %v738 = vand.u32 %v737, 127
        %vm740 = vcmp.lt.s32.totalorder %v738, 4
        %v741 = vsel %vm740, %v735, %v12
        %vm742 = vcmask 1046528
        %v743 = vsel %vm742, %v741, %v12
        %v744 = vrot.slane %v743, 7
        %s745 = scalar_lea.vmem [#allocation9], 84
        %v746 = vpack.c.bf16 0.0, %v744
        %s748 = ssub.s32 16, 1
        %749 = vst [vmem:[%s745] sm:%s748] %v746
        %s750 = scalar_lea.vmem %s230, 64
        %s752 = sor.u32 255, 127
        %s753 = sand.u32 %s752, 85
        %s754 = sshrl.u32 %s753, 1
        %s755 = sor.u32 %s753, %s754
        %s756 = sand.u32 51, %s755
        %s757 = sshrl.u32 %s756, 2
        %s758 = sor.u32 %s756, %s757
        %s759 = sand.u32 15, %s758
        %v760 = vld [vmem:[%s750] sm:%s759]
        %v761 = vunpack.c.l.bf16 %v760
        %v762 = vunpack.c.h.bf16 %v760
        %v763 = vlaneseq
        %v764 = vand.u32 %v763, 127
        %vm766 = vcmp.lt.s32.totalorder %v764, 4
        %v767 = vsel %vm766, %v761, %v12
        %vm768 = vcmask 1046528
        %v769 = vsel %vm768, %v767, %v741
        %v770 = vrot.slane %v769, 7
        %s771 = scalar_lea.vmem [#allocation9], 88
        %v772 = vpack.c.bf16 0.0, %v770
        %s774 = ssub.s32 16, 1
        %775 = vst [vmem:[%s771] sm:%s774] %v772
        %vm776 = vcmask 1046528
        %v777 = vsel %vm776, %v12, %v767
        %v778 = vrot.slane %v777, 7
        %s779 = scalar_lea.vmem [#allocation9], 92
        %v780 = vpack.c.bf16 0.0, %v778
        %s782 = ssub.s32 16, 1
        %783 = vst [vmem:[%s779] sm:%s782] %v780
        %s784 = scalar_lea.vmem %s230, 64
        %s786 = sand.u32 0, 85
        %s787 = sshrl.u32 %s786, 1
        %s788 = sor.u32 %s786, %s787
        %s789 = sand.u32 51, %s788
        %s790 = sshrl.u32 %s789, 2
        %s791 = sor.u32 %s789, %s790
        %s792 = sand.u32 15, %s791
        %v793 = vld [vmem:[%s784] sm:%s792]
        %v794 = vunpack.c.l.bf16 %v793
        %v795 = vunpack.c.h.bf16 %v793
        %s796 = scalar_lea.vmem %s230, 68
        %s798 = sor.u32 255, 127
        %s799 = sand.u32 %s798, 85
        %s800 = sshrl.u32 %s799, 1
        %s801 = sor.u32 %s799, %s800
        %s802 = sand.u32 51, %s801
        %s803 = sshrl.u32 %s802, 2
        %s804 = sor.u32 %s802, %s803
        %s805 = sand.u32 15, %s804
        %v806 = vld [vmem:[%s796] sm:%s805]
        %v807 = vunpack.c.l.bf16 %v806
        %v808 = vunpack.c.h.bf16 %v806
        %v809 = vlaneseq
        %v810 = vand.u32 %v809, 127
        %vm812 = vcmp.lt.s32.totalorder %v810, 4
        %v813 = vsel %vm812, %v807, %v12
        %vm814 = vcmask 1046528
        %v815 = vsel %vm814, %v813, %v12
        %v816 = vrot.slane %v815, 7
        %s817 = scalar_lea.vmem [#allocation9], 96
        %v818 = vpack.c.bf16 0.0, %v816
        %s820 = ssub.s32 16, 1
        %821 = vst [vmem:[%s817] sm:%s820] %v818
        %s822 = scalar_lea.vmem %s230, 72
        %s824 = sor.u32 255, 127
        %s825 = sand.u32 %s824, 85
        %s826 = sshrl.u32 %s825, 1
        %s827 = sor.u32 %s825, %s826
        %s828 = sand.u32 51, %s827
        %s829 = sshrl.u32 %s828, 2
        %s830 = sor.u32 %s828, %s829
        %s831 = sand.u32 15, %s830
        %v832 = vld [vmem:[%s822] sm:%s831]
        %v833 = vunpack.c.l.bf16 %v832
        %v834 = vunpack.c.h.bf16 %v832
        %v835 = vlaneseq
        %v836 = vand.u32 %v835, 127
        %vm838 = vcmp.lt.s32.totalorder %v836, 4
        %v839 = vsel %vm838, %v833, %v12
        %vm840 = vcmask 1046528
        %v841 = vsel %vm840, %v839, %v813
        %v842 = vrot.slane %v841, 7
        %s843 = scalar_lea.vmem [#allocation9], 100
        %v844 = vpack.c.bf16 0.0, %v842
        %s846 = ssub.s32 16, 1
        %847 = vst [vmem:[%s843] sm:%s846] %v844
        %vm848 = vcmask 1046528
        %v849 = vsel %vm848, %v12, %v839
        %v850 = vrot.slane %v849, 7
        %s851 = scalar_lea.vmem [#allocation9], 104
        %v852 = vpack.c.bf16 0.0, %v850
        %s854 = ssub.s32 16, 1
        %855 = vst [vmem:[%s851] sm:%s854] %v852
        %s856 = scalar_lea.vmem %s230, 72
        %s858 = sand.u32 0, 85
        %s859 = sshrl.u32 %s858, 1
        %s860 = sor.u32 %s858, %s859
        %s861 = sand.u32 51, %s860
        %s862 = sshrl.u32 %s861, 2
        %s863 = sor.u32 %s861, %s862
        %s864 = sand.u32 15, %s863
        %v865 = vld [vmem:[%s856] sm:%s864]
        %v866 = vunpack.c.l.bf16 %v865
        %v867 = vunpack.c.h.bf16 %v865
        %s868 = scalar_lea.vmem %s230, 76
        %s870 = sor.u32 255, 127
        %s871 = sand.u32 %s870, 85
        %s872 = sshrl.u32 %s871, 1
        %s873 = sor.u32 %s871, %s872
        %s874 = sand.u32 51, %s873
        %s875 = sshrl.u32 %s874, 2
        %s876 = sor.u32 %s874, %s875
        %s877 = sand.u32 15, %s876
        %v878 = vld [vmem:[%s868] sm:%s877]
        %v879 = vunpack.c.l.bf16 %v878
        %v880 = vunpack.c.h.bf16 %v878
        %v881 = vlaneseq
        %v882 = vand.u32 %v881, 127
        %vm884 = vcmp.lt.s32.totalorder %v882, 4
        %v885 = vsel %vm884, %v879, %v12
        %vm886 = vcmask 1046528
        %v887 = vsel %vm886, %v885, %v12
        %v888 = vrot.slane %v887, 7
        %s889 = scalar_lea.vmem [#allocation9], 108
        %v890 = vpack.c.bf16 0.0, %v888
        %s892 = ssub.s32 16, 1
        %893 = vst [vmem:[%s889] sm:%s892] %v890
        %s894 = scalar_lea.vmem %s230, 80
        %s896 = sor.u32 255, 127
        %s897 = sand.u32 %s896, 85
        %s898 = sshrl.u32 %s897, 1
        %s899 = sor.u32 %s897, %s898
        %s900 = sand.u32 51, %s899
        %s901 = sshrl.u32 %s900, 2
        %s902 = sor.u32 %s900, %s901
        %s903 = sand.u32 15, %s902
        %v904 = vld [vmem:[%s894] sm:%s903]
        %v905 = vunpack.c.l.bf16 %v904
        %v906 = vunpack.c.h.bf16 %v904
        %v907 = vlaneseq
        %v908 = vand.u32 %v907, 127
        %vm910 = vcmp.lt.s32.totalorder %v908, 4
        %v911 = vsel %vm910, %v905, %v12
        %vm912 = vcmask 1046528
        %v913 = vsel %vm912, %v911, %v885
        %v914 = vrot.slane %v913, 7
        %s915 = scalar_lea.vmem [#allocation9], 112
        %v916 = vpack.c.bf16 0.0, %v914
        %s918 = ssub.s32 16, 1
        %919 = vst [vmem:[%s915] sm:%s918] %v916
        %vm920 = vcmask 1046528
        %v921 = vsel %vm920, %v12, %v911
        %v922 = vrot.slane %v921, 7
        %s923 = scalar_lea.vmem [#allocation9], 116
        %v924 = vpack.c.bf16 0.0, %v922
        %s926 = ssub.s32 16, 1
        %927 = vst [vmem:[%s923] sm:%s926] %v924
        %s928 = scalar_lea.vmem %s230, 80
        %s930 = sand.u32 0, 85
        %s931 = sshrl.u32 %s930, 1
        %s932 = sor.u32 %s930, %s931
        %s933 = sand.u32 51, %s932
        %s934 = sshrl.u32 %s933, 2
        %s935 = sor.u32 %s933, %s934
        %s936 = sand.u32 15, %s935
        %v937 = vld [vmem:[%s928] sm:%s936]
        %v938 = vunpack.c.l.bf16 %v937
        %v939 = vunpack.c.h.bf16 %v937
        %s940 = scalar_lea.vmem %s230, 84
        %s942 = sor.u32 255, 127
        %s943 = sand.u32 %s942, 85
        %s944 = sshrl.u32 %s943, 1
        %s945 = sor.u32 %s943, %s944
        %s946 = sand.u32 51, %s945
        %s947 = sshrl.u32 %s946, 2
        %s948 = sor.u32 %s946, %s947
        %s949 = sand.u32 15, %s948
        %v950 = vld [vmem:[%s940] sm:%s949]
        %v951 = vunpack.c.l.bf16 %v950
        %v952 = vunpack.c.h.bf16 %v950
        %v953 = vlaneseq
        %v954 = vand.u32 %v953, 127
        %vm956 = vcmp.lt.s32.totalorder %v954, 4
        %v957 = vsel %vm956, %v951, %v12
        %vm958 = vcmask 1046528
        %v959 = vsel %vm958, %v957, %v12
        %v960 = vrot.slane %v959, 7
        %s961 = scalar_lea.vmem [#allocation9], 120
        %v962 = vpack.c.bf16 0.0, %v960
        %s964 = ssub.s32 16, 1
        %965 = vst [vmem:[%s961] sm:%s964] %v962
        %s966 = scalar_lea.vmem %s230, 88
        %s968 = sor.u32 255, 127
        %s969 = sand.u32 %s968, 85
        %s970 = sshrl.u32 %s969, 1
        %s971 = sor.u32 %s969, %s970
        %s972 = sand.u32 51, %s971
        %s973 = sshrl.u32 %s972, 2
        %s974 = sor.u32 %s972, %s973
        %s975 = sand.u32 15, %s974
        %v976 = vld [vmem:[%s966] sm:%s975]
        %v977 = vunpack.c.l.bf16 %v976
        %v978 = vunpack.c.h.bf16 %v976
        %v979 = vlaneseq
        %v980 = vand.u32 %v979, 127
        %vm982 = vcmp.lt.s32.totalorder %v980, 4
        %v983 = vsel %vm982, %v977, %v12
        %vm984 = vcmask 1046528
        %v985 = vsel %vm984, %v983, %v957
        %v986 = vrot.slane %v985, 7
        %s987 = scalar_lea.vmem [#allocation9], 124
        %v988 = vpack.c.bf16 0.0, %v986
        %s990 = ssub.s32 16, 1
        %991 = vst [vmem:[%s987] sm:%s990] %v988
        %vm992 = vcmask 1046528
        %v993 = vsel %vm992, %v12, %v983
        %v994 = vrot.slane %v993, 7
        %s995 = scalar_lea.vmem [#allocation9], 128
        %v996 = vpack.c.bf16 0.0, %v994
        %s998 = ssub.s32 16, 1
        %999 = vst [vmem:[%s995] sm:%s998] %v996
        %s1000 = scalar_lea.vmem %s230, 88
        %s1002 = sand.u32 0, 85
        %s1003 = sshrl.u32 %s1002, 1
        %s1004 = sor.u32 %s1002, %s1003
        %s1005 = sand.u32 51, %s1004
        %s1006 = sshrl.u32 %s1005, 2
        %s1007 = sor.u32 %s1005, %s1006
        %s1008 = sand.u32 15, %s1007
        %v1009 = vld [vmem:[%s1000] sm:%s1008]
        %v1010 = vunpack.c.l.bf16 %v1009
        %v1011 = vunpack.c.h.bf16 %v1009
        %s1012 = scalar_lea.vmem %s230, 92
        %s1014 = sor.u32 255, 127
        %s1015 = sand.u32 %s1014, 85
        %s1016 = sshrl.u32 %s1015, 1
        %s1017 = sor.u32 %s1015, %s1016
        %s1018 = sand.u32 51, %s1017
        %s1019 = sshrl.u32 %s1018, 2
        %s1020 = sor.u32 %s1018, %s1019
        %s1021 = sand.u32 15, %s1020
        %v1022 = vld [vmem:[%s1012] sm:%s1021]
        %v1023 = vunpack.c.l.bf16 %v1022
        %v1024 = vunpack.c.h.bf16 %v1022
        %v1025 = vlaneseq
        %v1026 = vand.u32 %v1025, 127
        %vm1028 = vcmp.lt.s32.totalorder %v1026, 4
        %v1029 = vsel %vm1028, %v1023, %v12
        %vm1030 = vcmask 1046528
        %v1031 = vsel %vm1030, %v1029, %v12
        %v1032 = vrot.slane %v1031, 7
        %s1033 = scalar_lea.vmem [#allocation9], 132
        %v1034 = vpack.c.bf16 0.0, %v1032
        %s1036 = ssub.s32 16, 1
        %1037 = vst [vmem:[%s1033] sm:%s1036] %v1034
        %s1038 = scalar_lea.vmem %s230, 96
        %s1040 = sor.u32 255, 127
        %s1041 = sand.u32 %s1040, 85
        %s1042 = sshrl.u32 %s1041, 1
        %s1043 = sor.u32 %s1041, %s1042
        %s1044 = sand.u32 51, %s1043
        %s1045 = sshrl.u32 %s1044, 2
        %s1046 = sor.u32 %s1044, %s1045
        %s1047 = sand.u32 15, %s1046
        %v1048 = vld [vmem:[%s1038] sm:%s1047]
        %v1049 = vunpack.c.l.bf16 %v1048
        %v1050 = vunpack.c.h.bf16 %v1048
        %v1051 = vlaneseq
        %v1052 = vand.u32 %v1051, 127
        %vm1054 = vcmp.lt.s32.totalorder %v1052, 4
        %v1055 = vsel %vm1054, %v1049, %v12
        %vm1056 = vcmask 1046528
        %v1057 = vsel %vm1056, %v1055, %v1029
        %v1058 = vrot.slane %v1057, 7
        %s1059 = scalar_lea.vmem [#allocation9], 136
        %v1060 = vpack.c.bf16 0.0, %v1058
        %s1062 = ssub.s32 16, 1
        %1063 = vst [vmem:[%s1059] sm:%s1062] %v1060
        %vm1064 = vcmask 1046528
        %v1065 = vsel %vm1064, %v12, %v1055
        %v1066 = vrot.slane %v1065, 7
        %s1067 = scalar_lea.vmem [#allocation9], 140
        %v1068 = vpack.c.bf16 0.0, %v1066
        %s1070 = ssub.s32 16, 1
        %1071 = vst [vmem:[%s1067] sm:%s1070] %v1068
        %s1072 = scalar_lea.vmem %s230, 96
        %s1074 = sand.u32 0, 85
        %s1075 = sshrl.u32 %s1074, 1
        %s1076 = sor.u32 %s1074, %s1075
        %s1077 = sand.u32 51, %s1076
        %s1078 = sshrl.u32 %s1077, 2
        %s1079 = sor.u32 %s1077, %s1078
        %s1080 = sand.u32 15, %s1079
        %v1081 = vld [vmem:[%s1072] sm:%s1080]
        %v1082 = vunpack.c.l.bf16 %v1081
        %v1083 = vunpack.c.h.bf16 %v1081
        %s1084 = scalar_lea.vmem %s230, 100
        %s1086 = sor.u32 255, 127
        %s1087 = sand.u32 %s1086, 85
        %s1088 = sshrl.u32 %s1087, 1
        %s1089 = sor.u32 %s1087, %s1088
        %s1090 = sand.u32 51, %s1089
        %s1091 = sshrl.u32 %s1090, 2
        %s1092 = sor.u32 %s1090, %s1091
        %s1093 = sand.u32 15, %s1092
        %v1094 = vld [vmem:[%s1084] sm:%s1093]
        %v1095 = vunpack.c.l.bf16 %v1094
        %v1096 = vunpack.c.h.bf16 %v1094
        %v1097 = vlaneseq
        %v1098 = vand.u32 %v1097, 127
        %vm1100 = vcmp.lt.s32.totalorder %v1098, 4
        %v1101 = vsel %vm1100, %v1095, %v12
        %vm1102 = vcmask 1046528
        %v1103 = vsel %vm1102, %v1101, %v12
        %v1104 = vrot.slane %v1103, 7
        %s1105 = scalar_lea.vmem [#allocation9], 144
        %v1106 = vpack.c.bf16 0.0, %v1104
        %s1108 = ssub.s32 16, 1
        %1109 = vst [vmem:[%s1105] sm:%s1108] %v1106
        %s1110 = scalar_lea.vmem %s230, 104
        %s1112 = sor.u32 255, 127
        %s1113 = sand.u32 %s1112, 85
        %s1114 = sshrl.u32 %s1113, 1
        %s1115 = sor.u32 %s1113, %s1114
        %s1116 = sand.u32 51, %s1115
        %s1117 = sshrl.u32 %s1116, 2
        %s1118 = sor.u32 %s1116, %s1117
        %s1119 = sand.u32 15, %s1118
        %v1120 = vld [vmem:[%s1110] sm:%s1119]
        %v1121 = vunpack.c.l.bf16 %v1120
        %v1122 = vunpack.c.h.bf16 %v1120
        %v1123 = vlaneseq
        %v1124 = vand.u32 %v1123, 127
        %vm1126 = vcmp.lt.s32.totalorder %v1124, 4
        %v1127 = vsel %vm1126, %v1121, %v12
        %vm1128 = vcmask 1046528
        %v1129 = vsel %vm1128, %v1127, %v1101
        %v1130 = vrot.slane %v1129, 7
        %s1131 = scalar_lea.vmem [#allocation9], 148
        %v1132 = vpack.c.bf16 0.0, %v1130
        %s1134 = ssub.s32 16, 1
        %1135 = vst [vmem:[%s1131] sm:%s1134] %v1132
        %vm1136 = vcmask 1046528
        %v1137 = vsel %vm1136, %v12, %v1127
        %v1138 = vrot.slane %v1137, 7
        %s1139 = scalar_lea.vmem [#allocation9], 152
        %v1140 = vpack.c.bf16 0.0, %v1138
        %s1142 = ssub.s32 16, 1
        %1143 = vst [vmem:[%s1139] sm:%s1142] %v1140
        %s1144 = scalar_lea.vmem %s230, 104
        %s1146 = sand.u32 0, 85
        %s1147 = sshrl.u32 %s1146, 1
        %s1148 = sor.u32 %s1146, %s1147
        %s1149 = sand.u32 51, %s1148
        %s1150 = sshrl.u32 %s1149, 2
        %s1151 = sor.u32 %s1149, %s1150
        %s1152 = sand.u32 15, %s1151
        %v1153 = vld [vmem:[%s1144] sm:%s1152]
        %v1154 = vunpack.c.l.bf16 %v1153
        %v1155 = vunpack.c.h.bf16 %v1153
        %s1156 = scalar_lea.vmem %s230, 108
        %s1158 = sor.u32 255, 127
        %s1159 = sand.u32 %s1158, 85
        %s1160 = sshrl.u32 %s1159, 1
        %s1161 = sor.u32 %s1159, %s1160
        %s1162 = sand.u32 51, %s1161
        %s1163 = sshrl.u32 %s1162, 2
        %s1164 = sor.u32 %s1162, %s1163
        %s1165 = sand.u32 15, %s1164
        %v1166 = vld [vmem:[%s1156] sm:%s1165]
        %v1167 = vunpack.c.l.bf16 %v1166
        %v1168 = vunpack.c.h.bf16 %v1166
        %v1169 = vlaneseq
        %v1170 = vand.u32 %v1169, 127
        %vm1172 = vcmp.lt.s32.totalorder %v1170, 4
        %v1173 = vsel %vm1172, %v1167, %v12
        %vm1174 = vcmask 1046528
        %v1175 = vsel %vm1174, %v1173, %v12
        %v1176 = vrot.slane %v1175, 7
        %s1177 = scalar_lea.vmem [#allocation9], 156
        %v1178 = vpack.c.bf16 0.0, %v1176
        %s1180 = ssub.s32 16, 1
        %1181 = vst [vmem:[%s1177] sm:%s1180] %v1178
        %s1182 = scalar_lea.vmem %s230, 112
        %s1184 = sor.u32 255, 127
        %s1185 = sand.u32 %s1184, 85
        %s1186 = sshrl.u32 %s1185, 1
        %s1187 = sor.u32 %s1185, %s1186
        %s1188 = sand.u32 51, %s1187
        %s1189 = sshrl.u32 %s1188, 2
        %s1190 = sor.u32 %s1188, %s1189
        %s1191 = sand.u32 15, %s1190
        %v1192 = vld [vmem:[%s1182] sm:%s1191]
        %v1193 = vunpack.c.l.bf16 %v1192
        %v1194 = vunpack.c.h.bf16 %v1192
        %v1195 = vlaneseq
        %v1196 = vand.u32 %v1195, 127
        %vm1198 = vcmp.lt.s32.totalorder %v1196, 4
        %v1199 = vsel %vm1198, %v1193, %v12
        %vm1200 = vcmask 1046528
        %v1201 = vsel %vm1200, %v1199, %v1173
        %v1202 = vrot.slane %v1201, 7
        %s1203 = scalar_lea.vmem [#allocation9], 160
        %v1204 = vpack.c.bf16 0.0, %v1202
        %s1206 = ssub.s32 16, 1
        %1207 = vst [vmem:[%s1203] sm:%s1206] %v1204
        %vm1208 = vcmask 1046528
        %v1209 = vsel %vm1208, %v12, %v1199
        %v1210 = vrot.slane %v1209, 7
        %s1211 = scalar_lea.vmem [#allocation9], 164
        %v1212 = vpack.c.bf16 0.0, %v1210
        %s1214 = ssub.s32 16, 1
        %1215 = vst [vmem:[%s1211] sm:%s1214] %v1212
        %s1216 = scalar_lea.vmem %s230, 112
        %s1218 = sand.u32 0, 85
        %s1219 = sshrl.u32 %s1218, 1
        %s1220 = sor.u32 %s1218, %s1219
        %s1221 = sand.u32 51, %s1220
        %s1222 = sshrl.u32 %s1221, 2
        %s1223 = sor.u32 %s1221, %s1222
        %s1224 = sand.u32 15, %s1223
        %v1225 = vld [vmem:[%s1216] sm:%s1224]
        %v1226 = vunpack.c.l.bf16 %v1225
        %v1227 = vunpack.c.h.bf16 %v1225
        %s1228 = scalar_lea.vmem %s230, 116
        %s1230 = sor.u32 255, 127
        %s1231 = sand.u32 %s1230, 85
        %s1232 = sshrl.u32 %s1231, 1
        %s1233 = sor.u32 %s1231, %s1232
        %s1234 = sand.u32 51, %s1233
        %s1235 = sshrl.u32 %s1234, 2
        %s1236 = sor.u32 %s1234, %s1235
        %s1237 = sand.u32 15, %s1236
        %v1238 = vld [vmem:[%s1228] sm:%s1237]
        %v1239 = vunpack.c.l.bf16 %v1238
        %v1240 = vunpack.c.h.bf16 %v1238
        %v1241 = vlaneseq
        %v1242 = vand.u32 %v1241, 127
        %vm1244 = vcmp.lt.s32.totalorder %v1242, 4
        %v1245 = vsel %vm1244, %v1239, %v12
        %vm1246 = vcmask 1046528
        %v1247 = vsel %vm1246, %v1245, %v12
        %v1248 = vrot.slane %v1247, 7
        %s1249 = scalar_lea.vmem [#allocation9], 168
        %v1250 = vpack.c.bf16 0.0, %v1248
        %s1252 = ssub.s32 16, 1
        %1253 = vst [vmem:[%s1249] sm:%s1252] %v1250
        %s1254 = scalar_lea.vmem %s230, 120
        %s1256 = sor.u32 255, 127
        %s1257 = sand.u32 %s1256, 85
        %s1258 = sshrl.u32 %s1257, 1
        %s1259 = sor.u32 %s1257, %s1258
        %s1260 = sand.u32 51, %s1259
        %s1261 = sshrl.u32 %s1260, 2
        %s1262 = sor.u32 %s1260, %s1261
        %s1263 = sand.u32 15, %s1262
        %v1264 = vld [vmem:[%s1254] sm:%s1263]
        %v1265 = vunpack.c.l.bf16 %v1264
        %v1266 = vunpack.c.h.bf16 %v1264
        %v1267 = vlaneseq
        %v1268 = vand.u32 %v1267, 127
        %vm1270 = vcmp.lt.s32.totalorder %v1268, 4
        %v1271 = vsel %vm1270, %v1265, %v12
        %vm1272 = vcmask 1046528
        %v1273 = vsel %vm1272, %v1271, %v1245
        %v1274 = vrot.slane %v1273, 7
        %s1275 = scalar_lea.vmem [#allocation9], 172
        %v1276 = vpack.c.bf16 0.0, %v1274
        %s1278 = ssub.s32 16, 1
        %1279 = vst [vmem:[%s1275] sm:%s1278] %v1276
        %vm1280 = vcmask 1046528
        %v1281 = vsel %vm1280, %v12, %v1271
        %v1282 = vrot.slane %v1281, 7
        %s1283 = scalar_lea.vmem [#allocation9], 176
        %v1284 = vpack.c.bf16 0.0, %v1282
        %s1286 = ssub.s32 16, 1
        %1287 = vst [vmem:[%s1283] sm:%s1286] %v1284
        %s1288 = scalar_lea.vmem %s230, 120
        %s1290 = sand.u32 0, 85
        %s1291 = sshrl.u32 %s1290, 1
        %s1292 = sor.u32 %s1290, %s1291
        %s1293 = sand.u32 51, %s1292
        %s1294 = sshrl.u32 %s1293, 2
        %s1295 = sor.u32 %s1293, %s1294
        %s1296 = sand.u32 15, %s1295
        %v1297 = vld [vmem:[%s1288] sm:%s1296]
        %v1298 = vunpack.c.l.bf16 %v1297
        %v1299 = vunpack.c.h.bf16 %v1297
        %s1300 = scalar_lea.vmem %s230, 124
        %s1302 = sor.u32 255, 127
        %s1303 = sand.u32 %s1302, 85
        %s1304 = sshrl.u32 %s1303, 1
        %s1305 = sor.u32 %s1303, %s1304
        %s1306 = sand.u32 51, %s1305
        %s1307 = sshrl.u32 %s1306, 2
        %s1308 = sor.u32 %s1306, %s1307
        %s1309 = sand.u32 15, %s1308
        %v1310 = vld [vmem:[%s1300] sm:%s1309]
        %v1311 = vunpack.c.l.bf16 %v1310
        %v1312 = vunpack.c.h.bf16 %v1310
        %v1313 = vlaneseq
        %v1314 = vand.u32 %v1313, 127
        %vm1316 = vcmp.lt.s32.totalorder %v1314, 4
        %v1317 = vsel %vm1316, %v1311, %v12
        %vm1318 = vcmask 1046528
        %v1319 = vsel %vm1318, %v1317, %v12
        %v1320 = vrot.slane %v1319, 7
        %s1321 = scalar_lea.vmem [#allocation9], 180
        %v1322 = vpack.c.bf16 0.0, %v1320
        %s1324 = ssub.s32 16, 1
        %1325 = vst [vmem:[%s1321] sm:%s1324] %v1322
        %s1326 = scalar_lea.vmem %s230, 128
        %s1328 = sor.u32 255, 127
        %s1329 = sand.u32 %s1328, 85
        %s1330 = sshrl.u32 %s1329, 1
        %s1331 = sor.u32 %s1329, %s1330
        %s1332 = sand.u32 51, %s1331
        %s1333 = sshrl.u32 %s1332, 2
        %s1334 = sor.u32 %s1332, %s1333
        %s1335 = sand.u32 15, %s1334
        %v1336 = vld [vmem:[%s1326] sm:%s1335]
        %v1337 = vunpack.c.l.bf16 %v1336
        %v1338 = vunpack.c.h.bf16 %v1336
        %v1339 = vlaneseq
        %v1340 = vand.u32 %v1339, 127
        %vm1342 = vcmp.lt.s32.totalorder %v1340, 4
        %v1343 = vsel %vm1342, %v1337, %v12
        %vm1344 = vcmask 1046528
        %v1345 = vsel %vm1344, %v1343, %v1317
        %v1346 = vrot.slane %v1345, 7
        %s1347 = scalar_lea.vmem [#allocation9], 184
        %v1348 = vpack.c.bf16 0.0, %v1346
        %s1350 = ssub.s32 16, 1
        %1351 = vst [vmem:[%s1347] sm:%s1350] %v1348
        %vm1352 = vcmask 1046528
        %v1353 = vsel %vm1352, %v12, %v1343
        %v1354 = vrot.slane %v1353, 7
        %s1355 = scalar_lea.vmem [#allocation9], 188
        %v1356 = vpack.c.bf16 0.0, %v1354
        %s1358 = ssub.s32 16, 1
        %1359 = vst [vmem:[%s1355] sm:%s1358] %v1356
        %s1360 = scalar_lea.vmem %s230, 128
        %s1362 = sand.u32 0, 85
        %s1363 = sshrl.u32 %s1362, 1
        %s1364 = sor.u32 %s1362, %s1363
        %s1365 = sand.u32 51, %s1364
        %s1366 = sshrl.u32 %s1365, 2
        %s1367 = sor.u32 %s1365, %s1366
        %s1368 = sand.u32 15, %s1367
        %v1369 = vld [vmem:[%s1360] sm:%s1368]
        %v1370 = vunpack.c.l.bf16 %v1369
        %v1371 = vunpack.c.h.bf16 %v1369
        %s1372 = scalar_lea.vmem %s230, 132
        %s1374 = sor.u32 255, 127
        %s1375 = sand.u32 %s1374, 85
        %s1376 = sshrl.u32 %s1375, 1
        %s1377 = sor.u32 %s1375, %s1376
        %s1378 = sand.u32 51, %s1377
        %s1379 = sshrl.u32 %s1378, 2
        %s1380 = sor.u32 %s1378, %s1379
        %s1381 = sand.u32 15, %s1380
        %v1382 = vld [vmem:[%s1372] sm:%s1381]
        %v1383 = vunpack.c.l.bf16 %v1382
        %v1384 = vunpack.c.h.bf16 %v1382
        %v1385 = vlaneseq
        %v1386 = vand.u32 %v1385, 127
        %vm1388 = vcmp.lt.s32.totalorder %v1386, 4
        %v1389 = vsel %vm1388, %v1383, %v12
        %vm1390 = vcmask 1046528
        %v1391 = vsel %vm1390, %v1389, %v12
        %v1392 = vrot.slane %v1391, 7
        %s1393 = scalar_lea.vmem [#allocation9], 192
        %v1394 = vpack.c.bf16 0.0, %v1392
        %s1396 = ssub.s32 16, 1
        %1397 = vst [vmem:[%s1393] sm:%s1396] %v1394
        %s1398 = scalar_lea.vmem %s230, 136
        %s1400 = sor.u32 255, 127
        %s1401 = sand.u32 %s1400, 85
        %s1402 = sshrl.u32 %s1401, 1
        %s1403 = sor.u32 %s1401, %s1402
        %s1404 = sand.u32 51, %s1403
        %s1405 = sshrl.u32 %s1404, 2
        %s1406 = sor.u32 %s1404, %s1405
        %s1407 = sand.u32 15, %s1406
        %v1408 = vld [vmem:[%s1398] sm:%s1407]
        %v1409 = vunpack.c.l.bf16 %v1408
        %v1410 = vunpack.c.h.bf16 %v1408
        %v1411 = vlaneseq
        %v1412 = vand.u32 %v1411, 127
        %vm1414 = vcmp.lt.s32.totalorder %v1412, 4
        %v1415 = vsel %vm1414, %v1409, %v12
        %vm1416 = vcmask 1046528
        %v1417 = vsel %vm1416, %v1415, %v1389
        %v1418 = vrot.slane %v1417, 7
        %s1419 = scalar_lea.vmem [#allocation9], 196
        %v1420 = vpack.c.bf16 0.0, %v1418
        %s1422 = ssub.s32 16, 1
        %1423 = vst [vmem:[%s1419] sm:%s1422] %v1420
        %vm1424 = vcmask 1046528
        %v1425 = vsel %vm1424, %v12, %v1415
        %v1426 = vrot.slane %v1425, 7
        %s1427 = scalar_lea.vmem [#allocation9], 200
        %v1428 = vpack.c.bf16 0.0, %v1426
        %s1430 = ssub.s32 16, 1
        %1431 = vst [vmem:[%s1427] sm:%s1430] %v1428
        %s1432 = scalar_lea.vmem [#allocation9], 204
        %v1433 = vpack.c.bf16 0.0, %v12
        %s1435 = ssub.s32 16, 1
        %1436 = vst [vmem:[%s1432] sm:%s1435] %v1433
        %s1437 = scalar_lea.vmem [#allocation9], 208
        %v1438 = vpack.c.bf16 0.0, %v12
        %s1440 = ssub.s32 16, 1
        %1441 = vst [vmem:[%s1437] sm:%s1440] %v1438
        %s1442 = scalar_lea.vmem [#allocation9], 212
        %v1443 = vpack.c.bf16 0.0, %v12
        %s1445 = ssub.s32 16, 1
        %1446 = vst [vmem:[%s1442] sm:%s1445] %v1443
        %v1448 = vld [vmem:[#allocation9] sm:$0xf]
        %v1449 = vld [vmem:[#allocation9 + $0x4] sm:$0xf]
        %v1450 = vld [vmem:[#allocation9 + $0x8] sm:$0x1]
        %v1451 = vld [vmem:[#allocation9 + $0xc] sm:$0xf]
        %v1452 = vld [vmem:[#allocation9 + $0x10] sm:$0xf]
        %v1453 = vld [vmem:[#allocation9 + $0x14] sm:$0x1]
        %v1454 = vld [vmem:[#allocation9 + $0x18] sm:$0xf]
        %v1455 = vld [vmem:[#allocation9 + $0x1c] sm:$0xf]
        %v1456 = vld [vmem:[#allocation9 + $0x20] sm:$0x1]
        %v1457 = vld [vmem:[#allocation9 + $0x24] sm:$0xf]
        %v1458 = vld [vmem:[#allocation9 + $0x28] sm:$0xf]
        %v1459 = vld [vmem:[#allocation9 + $0x2c] sm:$0x1]
        %v1460 = vld [vmem:[#allocation9 + $0x30] sm:$0xf]
        %v1461 = vld [vmem:[#allocation9 + $0x34] sm:$0xf]
        %v1462 = vld [vmem:[#allocation9 + $0x38] sm:$0x1]
        %v1463 = vld [vmem:[#allocation9 + $0x3c] sm:$0xf]
        %v1464 = vld [vmem:[#allocation9 + $0x40] sm:$0xf]
        %v1465 = vld [vmem:[#allocation9 + $0x44] sm:$0x1]
        %v1466 = vld [vmem:[#allocation9 + $0x48] sm:$0xf]
        %v1467 = vld [vmem:[#allocation9 + $0x4c] sm:$0xf]
        %v1468 = vld [vmem:[#allocation9 + $0x50] sm:$0x1]
        %v1469 = vld [vmem:[#allocation9 + $0x54] sm:$0xf]
        %v1470 = vld [vmem:[#allocation9 + $0x58] sm:$0xf]
        %v1471 = vld [vmem:[#allocation9 + $0x5c] sm:$0x1]
        %v1472 = vld [vmem:[#allocation9 + $0x60] sm:$0xf]
        %v1473 = vld [vmem:[#allocation9 + $0x64] sm:$0xf]
        %v1474 = vld [vmem:[#allocation9 + $0x68] sm:$0x1]
        %v1475 = vld [vmem:[#allocation9 + $0x6c] sm:$0xf]
        %v1476 = vld [vmem:[#allocation9 + $0x70] sm:$0xf]
        %v1477 = vld [vmem:[#allocation9 + $0x74] sm:$0x1]
        %v1478 = vld [vmem:[#allocation9 + $0x78] sm:$0xf]
        %v1479 = vld [vmem:[#allocation9 + $0x7c] sm:$0xf]
        %v1480 = vld [vmem:[#allocation9 + $0x80] sm:$0x1]
        %v1481 = vld [vmem:[#allocation9 + $0x84] sm:$0xf]
        %v1482 = vld [vmem:[#allocation9 + $0x88] sm:$0xf]
        %v1483 = vld [vmem:[#allocation9 + $0x8c] sm:$0x1]
        %v1484 = vld [vmem:[#allocation9 + $0x90] sm:$0xf]
        %v1485 = vld [vmem:[#allocation9 + $0x94] sm:$0xf]
        %v1486 = vld [vmem:[#allocation9 + $0x98] sm:$0x1]
        %v1487 = vld [vmem:[#allocation9 + $0x9c] sm:$0xf]
        %v1488 = vld [vmem:[#allocation9 + $0xa0] sm:$0xf]
        %v1489 = vld [vmem:[#allocation9 + $0xa4] sm:$0x1]
        %v1490 = vld [vmem:[#allocation9 + $0xa8] sm:$0xf]
        %v1491 = vld [vmem:[#allocation9 + $0xac] sm:$0xf]
        %v1492 = vld [vmem:[#allocation9 + $0xb0] sm:$0x1]
        %v1493 = vld [vmem:[#allocation9 + $0xb4] sm:$0xf]
        %v1494 = vld [vmem:[#allocation9 + $0xb8] sm:$0xf]
        %v1495 = vld [vmem:[#allocation9 + $0xbc] sm:$0x1]
        %v1496 = vld [vmem:[#allocation9 + $0xc0] sm:$0xf]
        %v1497 = vld [vmem:[#allocation9 + $0xc4] sm:$0xf]
        %v1498 = vld [vmem:[#allocation9 + $0xc8] sm:$0x1]
        %v1499 = vld [vmem:[#allocation9 + $0xcc] sm:$0xf]
        %v1500 = vld [vmem:[#allocation9 + $0xd0] sm:$0xf]
        %v1501 = vld [vmem:[#allocation9 + $0xd4] sm:$0x1]
        %v1502 = vld [vmem:[%s0] sm:$0xf]
        %vm1503 = vsmask.f32 3328
        %vm1504 = vsmask.f32 7440
        %vm1505 = vmor %vm1503, %vm1504
        %v1507 = vshrl.u32 %v1448, 16
        %v1509 = vrot.slane %v1507, 4
        %v1510 = vshll.u32 %v1448, 16
        %v1512 = vrot.slane %v1510, 5
        %v1513 = vor.u32 %v1509, %v1512
        %v1514 = vrot.slane %v1513, 4
        %v1516 = vshll.u32 %v1449, 16
        %v1518 = vrot.slane %v1516, 5
        %v1519 = vsel %vm1505, %v1514, %v1518
        %v1520 = vshrl.u32 %v1449, 16
        %v1522 = vrot.slane %v1520, 4
        %v1523 = vor.u32 %v1522, %v1518
        %v1524 = vrot.slane %v1523, 4
        %v1526 = vshll.u32 %v1450, 16
        %v1528 = vrot.slane %v1526, 5
        %v1529 = vsel %vm1505, %v1524, %v1528
        %v1531 = vshrl.u32 %v1451, 16
        %v1533 = vrot.slane %v1531, 4
        %v1534 = vshll.u32 %v1451, 16
        %v1536 = vrot.slane %v1534, 5
        %v1537 = vor.u32 %v1533, %v1536
        %v1538 = vrot.slane %v1537, 4
        %v1540 = vshll.u32 %v1452, 16
        %v1542 = vrot.slane %v1540, 5
        %v1543 = vsel %vm1505, %v1538, %v1542
        %v1544 = vshrl.u32 %v1452, 16
        %v1546 = vrot.slane %v1544, 4
        %v1547 = vor.u32 %v1546, %v1542
        %v1548 = vrot.slane %v1547, 4
        %v1550 = vshll.u32 %v1453, 16
        %v1552 = vrot.slane %v1550, 5
        %v1553 = vsel %vm1505, %v1548, %v1552
        %v1555 = vshrl.u32 %v1454, 16
        %v1557 = vrot.slane %v1555, 4
        %v1558 = vshll.u32 %v1454, 16
        %v1560 = vrot.slane %v1558, 5
        %v1561 = vor.u32 %v1557, %v1560
        %v1562 = vrot.slane %v1561, 4
        %v1564 = vshll.u32 %v1455, 16
        %v1566 = vrot.slane %v1564, 5
        %v1567 = vsel %vm1505, %v1562, %v1566
        %v1568 = vshrl.u32 %v1455, 16
        %v1570 = vrot.slane %v1568, 4
        %v1571 = vor.u32 %v1570, %v1566
        %v1572 = vrot.slane %v1571, 4
        %v1574 = vshll.u32 %v1456, 16
        %v1576 = vrot.slane %v1574, 5
        %v1577 = vsel %vm1505, %v1572, %v1576
        %v1579 = vshrl.u32 %v1457, 16
        %v1581 = vrot.slane %v1579, 4
        %v1582 = vshll.u32 %v1457, 16
        %v1584 = vrot.slane %v1582, 5
        %v1585 = vor.u32 %v1581, %v1584
        %v1586 = vrot.slane %v1585, 4
        %v1588 = vshll.u32 %v1458, 16
        %v1590 = vrot.slane %v1588, 5
        %v1591 = vsel %vm1505, %v1586, %v1590
        %v1592 = vshrl.u32 %v1458, 16
        %v1594 = vrot.slane %v1592, 4
        %v1595 = vor.u32 %v1594, %v1590
        %v1596 = vrot.slane %v1595, 4
        %v1598 = vshll.u32 %v1459, 16
        %v1600 = vrot.slane %v1598, 5
        %v1601 = vsel %vm1505, %v1596, %v1600
        %v1603 = vshrl.u32 %v1460, 16
        %v1605 = vrot.slane %v1603, 4
        %v1606 = vshll.u32 %v1460, 16
        %v1608 = vrot.slane %v1606, 5
        %v1609 = vor.u32 %v1605, %v1608
        %v1610 = vrot.slane %v1609, 4
        %v1612 = vshll.u32 %v1461, 16
        %v1614 = vrot.slane %v1612, 5
        %v1615 = vsel %vm1505, %v1610, %v1614
        %v1616 = vshrl.u32 %v1461, 16
        %v1618 = vrot.slane %v1616, 4
        %v1619 = vor.u32 %v1618, %v1614
        %v1620 = vrot.slane %v1619, 4
        %v1622 = vshll.u32 %v1462, 16
        %v1624 = vrot.slane %v1622, 5
        %v1625 = vsel %vm1505, %v1620, %v1624
        %v1627 = vshrl.u32 %v1463, 16
        %v1629 = vrot.slane %v1627, 4
        %v1630 = vshll.u32 %v1463, 16
        %v1632 = vrot.slane %v1630, 5
        %v1633 = vor.u32 %v1629, %v1632
        %v1634 = vrot.slane %v1633, 4
        %v1636 = vshll.u32 %v1464, 16
        %v1638 = vrot.slane %v1636, 5
        %v1639 = vsel %vm1505, %v1634, %v1638
        %v1640 = vshrl.u32 %v1464, 16
        %v1642 = vrot.slane %v1640, 4
        %v1643 = vor.u32 %v1642, %v1638
        %v1644 = vrot.slane %v1643, 4
        %v1646 = vshll.u32 %v1465, 16
        %v1648 = vrot.slane %v1646, 5
        %v1649 = vsel %vm1505, %v1644, %v1648
        %v1651 = vshrl.u32 %v1466, 16
        %v1653 = vrot.slane %v1651, 4
        %v1654 = vshll.u32 %v1466, 16
        %v1656 = vrot.slane %v1654, 5
        %v1657 = vor.u32 %v1653, %v1656
        %v1658 = vrot.slane %v1657, 4
        %v1660 = vshll.u32 %v1467, 16
        %v1662 = vrot.slane %v1660, 5
        %v1663 = vsel %vm1505, %v1658, %v1662
        %v1664 = vshrl.u32 %v1467, 16
        %v1666 = vrot.slane %v1664, 4
        %v1667 = vor.u32 %v1666, %v1662
        %v1668 = vrot.slane %v1667, 4
        %v1670 = vshll.u32 %v1468, 16
        %v1672 = vrot.slane %v1670, 5
        %v1673 = vsel %vm1505, %v1668, %v1672
        %v1675 = vshrl.u32 %v1469, 16
        %v1677 = vrot.slane %v1675, 4
        %v1678 = vshll.u32 %v1469, 16
        %v1680 = vrot.slane %v1678, 5
        %v1681 = vor.u32 %v1677, %v1680
        %v1682 = vrot.slane %v1681, 4
        %v1684 = vshll.u32 %v1470, 16
        %v1686 = vrot.slane %v1684, 5
        %v1687 = vsel %vm1505, %v1682, %v1686
        %v1688 = vshrl.u32 %v1470, 16
        %v1690 = vrot.slane %v1688, 4
        %v1691 = vor.u32 %v1690, %v1686
        %v1692 = vrot.slane %v1691, 4
        %v1694 = vshll.u32 %v1471, 16
        %v1696 = vrot.slane %v1694, 5
        %v1697 = vsel %vm1505, %v1692, %v1696
        %v1699 = vshrl.u32 %v1472, 16
        %v1701 = vrot.slane %v1699, 4
        %v1702 = vshll.u32 %v1472, 16
        %v1704 = vrot.slane %v1702, 5
        %v1705 = vor.u32 %v1701, %v1704
        %v1706 = vrot.slane %v1705, 4
        %v1708 = vshll.u32 %v1473, 16
        %v1710 = vrot.slane %v1708, 5
        %v1711 = vsel %vm1505, %v1706, %v1710
        %v1712 = vshrl.u32 %v1473, 16
        %v1714 = vrot.slane %v1712, 4
        %v1715 = vor.u32 %v1714, %v1710
        %v1716 = vrot.slane %v1715, 4
        %v1718 = vshll.u32 %v1474, 16
        %v1720 = vrot.slane %v1718, 5
        %v1721 = vsel %vm1505, %v1716, %v1720
        %v1723 = vshrl.u32 %v1475, 16
        %v1725 = vrot.slane %v1723, 4
        %v1726 = vshll.u32 %v1475, 16
        %v1728 = vrot.slane %v1726, 5
        %v1729 = vor.u32 %v1725, %v1728
        %v1730 = vrot.slane %v1729, 4
        %v1732 = vshll.u32 %v1476, 16
        %v1734 = vrot.slane %v1732, 5
        %v1735 = vsel %vm1505, %v1730, %v1734
        %v1736 = vshrl.u32 %v1476, 16
        %v1738 = vrot.slane %v1736, 4
        %v1739 = vor.u32 %v1738, %v1734
        %v1740 = vrot.slane %v1739, 4
        %v1742 = vshll.u32 %v1477, 16
        %v1744 = vrot.slane %v1742, 5
        %v1745 = vsel %vm1505, %v1740, %v1744
        %v1747 = vshrl.u32 %v1478, 16
        %v1749 = vrot.slane %v1747, 4
        %v1750 = vshll.u32 %v1478, 16
        %v1752 = vrot.slane %v1750, 5
        %v1753 = vor.u32 %v1749, %v1752
        %v1754 = vrot.slane %v1753, 4
        %v1756 = vshll.u32 %v1479, 16
        %v1758 = vrot.slane %v1756, 5
        %v1759 = vsel %vm1505, %v1754, %v1758
        %v1760 = vshrl.u32 %v1479, 16
        %v1762 = vrot.slane %v1760, 4
        %v1763 = vor.u32 %v1762, %v1758
        %v1764 = vrot.slane %v1763, 4
        %v1766 = vshll.u32 %v1480, 16
        %v1768 = vrot.slane %v1766, 5
        %v1769 = vsel %vm1505, %v1764, %v1768
        %v1771 = vshrl.u32 %v1481, 16
        %v1773 = vrot.slane %v1771, 4
        %v1774 = vshll.u32 %v1481, 16
        %v1776 = vrot.slane %v1774, 5
        %v1777 = vor.u32 %v1773, %v1776
        %v1778 = vrot.slane %v1777, 4
        %v1780 = vshll.u32 %v1482, 16
        %v1782 = vrot.slane %v1780, 5
        %v1783 = vsel %vm1505, %v1778, %v1782
        %v1784 = vshrl.u32 %v1482, 16
        %v1786 = vrot.slane %v1784, 4
        %v1787 = vor.u32 %v1786, %v1782
        %v1788 = vrot.slane %v1787, 4
        %v1790 = vshll.u32 %v1483, 16
        %v1792 = vrot.slane %v1790, 5
        %v1793 = vsel %vm1505, %v1788, %v1792
        %v1795 = vshrl.u32 %v1484, 16
        %v1797 = vrot.slane %v1795, 4
        %v1798 = vshll.u32 %v1484, 16
        %v1800 = vrot.slane %v1798, 5
        %v1801 = vor.u32 %v1797, %v1800
        %v1802 = vrot.slane %v1801, 4
        %v1804 = vshll.u32 %v1485, 16
        %v1806 = vrot.slane %v1804, 5
        %v1807 = vsel %vm1505, %v1802, %v1806
        %v1808 = vshrl.u32 %v1485, 16
        %v1810 = vrot.slane %v1808, 4
        %v1811 = vor.u32 %v1810, %v1806
        %v1812 = vrot.slane %v1811, 4
        %v1814 = vshll.u32 %v1486, 16
        %v1816 = vrot.slane %v1814, 5
        %v1817 = vsel %vm1505, %v1812, %v1816
        %v1819 = vshrl.u32 %v1487, 16
        %v1821 = vrot.slane %v1819, 4
        %v1822 = vshll.u32 %v1487, 16
        %v1824 = vrot.slane %v1822, 5
        %v1825 = vor.u32 %v1821, %v1824
        %v1826 = vrot.slane %v1825, 4
        %v1828 = vshll.u32 %v1488, 16
        %v1830 = vrot.slane %v1828, 5
        %v1831 = vsel %vm1505, %v1826, %v1830
        %v1832 = vshrl.u32 %v1488, 16
        %v1834 = vrot.slane %v1832, 4
        %v1835 = vor.u32 %v1834, %v1830
        %v1836 = vrot.slane %v1835, 4
        %v1838 = vshll.u32 %v1489, 16
        %v1840 = vrot.slane %v1838, 5
        %v1841 = vsel %vm1505, %v1836, %v1840
        %v1843 = vshrl.u32 %v1490, 16
        %v1845 = vrot.slane %v1843, 4
        %v1846 = vshll.u32 %v1490, 16
        %v1848 = vrot.slane %v1846, 5
        %v1849 = vor.u32 %v1845, %v1848
        %v1850 = vrot.slane %v1849, 4
        %v1852 = vshll.u32 %v1491, 16
        %v1854 = vrot.slane %v1852, 5
        %v1855 = vsel %vm1505, %v1850, %v1854
        %v1856 = vshrl.u32 %v1491, 16
        %v1858 = vrot.slane %v1856, 4
        %v1859 = vor.u32 %v1858, %v1854
        %v1860 = vrot.slane %v1859, 4
        %v1862 = vshll.u32 %v1492, 16
        %v1864 = vrot.slane %v1862, 5
        %v1865 = vsel %vm1505, %v1860, %v1864
        %v1867 = vshrl.u32 %v1493, 16
        %v1869 = vrot.slane %v1867, 4
        %v1870 = vshll.u32 %v1493, 16
        %v1872 = vrot.slane %v1870, 5
        %v1873 = vor.u32 %v1869, %v1872
        %v1874 = vrot.slane %v1873, 4
        %v1876 = vshll.u32 %v1494, 16
        %v1878 = vrot.slane %v1876, 5
        %v1879 = vsel %vm1505, %v1874, %v1878
        %v1880 = vshrl.u32 %v1494, 16
        %v1882 = vrot.slane %v1880, 4
        %v1883 = vor.u32 %v1882, %v1878
        %v1884 = vrot.slane %v1883, 4
        %v1886 = vshll.u32 %v1495, 16
        %v1888 = vrot.slane %v1886, 5
        %v1889 = vsel %vm1505, %v1884, %v1888
        %s1890 = scalar_lea.vmem %s0, 4
        %v1891 = vld [vmem:[%s1890] sm:$0xf]
        %v1892 = vunpack.c.l.b16 %v1519
        %v1893 = vunpack.c.l.b16 %v1529
        %v1894 = vunpack.c.l.b16 %v1543
        %v1895 = vunpack.c.l.b16 %v1553
        %v1896 = vunpack.c.l.b16 %v1567
        %v1897 = vunpack.c.l.b16 %v1577
        %v1898 = vunpack.c.l.b16 %v1591
        %v1899 = vunpack.c.l.b16 %v1601
        %v1900 = vunpack.c.l.b16 %v1615
        %v1901 = vunpack.c.l.b16 %v1625
        %v1902 = vunpack.c.l.b16 %v1639
        %v1903 = vunpack.c.l.b16 %v1649
        %v1904 = vunpack.c.l.b16 %v1663
        %v1905 = vunpack.c.l.b16 %v1673
        %v1906 = vunpack.c.l.b16 %v1687
        %v1907 = vunpack.c.l.b16 %v1697
        %v1908 = vunpack.c.l.b16 %v1711
        %v1909 = vunpack.c.l.b16 %v1721
        %v1910 = vunpack.c.l.b16 %v1735
        %v1911 = vunpack.c.l.b16 %v1745
        %v1912 = vunpack.c.l.b16 %v1759
        %v1913 = vunpack.c.l.b16 %v1769
        %v1914 = vunpack.c.l.b16 %v1783
        %v1915 = vunpack.c.l.b16 %v1793
        %v1916 = vunpack.c.l.b16 %v1807
        %v1917 = vunpack.c.l.b16 %v1817
        %v1918 = vunpack.c.l.b16 %v1831
        %v1919 = vunpack.c.l.b16 %v1841
        %v1920 = vunpack.c.l.b16 %v1855
        %v1921 = vunpack.c.l.b16 %v1865
        %v1922 = vunpack.c.l.b16 %v1879
        %v1923 = vunpack.c.l.b16 %v1889
        %v1924 = vpack.c.b16 %v1893, %v1892
        %v1925 = vpack.c.b16 %v1895, %v1894
        %v1926 = vpack.c.b16 %v1897, %v1896
        %v1927 = vpack.c.b16 %v1899, %v1898
        %v1928 = vpack.c.b16 %v1901, %v1900
        %v1929 = vpack.c.b16 %v1903, %v1902
        %v1930 = vpack.c.b16 %v1905, %v1904
        %v1931 = vpack.c.b16 %v1907, %v1906
        %v1932 = vpack.c.b16 %v1909, %v1908
        %v1933 = vpack.c.b16 %v1911, %v1910
        %v1934 = vpack.c.b16 %v1913, %v1912
        %v1935 = vpack.c.b16 %v1915, %v1914
        %v1936 = vpack.c.b16 %v1917, %v1916
        %v1937 = vpack.c.b16 %v1919, %v1918
        %v1938 = vpack.c.b16 %v1921, %v1920
        %v1939 = vpack.c.b16 %v1923, %v1922
        %vm1940 = vcmask 64512
        %v1942 = vsel %vm1940, %v1924, 0
        %v1945 = vsel %vm1940, %v1925, 0
        %v1948 = vsel %vm1940, %v1926, 0
        %v1951 = vsel %vm1940, %v1927, 0
        %v1954 = vsel %vm1940, %v1928, 0
        %v1957 = vsel %vm1940, %v1929, 0
        %v1960 = vsel %vm1940, %v1930, 0
        %v1963 = vsel %vm1940, %v1931, 0
        %v1966 = vsel %vm1940, %v1932, 0
        %v1969 = vsel %vm1940, %v1933, 0
        %v1972 = vsel %vm1940, %v1934, 0
        %v1975 = vsel %vm1940, %v1935, 0
        %v1978 = vsel %vm1940, %v1936, 0
        %v1981 = vsel %vm1940, %v1937, 0
        %v1984 = vsel %vm1940, %v1938, 0
        %v1987 = vsel %vm1940, %v1939, 0
        %vm1989 = vcmask 1043456
        %v1991 = vsel %vm1989, %v1891, 0
        %1993 = vmatpush.bf16.msra.mxu0 0
        %1994 = vmatpush.bf16.msra.mxu0 0
        %1995 = vmatpush.bf16.msra.mxu0 0
        %1996 = vmatpush.bf16.msra.mxu0 0
        %1997 = vmatpush.bf16.msra.mxu0 0
        %1998 = vmatpush.bf16.msra.mxu0 0
        %1999 = vmatpush.bf16.msra.mxu0 0
        %2000 = vmatpush.bf16.msra.mxu0 %v1991
        %2001 = vmatmul.bf16.gmra.mxu0 %v1942
        %v2002 = vpop.f32.mrf.mxu0
        %v2003 = vadd.f32 0.0, %v2002
        %v2004 = vpop.f32.mrf.mxu0
        %v2005 = vadd.f32 0.0, %v2004
        %2006 = vmatmul.bf16.gmra.mxu0 %v1945
        %v2007 = vpop.f32.mrf.mxu0
        %v2008 = vadd.f32 0.0, %v2007
        %v2009 = vpop.f32.mrf.mxu0
        %v2010 = vadd.f32 0.0, %v2009
        %2011 = vmatmul.bf16.gmra.mxu0 %v1948
        %v2012 = vpop.f32.mrf.mxu0
        %v2013 = vadd.f32 0.0, %v2012
        %v2014 = vpop.f32.mrf.mxu0
        %v2015 = vadd.f32 0.0, %v2014
        %2016 = vmatmul.bf16.gmra.mxu0 %v1951
        %v2017 = vpop.f32.mrf.mxu0
        %v2018 = vadd.f32 0.0, %v2017
        %v2019 = vpop.f32.mrf.mxu0
        %v2020 = vadd.f32 0.0, %v2019
        %2021 = vmatmul.bf16.gmra.mxu0 %v1954
        %v2022 = vpop.f32.mrf.mxu0
        %v2023 = vadd.f32 0.0, %v2022
        %v2024 = vpop.f32.mrf.mxu0
        %v2025 = vadd.f32 0.0, %v2024
        %2026 = vmatmul.bf16.gmra.mxu0 %v1957
        %v2027 = vpop.f32.mrf.mxu0
        %v2028 = vadd.f32 0.0, %v2027
        %v2029 = vpop.f32.mrf.mxu0
        %v2030 = vadd.f32 0.0, %v2029
        %2031 = vmatmul.bf16.gmra.mxu0 %v1960
        %v2032 = vpop.f32.mrf.mxu0
        %v2033 = vadd.f32 0.0, %v2032
        %v2034 = vpop.f32.mrf.mxu0
        %v2035 = vadd.f32 0.0, %v2034
        %2036 = vmatmul.bf16.gmra.mxu0 %v1963
        %v2037 = vpop.f32.mrf.mxu0
        %v2038 = vadd.f32 0.0, %v2037
        %v2039 = vpop.f32.mrf.mxu0
        %v2040 = vadd.f32 0.0, %v2039
        %2041 = vmatmul.bf16.gmra.mxu0 %v1966
        %v2042 = vpop.f32.mrf.mxu0
        %v2043 = vadd.f32 0.0, %v2042
        %v2044 = vpop.f32.mrf.mxu0
        %v2045 = vadd.f32 0.0, %v2044
        %2046 = vmatmul.bf16.gmra.mxu0 %v1969
        %v2047 = vpop.f32.mrf.mxu0
        %v2048 = vadd.f32 0.0, %v2047
        %v2049 = vpop.f32.mrf.mxu0
        %v2050 = vadd.f32 0.0, %v2049
        %2051 = vmatmul.bf16.gmra.mxu0 %v1972
        %v2052 = vpop.f32.mrf.mxu0
        %v2053 = vadd.f32 0.0, %v2052
        %v2054 = vpop.f32.mrf.mxu0
        %v2055 = vadd.f32 0.0, %v2054
        %2056 = vmatmul.bf16.gmra.mxu0 %v1975
        %v2057 = vpop.f32.mrf.mxu0
        %v2058 = vadd.f32 0.0, %v2057
        %v2059 = vpop.f32.mrf.mxu0
        %v2060 = vadd.f32 0.0, %v2059
        %2061 = vmatmul.bf16.gmra.mxu0 %v1978
        %v2062 = vpop.f32.mrf.mxu0
        %v2063 = vadd.f32 0.0, %v2062
        %v2064 = vpop.f32.mrf.mxu0
        %v2065 = vadd.f32 0.0, %v2064
        %2066 = vmatmul.bf16.gmra.mxu0 %v1981
        %v2067 = vpop.f32.mrf.mxu0
        %v2068 = vadd.f32 0.0, %v2067
        %v2069 = vpop.f32.mrf.mxu0
        %v2070 = vadd.f32 0.0, %v2069
        %2071 = vmatmul.bf16.gmra.mxu0 %v1984
        %v2072 = vpop.f32.mrf.mxu0
        %v2073 = vadd.f32 0.0, %v2072
        %v2074 = vpop.f32.mrf.mxu0
        %v2075 = vadd.f32 0.0, %v2074
        %2076 = vmatmul.bf16.gmra.mxu0 %v1987
        %v2077 = vpop.f32.mrf.mxu0
        %v2078 = vadd.f32 0.0, %v2077
        %v2079 = vpop.f32.mrf.mxu0
        %v2080 = vadd.f32 0.0, %v2079
        %2081 = vdwg.mxu0
        %v2114 = vunpack.c.l.b16 %v1448
        %v2115 = vunpack.c.l.b16 %v1449
        %v2116 = vunpack.c.l.b16 %v1451
        %v2117 = vunpack.c.l.b16 %v1452
        %v2118 = vunpack.c.l.b16 %v1454
        %v2119 = vunpack.c.l.b16 %v1455
        %v2120 = vunpack.c.l.b16 %v1457
        %v2121 = vunpack.c.l.b16 %v1458
        %v2122 = vunpack.c.l.b16 %v1460
        %v2123 = vunpack.c.l.b16 %v1461
        %v2124 = vunpack.c.l.b16 %v1463
        %v2125 = vunpack.c.l.b16 %v1464
        %v2126 = vunpack.c.l.b16 %v1466
        %v2127 = vunpack.c.l.b16 %v1467
        %v2128 = vunpack.c.l.b16 %v1469
        %v2129 = vunpack.c.l.b16 %v1470
        %v2130 = vunpack.c.l.b16 %v1472
        %v2131 = vunpack.c.l.b16 %v1473
        %v2132 = vunpack.c.l.b16 %v1475
        %v2133 = vunpack.c.l.b16 %v1476
        %v2134 = vunpack.c.l.b16 %v1478
        %v2135 = vunpack.c.l.b16 %v1479
        %v2136 = vunpack.c.l.b16 %v1481
        %v2137 = vunpack.c.l.b16 %v1482
        %v2138 = vunpack.c.l.b16 %v1484
        %v2139 = vunpack.c.l.b16 %v1485
        %v2140 = vunpack.c.l.b16 %v1487
        %v2141 = vunpack.c.l.b16 %v1488
        %v2142 = vunpack.c.l.b16 %v1490
        %v2143 = vunpack.c.l.b16 %v1491
        %v2144 = vunpack.c.l.b16 %v1493
        %v2145 = vunpack.c.l.b16 %v1494
        %v2146 = vpack.c.b16 %v2115, %v2114
        %v2147 = vpack.c.b16 %v2117, %v2116
        %v2148 = vpack.c.b16 %v2119, %v2118
        %v2149 = vpack.c.b16 %v2121, %v2120
        %v2150 = vpack.c.b16 %v2123, %v2122
        %v2151 = vpack.c.b16 %v2125, %v2124
        %v2152 = vpack.c.b16 %v2127, %v2126
        %v2153 = vpack.c.b16 %v2129, %v2128
        %v2154 = vpack.c.b16 %v2131, %v2130
        %v2155 = vpack.c.b16 %v2133, %v2132
        %v2156 = vpack.c.b16 %v2135, %v2134
        %v2157 = vpack.c.b16 %v2137, %v2136
        %v2158 = vpack.c.b16 %v2139, %v2138
        %v2159 = vpack.c.b16 %v2141, %v2140
        %v2160 = vpack.c.b16 %v2143, %v2142
        %v2161 = vpack.c.b16 %v2145, %v2144
        %v2163 = vsel %vm1940, %v2146, 0
        %v2166 = vsel %vm1940, %v2147, 0
        %v2169 = vsel %vm1940, %v2148, 0
        %v2172 = vsel %vm1940, %v2149, 0
        %v2175 = vsel %vm1940, %v2150, 0
        %v2178 = vsel %vm1940, %v2151, 0
        %v2181 = vsel %vm1940, %v2152, 0
        %v2184 = vsel %vm1940, %v2153, 0
        %v2187 = vsel %vm1940, %v2154, 0
        %v2190 = vsel %vm1940, %v2155, 0
        %v2193 = vsel %vm1940, %v2156, 0
        %v2196 = vsel %vm1940, %v2157, 0
        %v2199 = vsel %vm1940, %v2158, 0
        %v2202 = vsel %vm1940, %v2159, 0
        %v2205 = vsel %vm1940, %v2160, 0
        %v2208 = vsel %vm1940, %v2161, 0
        %v2211 = vsel %vm1989, %v1502, 0
        %2213 = vmatpush.bf16.msra.mxu0 0
        %2214 = vmatpush.bf16.msra.mxu0 0
        %2215 = vmatpush.bf16.msra.mxu0 0
        %2216 = vmatpush.bf16.msra.mxu0 0
        %2217 = vmatpush.bf16.msra.mxu0 0
        %2218 = vmatpush.bf16.msra.mxu0 0
        %2219 = vmatpush.bf16.msra.mxu0 0
        %2220 = vmatpush.bf16.msra.mxu0 %v2211
        %2221 = vmatmul.bf16.gmra.mxu0 %v2163
        %v2222 = vpop.f32.mrf.mxu0
        %v2223 = vadd.f32 %v2003, %v2222
        %v2224 = vpop.f32.mrf.mxu0
        %v2225 = vadd.f32 %v2005, %v2224
        %2226 = vmatmul.bf16.gmra.mxu0 %v2166
        %v2227 = vpop.f32.mrf.mxu0
        %v2228 = vadd.f32 %v2008, %v2227
        %v2229 = vpop.f32.mrf.mxu0
        %v2230 = vadd.f32 %v2010, %v2229
        %2231 = vmatmul.bf16.gmra.mxu0 %v2169
        %v2232 = vpop.f32.mrf.mxu0
        %v2233 = vadd.f32 %v2013, %v2232
        %v2234 = vpop.f32.mrf.mxu0
        %v2235 = vadd.f32 %v2015, %v2234
        %2236 = vmatmul.bf16.gmra.mxu0 %v2172
        %v2237 = vpop.f32.mrf.mxu0
        %v2238 = vadd.f32 %v2018, %v2237
        %v2239 = vpop.f32.mrf.mxu0
        %v2240 = vadd.f32 %v2020, %v2239
        %2241 = vmatmul.bf16.gmra.mxu0 %v2175
        %v2242 = vpop.f32.mrf.mxu0
        %v2243 = vadd.f32 %v2023, %v2242
        %v2244 = vpop.f32.mrf.mxu0
        %v2245 = vadd.f32 %v2025, %v2244
        %2246 = vmatmul.bf16.gmra.mxu0 %v2178
        %v2247 = vpop.f32.mrf.mxu0
        %v2248 = vadd.f32 %v2028, %v2247
        %v2249 = vpop.f32.mrf.mxu0
        %v2250 = vadd.f32 %v2030, %v2249
        %2251 = vmatmul.bf16.gmra.mxu0 %v2181
        %v2252 = vpop.f32.mrf.mxu0
        %v2253 = vadd.f32 %v2033, %v2252
        %v2254 = vpop.f32.mrf.mxu0
        %v2255 = vadd.f32 %v2035, %v2254
        %2256 = vmatmul.bf16.gmra.mxu0 %v2184
        %v2257 = vpop.f32.mrf.mxu0
        %v2258 = vadd.f32 %v2038, %v2257
        %v2259 = vpop.f32.mrf.mxu0
        %v2260 = vadd.f32 %v2040, %v2259
        %2261 = vmatmul.bf16.gmra.mxu0 %v2187
        %v2262 = vpop.f32.mrf.mxu0
        %v2263 = vadd.f32 %v2043, %v2262
        %v2264 = vpop.f32.mrf.mxu0
        %v2265 = vadd.f32 %v2045, %v2264
        %2266 = vmatmul.bf16.gmra.mxu0 %v2190
        %v2267 = vpop.f32.mrf.mxu0
        %v2268 = vadd.f32 %v2048, %v2267
        %v2269 = vpop.f32.mrf.mxu0
        %v2270 = vadd.f32 %v2050, %v2269
        %2271 = vmatmul.bf16.gmra.mxu0 %v2193
        %v2272 = vpop.f32.mrf.mxu0
        %v2273 = vadd.f32 %v2053, %v2272
        %v2274 = vpop.f32.mrf.mxu0
        %v2275 = vadd.f32 %v2055, %v2274
        %2276 = vmatmul.bf16.gmra.mxu0 %v2196
        %v2277 = vpop.f32.mrf.mxu0
        %v2278 = vadd.f32 %v2058, %v2277
        %v2279 = vpop.f32.mrf.mxu0
        %v2280 = vadd.f32 %v2060, %v2279
        %2281 = vmatmul.bf16.gmra.mxu0 %v2199
        %v2282 = vpop.f32.mrf.mxu0
        %v2283 = vadd.f32 %v2063, %v2282
        %v2284 = vpop.f32.mrf.mxu0
        %v2285 = vadd.f32 %v2065, %v2284
        %2286 = vmatmul.bf16.gmra.mxu0 %v2202
        %v2287 = vpop.f32.mrf.mxu0
        %v2288 = vadd.f32 %v2068, %v2287
        %v2289 = vpop.f32.mrf.mxu0
        %v2290 = vadd.f32 %v2070, %v2289
        %2291 = vmatmul.bf16.gmra.mxu0 %v2205
        %v2292 = vpop.f32.mrf.mxu0
        %v2293 = vadd.f32 %v2073, %v2292
        %v2294 = vpop.f32.mrf.mxu0
        %v2295 = vadd.f32 %v2075, %v2294
        %2296 = vmatmul.bf16.gmra.mxu0 %v2208
        %v2297 = vpop.f32.mrf.mxu0
        %v2298 = vadd.f32 %v2078, %v2297
        %v2299 = vpop.f32.mrf.mxu0
        %v2300 = vadd.f32 %v2080, %v2299
        %2301 = vdwg.mxu0
        %vm2318 = vcmask 1042432
        %vm2319 = vcmask 1046532
        %vm2320 = vmor %vm2318, %vm2319
        %v2321 = vrot.slane %v1448, 5
        %v2322 = vrot.slane %v2321, 4
        %v2323 = vrot.slane %v1449, 5
        %v2324 = vsel %vm2320, %v2322, %v2323
        %v2325 = vrot.slane %v2323, 4
        %v2326 = vrot.slane %v1450, 5
        %v2327 = vsel %vm2320, %v2325, %v2326
        %v2328 = vrot.slane %v1451, 5
        %v2329 = vrot.slane %v2328, 4
        %v2330 = vrot.slane %v1452, 5
        %v2331 = vsel %vm2320, %v2329, %v2330
        %v2332 = vrot.slane %v2330, 4
        %v2333 = vrot.slane %v1453, 5
        %v2334 = vsel %vm2320, %v2332, %v2333
        %v2335 = vrot.slane %v1454, 5
        %v2336 = vrot.slane %v2335, 4
        %v2337 = vrot.slane %v1455, 5
        %v2338 = vsel %vm2320, %v2336, %v2337
        %v2339 = vrot.slane %v2337, 4
        %v2340 = vrot.slane %v1456, 5
        %v2341 = vsel %vm2320, %v2339, %v2340
        %v2342 = vrot.slane %v1457, 5
        %v2343 = vrot.slane %v2342, 4
        %v2344 = vrot.slane %v1458, 5
        %v2345 = vsel %vm2320, %v2343, %v2344
        %v2346 = vrot.slane %v2344, 4
        %v2347 = vrot.slane %v1459, 5
        %v2348 = vsel %vm2320, %v2346, %v2347
        %v2349 = vrot.slane %v1460, 5
        %v2350 = vrot.slane %v2349, 4
        %v2351 = vrot.slane %v1461, 5
        %v2352 = vsel %vm2320, %v2350, %v2351
        %v2353 = vrot.slane %v2351, 4
        %v2354 = vrot.slane %v1462, 5
        %v2355 = vsel %vm2320, %v2353, %v2354
        %v2356 = vrot.slane %v1463, 5
        %v2357 = vrot.slane %v2356, 4
        %v2358 = vrot.slane %v1464, 5
        %v2359 = vsel %vm2320, %v2357, %v2358
        %v2360 = vrot.slane %v2358, 4
        %v2361 = vrot.slane %v1465, 5
        %v2362 = vsel %vm2320, %v2360, %v2361
        %v2363 = vrot.slane %v1466, 5
        %v2364 = vrot.slane %v2363, 4
        %v2365 = vrot.slane %v1467, 5
        %v2366 = vsel %vm2320, %v2364, %v2365
        %v2367 = vrot.slane %v2365, 4
        %v2368 = vrot.slane %v1468, 5
        %v2369 = vsel %vm2320, %v2367, %v2368
        %v2370 = vrot.slane %v1469, 5
        %v2371 = vrot.slane %v2370, 4
        %v2372 = vrot.slane %v1470, 5
        %v2373 = vsel %vm2320, %v2371, %v2372
        %v2374 = vrot.slane %v2372, 4
        %v2375 = vrot.slane %v1471, 5
        %v2376 = vsel %vm2320, %v2374, %v2375
        %v2377 = vrot.slane %v1472, 5
        %v2378 = vrot.slane %v2377, 4
        %v2379 = vrot.slane %v1473, 5
        %v2380 = vsel %vm2320, %v2378, %v2379
        %v2381 = vrot.slane %v2379, 4
        %v2382 = vrot.slane %v1474, 5
        %v2383 = vsel %vm2320, %v2381, %v2382
        %v2384 = vrot.slane %v1475, 5
        %v2385 = vrot.slane %v2384, 4
        %v2386 = vrot.slane %v1476, 5
        %v2387 = vsel %vm2320, %v2385, %v2386
        %v2388 = vrot.slane %v2386, 4
        %v2389 = vrot.slane %v1477, 5
        %v2390 = vsel %vm2320, %v2388, %v2389
        %v2391 = vrot.slane %v1478, 5
        %v2392 = vrot.slane %v2391, 4
        %v2393 = vrot.slane %v1479, 5
        %v2394 = vsel %vm2320, %v2392, %v2393
        %v2395 = vrot.slane %v2393, 4
        %v2396 = vrot.slane %v1480, 5
        %v2397 = vsel %vm2320, %v2395, %v2396
        %v2398 = vrot.slane %v1481, 5
        %v2399 = vrot.slane %v2398, 4
        %v2400 = vrot.slane %v1482, 5
        %v2401 = vsel %vm2320, %v2399, %v2400
        %v2402 = vrot.slane %v2400, 4
        %v2403 = vrot.slane %v1483, 5
        %v2404 = vsel %vm2320, %v2402, %v2403
        %v2405 = vrot.slane %v1484, 5
        %v2406 = vrot.slane %v2405, 4
        %v2407 = vrot.slane %v1485, 5
        %v2408 = vsel %vm2320, %v2406, %v2407
        %v2409 = vrot.slane %v2407, 4
        %v2410 = vrot.slane %v1486, 5
        %v2411 = vsel %vm2320, %v2409, %v2410
        %v2412 = vrot.slane %v1487, 5
        %v2413 = vrot.slane %v2412, 4
        %v2414 = vrot.slane %v1488, 5
        %v2415 = vsel %vm2320, %v2413, %v2414
        %v2416 = vrot.slane %v2414, 4
        %v2417 = vrot.slane %v1489, 5
        %v2418 = vsel %vm2320, %v2416, %v2417
        %v2419 = vrot.slane %v1490, 5
        %v2420 = vrot.slane %v2419, 4
        %v2421 = vrot.slane %v1491, 5
        %v2422 = vsel %vm2320, %v2420, %v2421
        %v2423 = vrot.slane %v2421, 4
        %v2424 = vrot.slane %v1492, 5
        %v2425 = vsel %vm2320, %v2423, %v2424
        %v2426 = vrot.slane %v1493, 5
        %v2427 = vrot.slane %v2426, 4
        %v2428 = vrot.slane %v1494, 5
        %v2429 = vsel %vm2320, %v2427, %v2428
        %v2430 = vrot.slane %v2428, 4
        %v2431 = vrot.slane %v1495, 5
        %v2432 = vsel %vm2320, %v2430, %v2431
        %s2433 = scalar_lea.vmem %s0, 8
        %v2434 = vld [vmem:[%s2433] sm:$0xf]
        %v2435 = vunpack.c.l.b16 %v2324
        %v2436 = vunpack.c.l.b16 %v2327
        %v2437 = vunpack.c.l.b16 %v2331
        %v2438 = vunpack.c.l.b16 %v2334
        %v2439 = vunpack.c.l.b16 %v2338
        %v2440 = vunpack.c.l.b16 %v2341
        %v2441 = vunpack.c.l.b16 %v2345
        %v2442 = vunpack.c.l.b16 %v2348
        %v2443 = vunpack.c.l.b16 %v2352
        %v2444 = vunpack.c.l.b16 %v2355
        %v2445 = vunpack.c.l.b16 %v2359
        %v2446 = vunpack.c.l.b16 %v2362
        %v2447 = vunpack.c.l.b16 %v2366
        %v2448 = vunpack.c.l.b16 %v2369
        %v2449 = vunpack.c.l.b16 %v2373
        %v2450 = vunpack.c.l.b16 %v2376
        %v2451 = vunpack.c.l.b16 %v2380
        %v2452 = vunpack.c.l.b16 %v2383
        %v2453 = vunpack.c.l.b16 %v2387
        %v2454 = vunpack.c.l.b16 %v2390
        %v2455 = vunpack.c.l.b16 %v2394
        %v2456 = vunpack.c.l.b16 %v2397
        %v2457 = vunpack.c.l.b16 %v2401
        %v2458 = vunpack.c.l.b16 %v2404
        %v2459 = vunpack.c.l.b16 %v2408
        %v2460 = vunpack.c.l.b16 %v2411
        %v2461 = vunpack.c.l.b16 %v2415
        %v2462 = vunpack.c.l.b16 %v2418
        %v2463 = vunpack.c.l.b16 %v2422
        %v2464 = vunpack.c.l.b16 %v2425
        %v2465 = vunpack.c.l.b16 %v2429
        %v2466 = vunpack.c.l.b16 %v2432
        %v2467 = vpack.c.b16 %v2436, %v2435
        %v2468 = vpack.c.b16 %v2438, %v2437
        %v2469 = vpack.c.b16 %v2440, %v2439
        %v2470 = vpack.c.b16 %v2442, %v2441
        %v2471 = vpack.c.b16 %v2444, %v2443
        %v2472 = vpack.c.b16 %v2446, %v2445
        %v2473 = vpack.c.b16 %v2448, %v2447
        %v2474 = vpack.c.b16 %v2450, %v2449
        %v2475 = vpack.c.b16 %v2452, %v2451
        %v2476 = vpack.c.b16 %v2454, %v2453
        %v2477 = vpack.c.b16 %v2456, %v2455
        %v2478 = vpack.c.b16 %v2458, %v2457
        %v2479 = vpack.c.b16 %v2460, %v2459
        %v2480 = vpack.c.b16 %v2462, %v2461
        %v2481 = vpack.c.b16 %v2464, %v2463
        %v2482 = vpack.c.b16 %v2466, %v2465
        %v2484 = vsel %vm1940, %v2467, 0
        %v2487 = vsel %vm1940, %v2468, 0
        %v2490 = vsel %vm1940, %v2469, 0
        %v2493 = vsel %vm1940, %v2470, 0
        %v2496 = vsel %vm1940, %v2471, 0
        %v2499 = vsel %vm1940, %v2472, 0
        %v2502 = vsel %vm1940, %v2473, 0
        %v2505 = vsel %vm1940, %v2474, 0
        %v2508 = vsel %vm1940, %v2475, 0
        %v2511 = vsel %vm1940, %v2476, 0
        %v2514 = vsel %vm1940, %v2477, 0
        %v2517 = vsel %vm1940, %v2478, 0
        %v2520 = vsel %vm1940, %v2479, 0
        %v2523 = vsel %vm1940, %v2480, 0
        %v2526 = vsel %vm1940, %v2481, 0
        %v2529 = vsel %vm1940, %v2482, 0
        %v2532 = vsel %vm1989, %v2434, 0
        %2534 = vmatpush.bf16.msra.mxu0 0
        %2535 = vmatpush.bf16.msra.mxu0 0
        %2536 = vmatpush.bf16.msra.mxu0 0
        %2537 = vmatpush.bf16.msra.mxu0 0
        %2538 = vmatpush.bf16.msra.mxu0 0
        %2539 = vmatpush.bf16.msra.mxu0 0
        %2540 = vmatpush.bf16.msra.mxu0 0
        %2541 = vmatpush.bf16.msra.mxu0 %v2532
        %2542 = vmatmul.bf16.gmra.mxu0 %v2484
        %v2543 = vpop.f32.mrf.mxu0
        %v2544 = vadd.f32 0.0, %v2543
        %v2545 = vpop.f32.mrf.mxu0
        %v2546 = vadd.f32 0.0, %v2545
        %2547 = vmatmul.bf16.gmra.mxu0 %v2487
        %v2548 = vpop.f32.mrf.mxu0
        %v2549 = vadd.f32 0.0, %v2548
        %v2550 = vpop.f32.mrf.mxu0
        %v2551 = vadd.f32 0.0, %v2550
        %2552 = vmatmul.bf16.gmra.mxu0 %v2490
        %v2553 = vpop.f32.mrf.mxu0
        %v2554 = vadd.f32 0.0, %v2553
        %v2555 = vpop.f32.mrf.mxu0
        %v2556 = vadd.f32 0.0, %v2555
        %2557 = vmatmul.bf16.gmra.mxu0 %v2493
        %v2558 = vpop.f32.mrf.mxu0
        %v2559 = vadd.f32 0.0, %v2558
        %v2560 = vpop.f32.mrf.mxu0
        %v2561 = vadd.f32 0.0, %v2560
        %2562 = vmatmul.bf16.gmra.mxu0 %v2496
        %v2563 = vpop.f32.mrf.mxu0
        %v2564 = vadd.f32 0.0, %v2563
        %v2565 = vpop.f32.mrf.mxu0
        %v2566 = vadd.f32 0.0, %v2565
        %2567 = vmatmul.bf16.gmra.mxu0 %v2499
        %v2568 = vpop.f32.mrf.mxu0
        %v2569 = vadd.f32 0.0, %v2568
        %v2570 = vpop.f32.mrf.mxu0
        %v2571 = vadd.f32 0.0, %v2570
        %2572 = vmatmul.bf16.gmra.mxu0 %v2502
        %v2573 = vpop.f32.mrf.mxu0
        %v2574 = vadd.f32 0.0, %v2573
        %v2575 = vpop.f32.mrf.mxu0
        %v2576 = vadd.f32 0.0, %v2575
        %2577 = vmatmul.bf16.gmra.mxu0 %v2505
        %v2578 = vpop.f32.mrf.mxu0
        %v2579 = vadd.f32 0.0, %v2578
        %v2580 = vpop.f32.mrf.mxu0
        %v2581 = vadd.f32 0.0, %v2580
        %2582 = vmatmul.bf16.gmra.mxu0 %v2508
        %v2583 = vpop.f32.mrf.mxu0
        %v2584 = vadd.f32 0.0, %v2583
        %v2585 = vpop.f32.mrf.mxu0
        %v2586 = vadd.f32 0.0, %v2585
        %2587 = vmatmul.bf16.gmra.mxu0 %v2511
        %v2588 = vpop.f32.mrf.mxu0
        %v2589 = vadd.f32 0.0, %v2588
        %v2590 = vpop.f32.mrf.mxu0
        %v2591 = vadd.f32 0.0, %v2590
        %2592 = vmatmul.bf16.gmra.mxu0 %v2514
        %v2593 = vpop.f32.mrf.mxu0
        %v2594 = vadd.f32 0.0, %v2593
        %v2595 = vpop.f32.mrf.mxu0
        %v2596 = vadd.f32 0.0, %v2595
        %2597 = vmatmul.bf16.gmra.mxu0 %v2517
        %v2598 = vpop.f32.mrf.mxu0
        %v2599 = vadd.f32 0.0, %v2598
        %v2600 = vpop.f32.mrf.mxu0
        %v2601 = vadd.f32 0.0, %v2600
        %2602 = vmatmul.bf16.gmra.mxu0 %v2520
        %v2603 = vpop.f32.mrf.mxu0
        %v2604 = vadd.f32 0.0, %v2603
        %v2605 = vpop.f32.mrf.mxu0
        %v2606 = vadd.f32 0.0, %v2605
        %2607 = vmatmul.bf16.gmra.mxu0 %v2523
        %v2608 = vpop.f32.mrf.mxu0
        %v2609 = vadd.f32 0.0, %v2608
        %v2610 = vpop.f32.mrf.mxu0
        %v2611 = vadd.f32 0.0, %v2610
        %2612 = vmatmul.bf16.gmra.mxu0 %v2526
        %v2613 = vpop.f32.mrf.mxu0
        %v2614 = vadd.f32 0.0, %v2613
        %v2615 = vpop.f32.mrf.mxu0
        %v2616 = vadd.f32 0.0, %v2615
        %2617 = vmatmul.bf16.gmra.mxu0 %v2529
        %v2618 = vpop.f32.mrf.mxu0
        %v2619 = vadd.f32 0.0, %v2618
        %v2620 = vpop.f32.mrf.mxu0
        %v2621 = vadd.f32 0.0, %v2620
        %2622 = vdwg.mxu0
        %v2623 = vadd.f32 %v2223, %v2544
        %v2624 = vadd.f32 %v2225, %v2546
        %v2625 = vadd.f32 %v2228, %v2549
        %v2626 = vadd.f32 %v2230, %v2551
        %v2627 = vadd.f32 %v2233, %v2554
        %v2628 = vadd.f32 %v2235, %v2556
        %v2629 = vadd.f32 %v2238, %v2559
        %v2630 = vadd.f32 %v2240, %v2561
        %v2631 = vadd.f32 %v2243, %v2564
        %v2632 = vadd.f32 %v2245, %v2566
        %v2633 = vadd.f32 %v2248, %v2569
        %v2634 = vadd.f32 %v2250, %v2571
        %v2635 = vadd.f32 %v2253, %v2574
        %v2636 = vadd.f32 %v2255, %v2576
        %v2637 = vadd.f32 %v2258, %v2579
        %v2638 = vadd.f32 %v2260, %v2581
        %v2639 = vadd.f32 %v2263, %v2584
        %v2640 = vadd.f32 %v2265, %v2586
        %v2641 = vadd.f32 %v2268, %v2589
        %v2642 = vadd.f32 %v2270, %v2591
        %v2643 = vadd.f32 %v2273, %v2594
        %v2644 = vadd.f32 %v2275, %v2596
        %v2645 = vadd.f32 %v2278, %v2599
        %v2646 = vadd.f32 %v2280, %v2601
        %v2647 = vadd.f32 %v2283, %v2604
        %v2648 = vadd.f32 %v2285, %v2606
        %v2649 = vadd.f32 %v2288, %v2609
        %v2650 = vadd.f32 %v2290, %v2611
        %v2651 = vadd.f32 %v2293, %v2614
        %v2652 = vadd.f32 %v2295, %v2616
        %v2653 = vadd.f32 %v2298, %v2619
        %v2654 = vadd.f32 %v2300, %v2621
        %s2655 = scalar_lea.vmem %s0, 12
        %v2656 = vld [vmem:[%s2655] sm:$0xf]
        %v2659 = vunpack.c.l.b16 %v1496
        %v2660 = vunpack.c.l.b16 %v1497
        %v2661 = vpack.c.b16 %v2660, %v2659
        %v2663 = vsel %vm1940, %v2661, 0
        %v2666 = vsel %vm1989, %v2656, 0
        %2668 = vmatpush.bf16.msra.mxu0 0
        %2669 = vmatpush.bf16.msra.mxu0 0
        %2670 = vmatpush.bf16.msra.mxu0 0
        %2671 = vmatpush.bf16.msra.mxu0 0
        %2672 = vmatpush.bf16.msra.mxu0 0
        %2673 = vmatpush.bf16.msra.mxu0 0
        %2674 = vmatpush.bf16.msra.mxu0 0
        %2675 = vmatpush.bf16.msra.mxu0 %v2666
        %2676 = vmatmul.bf16.gmra.mxu0 %v2166
        %v2677 = vpop.f32.mrf.mxu0
        %v2678 = vadd.f32 0.0, %v2677
        %v2679 = vpop.f32.mrf.mxu0
        %v2680 = vadd.f32 0.0, %v2679
        %2681 = vmatmul.bf16.gmra.mxu0 %v2169
        %v2682 = vpop.f32.mrf.mxu0
        %v2683 = vadd.f32 0.0, %v2682
        %v2684 = vpop.f32.mrf.mxu0
        %v2685 = vadd.f32 0.0, %v2684
        %2686 = vmatmul.bf16.gmra.mxu0 %v2172
        %v2687 = vpop.f32.mrf.mxu0
        %v2688 = vadd.f32 0.0, %v2687
        %v2689 = vpop.f32.mrf.mxu0
        %v2690 = vadd.f32 0.0, %v2689
        %2691 = vmatmul.bf16.gmra.mxu0 %v2175
        %v2692 = vpop.f32.mrf.mxu0
        %v2693 = vadd.f32 0.0, %v2692
        %v2694 = vpop.f32.mrf.mxu0
        %v2695 = vadd.f32 0.0, %v2694
        %2696 = vmatmul.bf16.gmra.mxu0 %v2178
        %v2697 = vpop.f32.mrf.mxu0
        %v2698 = vadd.f32 0.0, %v2697
        %v2699 = vpop.f32.mrf.mxu0
        %v2700 = vadd.f32 0.0, %v2699
        %2701 = vmatmul.bf16.gmra.mxu0 %v2181
        %v2702 = vpop.f32.mrf.mxu0
        %v2703 = vadd.f32 0.0, %v2702
        %v2704 = vpop.f32.mrf.mxu0
        %v2705 = vadd.f32 0.0, %v2704
        %2706 = vmatmul.bf16.gmra.mxu0 %v2184
        %v2707 = vpop.f32.mrf.mxu0
        %v2708 = vadd.f32 0.0, %v2707
        %v2709 = vpop.f32.mrf.mxu0
        %v2710 = vadd.f32 0.0, %v2709
        %2711 = vmatmul.bf16.gmra.mxu0 %v2187
        %v2712 = vpop.f32.mrf.mxu0
        %v2713 = vadd.f32 0.0, %v2712
        %v2714 = vpop.f32.mrf.mxu0
        %v2715 = vadd.f32 0.0, %v2714
        %2716 = vmatmul.bf16.gmra.mxu0 %v2190
        %v2717 = vpop.f32.mrf.mxu0
        %v2718 = vadd.f32 0.0, %v2717
        %v2719 = vpop.f32.mrf.mxu0
        %v2720 = vadd.f32 0.0, %v2719
        %2721 = vmatmul.bf16.gmra.mxu0 %v2193
        %v2722 = vpop.f32.mrf.mxu0
        %v2723 = vadd.f32 0.0, %v2722
        %v2724 = vpop.f32.mrf.mxu0
        %v2725 = vadd.f32 0.0, %v2724
        %2726 = vmatmul.bf16.gmra.mxu0 %v2196
        %v2727 = vpop.f32.mrf.mxu0
        %v2728 = vadd.f32 0.0, %v2727
        %v2729 = vpop.f32.mrf.mxu0
        %v2730 = vadd.f32 0.0, %v2729
        %2731 = vmatmul.bf16.gmra.mxu0 %v2199
        %v2732 = vpop.f32.mrf.mxu0
        %v2733 = vadd.f32 0.0, %v2732
        %v2734 = vpop.f32.mrf.mxu0
        %v2735 = vadd.f32 0.0, %v2734
        %2736 = vmatmul.bf16.gmra.mxu0 %v2202
        %v2737 = vpop.f32.mrf.mxu0
        %v2738 = vadd.f32 0.0, %v2737
        %v2739 = vpop.f32.mrf.mxu0
        %v2740 = vadd.f32 0.0, %v2739
        %2741 = vmatmul.bf16.gmra.mxu0 %v2205
        %v2742 = vpop.f32.mrf.mxu0
        %v2743 = vadd.f32 0.0, %v2742
        %v2744 = vpop.f32.mrf.mxu0
        %v2745 = vadd.f32 0.0, %v2744
        %2746 = vmatmul.bf16.gmra.mxu0 %v2208
        %v2747 = vpop.f32.mrf.mxu0
        %v2748 = vadd.f32 0.0, %v2747
        %v2749 = vpop.f32.mrf.mxu0
        %v2750 = vadd.f32 0.0, %v2749
        %2751 = vmatmul.bf16.gmra.mxu0 %v2663
        %v2752 = vpop.f32.mrf.mxu0
        %v2753 = vadd.f32 0.0, %v2752
        %v2754 = vpop.f32.mrf.mxu0
        %v2755 = vadd.f32 0.0, %v2754
        %2756 = vdwg.mxu0
        %v2757 = vadd.f32 %v2623, %v2678
        %v2758 = vadd.f32 %v2624, %v2680
        %v2759 = vadd.f32 %v2625, %v2683
        %v2760 = vadd.f32 %v2626, %v2685
        %v2761 = vadd.f32 %v2627, %v2688
        %v2762 = vadd.f32 %v2628, %v2690
        %v2763 = vadd.f32 %v2629, %v2693
        %v2764 = vadd.f32 %v2630, %v2695
        %v2765 = vadd.f32 %v2631, %v2698
        %v2766 = vadd.f32 %v2632, %v2700
        %v2767 = vadd.f32 %v2633, %v2703
        %v2768 = vadd.f32 %v2634, %v2705
        %v2769 = vadd.f32 %v2635, %v2708
        %v2770 = vadd.f32 %v2636, %v2710
        %v2771 = vadd.f32 %v2637, %v2713
        %v2772 = vadd.f32 %v2638, %v2715
        %v2773 = vadd.f32 %v2639, %v2718
        %v2774 = vadd.f32 %v2640, %v2720
        %v2775 = vadd.f32 %v2641, %v2723
        %v2776 = vadd.f32 %v2642, %v2725
        %v2777 = vadd.f32 %v2643, %v2728
        %v2778 = vadd.f32 %v2644, %v2730
        %v2779 = vadd.f32 %v2645, %v2733
        %v2780 = vadd.f32 %v2646, %v2735
        %v2781 = vadd.f32 %v2647, %v2738
        %v2782 = vadd.f32 %v2648, %v2740
        %v2783 = vadd.f32 %v2649, %v2743
        %v2784 = vadd.f32 %v2650, %v2745
        %v2785 = vadd.f32 %v2651, %v2748
        %v2786 = vadd.f32 %v2652, %v2750
        %v2787 = vadd.f32 %v2653, %v2753
        %v2788 = vadd.f32 %v2654, %v2755
        %v2790 = vshrl.u32 %v1496, 16
        %v2792 = vrot.slane %v2790, 4
        %v2793 = vshll.u32 %v1496, 16
        %v2795 = vrot.slane %v2793, 5
        %v2796 = vor.u32 %v2792, %v2795
        %v2797 = vrot.slane %v2796, 4
        %v2799 = vshll.u32 %v1497, 16
        %v2801 = vrot.slane %v2799, 5
        %v2802 = vsel %vm1505, %v2797, %v2801
        %v2803 = vshrl.u32 %v1497, 16
        %v2805 = vrot.slane %v2803, 4
        %v2806 = vor.u32 %v2805, %v2801
        %v2807 = vrot.slane %v2806, 4
        %v2809 = vshll.u32 %v1498, 16
        %v2811 = vrot.slane %v2809, 5
        %v2812 = vsel %vm1505, %v2807, %v2811
        %s2813 = scalar_lea.vmem %s0, 16
        %v2814 = vld [vmem:[%s2813] sm:$0xf]
        %v2815 = vunpack.c.l.b16 %v2802
        %v2816 = vunpack.c.l.b16 %v2812
        %v2817 = vpack.c.b16 %v2816, %v2815
        %v2819 = vsel %vm1940, %v2817, 0
        %v2822 = vsel %vm1989, %v2814, 0
        %2824 = vmatpush.bf16.msra.mxu0 0
        %2825 = vmatpush.bf16.msra.mxu0 0
        %2826 = vmatpush.bf16.msra.mxu0 0
        %2827 = vmatpush.bf16.msra.mxu0 0
        %2828 = vmatpush.bf16.msra.mxu0 0
        %2829 = vmatpush.bf16.msra.mxu0 0
        %2830 = vmatpush.bf16.msra.mxu0 0
        %2831 = vmatpush.bf16.msra.mxu0 %v2822
        %2832 = vmatmul.bf16.gmra.mxu0 %v1945
        %v2833 = vpop.f32.mrf.mxu0
        %v2834 = vadd.f32 0.0, %v2833
        %v2835 = vpop.f32.mrf.mxu0
        %v2836 = vadd.f32 0.0, %v2835
        %2837 = vmatmul.bf16.gmra.mxu0 %v1948
        %v2838 = vpop.f32.mrf.mxu0
        %v2839 = vadd.f32 0.0, %v2838
        %v2840 = vpop.f32.mrf.mxu0
        %v2841 = vadd.f32 0.0, %v2840
        %2842 = vmatmul.bf16.gmra.mxu0 %v1951
        %v2843 = vpop.f32.mrf.mxu0
        %v2844 = vadd.f32 0.0, %v2843
        %v2845 = vpop.f32.mrf.mxu0
        %v2846 = vadd.f32 0.0, %v2845
        %2847 = vmatmul.bf16.gmra.mxu0 %v1954
        %v2848 = vpop.f32.mrf.mxu0
        %v2849 = vadd.f32 0.0, %v2848
        %v2850 = vpop.f32.mrf.mxu0
        %v2851 = vadd.f32 0.0, %v2850
        %2852 = vmatmul.bf16.gmra.mxu0 %v1957
        %v2853 = vpop.f32.mrf.mxu0
        %v2854 = vadd.f32 0.0, %v2853
        %v2855 = vpop.f32.mrf.mxu0
        %v2856 = vadd.f32 0.0, %v2855
        %2857 = vmatmul.bf16.gmra.mxu0 %v1960
        %v2858 = vpop.f32.mrf.mxu0
        %v2859 = vadd.f32 0.0, %v2858
        %v2860 = vpop.f32.mrf.mxu0
        %v2861 = vadd.f32 0.0, %v2860
        %2862 = vmatmul.bf16.gmra.mxu0 %v1963
        %v2863 = vpop.f32.mrf.mxu0
        %v2864 = vadd.f32 0.0, %v2863
        %v2865 = vpop.f32.mrf.mxu0
        %v2866 = vadd.f32 0.0, %v2865
        %2867 = vmatmul.bf16.gmra.mxu0 %v1966
        %v2868 = vpop.f32.mrf.mxu0
        %v2869 = vadd.f32 0.0, %v2868
        %v2870 = vpop.f32.mrf.mxu0
        %v2871 = vadd.f32 0.0, %v2870
        %2872 = vmatmul.bf16.gmra.mxu0 %v1969
        %v2873 = vpop.f32.mrf.mxu0
        %v2874 = vadd.f32 0.0, %v2873
        %v2875 = vpop.f32.mrf.mxu0
        %v2876 = vadd.f32 0.0, %v2875
        %2877 = vmatmul.bf16.gmra.mxu0 %v1972
        %v2878 = vpop.f32.mrf.mxu0
        %v2879 = vadd.f32 0.0, %v2878
        %v2880 = vpop.f32.mrf.mxu0
        %v2881 = vadd.f32 0.0, %v2880
        %2882 = vmatmul.bf16.gmra.mxu0 %v1975
        %v2883 = vpop.f32.mrf.mxu0
        %v2884 = vadd.f32 0.0, %v2883
        %v2885 = vpop.f32.mrf.mxu0
        %v2886 = vadd.f32 0.0, %v2885
        %2887 = vmatmul.bf16.gmra.mxu0 %v1978
        %v2888 = vpop.f32.mrf.mxu0
        %v2889 = vadd.f32 0.0, %v2888
        %v2890 = vpop.f32.mrf.mxu0
        %v2891 = vadd.f32 0.0, %v2890
        %2892 = vmatmul.bf16.gmra.mxu0 %v1981
        %v2893 = vpop.f32.mrf.mxu0
        %v2894 = vadd.f32 0.0, %v2893
        %v2895 = vpop.f32.mrf.mxu0
        %v2896 = vadd.f32 0.0, %v2895
        %2897 = vmatmul.bf16.gmra.mxu0 %v1984
        %v2898 = vpop.f32.mrf.mxu0
        %v2899 = vadd.f32 0.0, %v2898
        %v2900 = vpop.f32.mrf.mxu0
        %v2901 = vadd.f32 0.0, %v2900
        %2902 = vmatmul.bf16.gmra.mxu0 %v1987
        %v2903 = vpop.f32.mrf.mxu0
        %v2904 = vadd.f32 0.0, %v2903
        %v2905 = vpop.f32.mrf.mxu0
        %v2906 = vadd.f32 0.0, %v2905
        %2907 = vmatmul.bf16.gmra.mxu0 %v2819
        %v2908 = vpop.f32.mrf.mxu0
        %v2909 = vadd.f32 0.0, %v2908
        %v2910 = vpop.f32.mrf.mxu0
        %v2911 = vadd.f32 0.0, %v2910
        %2912 = vdwg.mxu0
        %v2913 = vadd.f32 %v2757, %v2834
        %v2914 = vadd.f32 %v2758, %v2836
        %v2915 = vadd.f32 %v2759, %v2839
        %v2916 = vadd.f32 %v2760, %v2841
        %v2917 = vadd.f32 %v2761, %v2844
        %v2918 = vadd.f32 %v2762, %v2846
        %v2919 = vadd.f32 %v2763, %v2849
        %v2920 = vadd.f32 %v2764, %v2851
        %v2921 = vadd.f32 %v2765, %v2854
        %v2922 = vadd.f32 %v2766, %v2856
        %v2923 = vadd.f32 %v2767, %v2859
        %v2924 = vadd.f32 %v2768, %v2861
        %v2925 = vadd.f32 %v2769, %v2864
        %v2926 = vadd.f32 %v2770, %v2866
        %v2927 = vadd.f32 %v2771, %v2869
        %v2928 = vadd.f32 %v2772, %v2871
        %v2929 = vadd.f32 %v2773, %v2874
        %v2930 = vadd.f32 %v2774, %v2876
        %v2931 = vadd.f32 %v2775, %v2879
        %v2932 = vadd.f32 %v2776, %v2881
        %v2933 = vadd.f32 %v2777, %v2884
        %v2934 = vadd.f32 %v2778, %v2886
        %v2935 = vadd.f32 %v2779, %v2889
        %v2936 = vadd.f32 %v2780, %v2891
        %v2937 = vadd.f32 %v2781, %v2894
        %v2938 = vadd.f32 %v2782, %v2896
        %v2939 = vadd.f32 %v2783, %v2899
        %v2940 = vadd.f32 %v2784, %v2901
        %v2941 = vadd.f32 %v2785, %v2904
        %v2942 = vadd.f32 %v2786, %v2906
        %v2943 = vadd.f32 %v2787, %v2909
        %v2944 = vadd.f32 %v2788, %v2911
        %v2946 = vrot.slane %v1496, 5
        %v2947 = vrot.slane %v2946, 4
        %v2948 = vrot.slane %v1497, 5
        %v2949 = vsel %vm2320, %v2947, %v2948
        %v2950 = vrot.slane %v2948, 4
        %v2951 = vrot.slane %v1498, 5
        %v2952 = vsel %vm2320, %v2950, %v2951
        %s2953 = scalar_lea.vmem %s0, 20
        %v2954 = vld [vmem:[%s2953] sm:$0xf]
        %v2955 = vunpack.c.l.b16 %v2949
        %v2956 = vunpack.c.l.b16 %v2952
        %v2957 = vpack.c.b16 %v2956, %v2955
        %v2959 = vsel %vm1940, %v2957, 0
        %v2962 = vsel %vm1989, %v2954, 0
        %2964 = vmatpush.bf16.msra.mxu0 0
        %2965 = vmatpush.bf16.msra.mxu0 0
        %2966 = vmatpush.bf16.msra.mxu0 0
        %2967 = vmatpush.bf16.msra.mxu0 0
        %2968 = vmatpush.bf16.msra.mxu0 0
        %2969 = vmatpush.bf16.msra.mxu0 0
        %2970 = vmatpush.bf16.msra.mxu0 0
        %2971 = vmatpush.bf16.msra.mxu0 %v2962
        %2972 = vmatmul.bf16.gmra.mxu0 %v2487
        %v2973 = vpop.f32.mrf.mxu0
        %v2974 = vadd.f32 0.0, %v2973
        %v2975 = vpop.f32.mrf.mxu0
        %v2976 = vadd.f32 0.0, %v2975
        %2977 = vmatmul.bf16.gmra.mxu0 %v2490
        %v2978 = vpop.f32.mrf.mxu0
        %v2979 = vadd.f32 0.0, %v2978
        %v2980 = vpop.f32.mrf.mxu0
        %v2981 = vadd.f32 0.0, %v2980
        %2982 = vmatmul.bf16.gmra.mxu0 %v2493
        %v2983 = vpop.f32.mrf.mxu0
        %v2984 = vadd.f32 0.0, %v2983
        %v2985 = vpop.f32.mrf.mxu0
        %v2986 = vadd.f32 0.0, %v2985
        %2987 = vmatmul.bf16.gmra.mxu0 %v2496
        %v2988 = vpop.f32.mrf.mxu0
        %v2989 = vadd.f32 0.0, %v2988
        %v2990 = vpop.f32.mrf.mxu0
        %v2991 = vadd.f32 0.0, %v2990
        %2992 = vmatmul.bf16.gmra.mxu0 %v2499
        %v2993 = vpop.f32.mrf.mxu0
        %v2994 = vadd.f32 0.0, %v2993
        %v2995 = vpop.f32.mrf.mxu0
        %v2996 = vadd.f32 0.0, %v2995
        %2997 = vmatmul.bf16.gmra.mxu0 %v2502
        %v2998 = vpop.f32.mrf.mxu0
        %v2999 = vadd.f32 0.0, %v2998
        %v3000 = vpop.f32.mrf.mxu0
        %v3001 = vadd.f32 0.0, %v3000
        %3002 = vmatmul.bf16.gmra.mxu0 %v2505
        %v3003 = vpop.f32.mrf.mxu0
        %v3004 = vadd.f32 0.0, %v3003
        %v3005 = vpop.f32.mrf.mxu0
        %v3006 = vadd.f32 0.0, %v3005
        %3007 = vmatmul.bf16.gmra.mxu0 %v2508
        %v3008 = vpop.f32.mrf.mxu0
        %v3009 = vadd.f32 0.0, %v3008
        %v3010 = vpop.f32.mrf.mxu0
        %v3011 = vadd.f32 0.0, %v3010
        %3012 = vmatmul.bf16.gmra.mxu0 %v2511
        %v3013 = vpop.f32.mrf.mxu0
        %v3014 = vadd.f32 0.0, %v3013
        %v3015 = vpop.f32.mrf.mxu0
        %v3016 = vadd.f32 0.0, %v3015
        %3017 = vmatmul.bf16.gmra.mxu0 %v2514
        %v3018 = vpop.f32.mrf.mxu0
        %v3019 = vadd.f32 0.0, %v3018
        %v3020 = vpop.f32.mrf.mxu0
        %v3021 = vadd.f32 0.0, %v3020
        %3022 = vmatmul.bf16.gmra.mxu0 %v2517
        %v3023 = vpop.f32.mrf.mxu0
        %v3024 = vadd.f32 0.0, %v3023
        %v3025 = vpop.f32.mrf.mxu0
        %v3026 = vadd.f32 0.0, %v3025
        %3027 = vmatmul.bf16.gmra.mxu0 %v2520
        %v3028 = vpop.f32.mrf.mxu0
        %v3029 = vadd.f32 0.0, %v3028
        %v3030 = vpop.f32.mrf.mxu0
        %v3031 = vadd.f32 0.0, %v3030
        %3032 = vmatmul.bf16.gmra.mxu0 %v2523
        %v3033 = vpop.f32.mrf.mxu0
        %v3034 = vadd.f32 0.0, %v3033
        %v3035 = vpop.f32.mrf.mxu0
        %v3036 = vadd.f32 0.0, %v3035
        %3037 = vmatmul.bf16.gmra.mxu0 %v2526
        %v3038 = vpop.f32.mrf.mxu0
        %v3039 = vadd.f32 0.0, %v3038
        %v3040 = vpop.f32.mrf.mxu0
        %v3041 = vadd.f32 0.0, %v3040
        %3042 = vmatmul.bf16.gmra.mxu0 %v2529
        %v3043 = vpop.f32.mrf.mxu0
        %v3044 = vadd.f32 0.0, %v3043
        %v3045 = vpop.f32.mrf.mxu0
        %v3046 = vadd.f32 0.0, %v3045
        %3047 = vmatmul.bf16.gmra.mxu0 %v2959
        %v3048 = vpop.f32.mrf.mxu0
        %v3049 = vadd.f32 0.0, %v3048
        %v3050 = vpop.f32.mrf.mxu0
        %v3051 = vadd.f32 0.0, %v3050
        %3052 = vdwg.mxu0
        %v3053 = vadd.f32 %v2913, %v2974
        %v3054 = vadd.f32 %v2914, %v2976
        %v3055 = vadd.f32 %v2915, %v2979
        %v3056 = vadd.f32 %v2916, %v2981
        %v3057 = vadd.f32 %v2917, %v2984
        %v3058 = vadd.f32 %v2918, %v2986
        %v3059 = vadd.f32 %v2919, %v2989
        %v3060 = vadd.f32 %v2920, %v2991
        %v3061 = vadd.f32 %v2921, %v2994
        %v3062 = vadd.f32 %v2922, %v2996
        %v3063 = vadd.f32 %v2923, %v2999
        %v3064 = vadd.f32 %v2924, %v3001
        %v3065 = vadd.f32 %v2925, %v3004
        %v3066 = vadd.f32 %v2926, %v3006
        %v3067 = vadd.f32 %v2927, %v3009
        %v3068 = vadd.f32 %v2928, %v3011
        %v3069 = vadd.f32 %v2929, %v3014
        %v3070 = vadd.f32 %v2930, %v3016
        %v3071 = vadd.f32 %v2931, %v3019
        %v3072 = vadd.f32 %v2932, %v3021
        %v3073 = vadd.f32 %v2933, %v3024
        %v3074 = vadd.f32 %v2934, %v3026
        %v3075 = vadd.f32 %v2935, %v3029
        %v3076 = vadd.f32 %v2936, %v3031
        %v3077 = vadd.f32 %v2937, %v3034
        %v3078 = vadd.f32 %v2938, %v3036
        %v3079 = vadd.f32 %v2939, %v3039
        %v3080 = vadd.f32 %v2940, %v3041
        %v3081 = vadd.f32 %v2941, %v3044
        %v3082 = vadd.f32 %v2942, %v3046
        %v3083 = vadd.f32 %v2943, %v3049
        %v3084 = vadd.f32 %v2944, %v3051
        %s3085 = scalar_lea.vmem %s0, 24
        %v3086 = vld [vmem:[%s3085] sm:$0xf]
        %v3089 = vunpack.c.l.b16 %v1499
        %v3090 = vunpack.c.l.b16 %v1500
        %v3091 = vpack.c.b16 %v3090, %v3089
        %v3093 = vsel %vm1940, %v3091, 0
        %v3096 = vsel %vm1989, %v3086, 0
        %3098 = vmatpush.bf16.msra.mxu0 0
        %3099 = vmatpush.bf16.msra.mxu0 0
        %3100 = vmatpush.bf16.msra.mxu0 0
        %3101 = vmatpush.bf16.msra.mxu0 0
        %3102 = vmatpush.bf16.msra.mxu0 0
        %3103 = vmatpush.bf16.msra.mxu0 0
        %3104 = vmatpush.bf16.msra.mxu0 0
        %3105 = vmatpush.bf16.msra.mxu0 %v3096
        %3106 = vmatmul.bf16.gmra.mxu0 %v2169
        %v3107 = vpop.f32.mrf.mxu0
        %v3108 = vadd.f32 0.0, %v3107
        %v3109 = vpop.f32.mrf.mxu0
        %v3110 = vadd.f32 0.0, %v3109
        %3111 = vmatmul.bf16.gmra.mxu0 %v2172
        %v3112 = vpop.f32.mrf.mxu0
        %v3113 = vadd.f32 0.0, %v3112
        %v3114 = vpop.f32.mrf.mxu0
        %v3115 = vadd.f32 0.0, %v3114
        %3116 = vmatmul.bf16.gmra.mxu0 %v2175
        %v3117 = vpop.f32.mrf.mxu0
        %v3118 = vadd.f32 0.0, %v3117
        %v3119 = vpop.f32.mrf.mxu0
        %v3120 = vadd.f32 0.0, %v3119
        %3121 = vmatmul.bf16.gmra.mxu0 %v2178
        %v3122 = vpop.f32.mrf.mxu0
        %v3123 = vadd.f32 0.0, %v3122
        %v3124 = vpop.f32.mrf.mxu0
        %v3125 = vadd.f32 0.0, %v3124
        %3126 = vmatmul.bf16.gmra.mxu0 %v2181
        %v3127 = vpop.f32.mrf.mxu0
        %v3128 = vadd.f32 0.0, %v3127
        %v3129 = vpop.f32.mrf.mxu0
        %v3130 = vadd.f32 0.0, %v3129
        %3131 = vmatmul.bf16.gmra.mxu0 %v2184
        %v3132 = vpop.f32.mrf.mxu0
        %v3133 = vadd.f32 0.0, %v3132
        %v3134 = vpop.f32.mrf.mxu0
        %v3135 = vadd.f32 0.0, %v3134
        %3136 = vmatmul.bf16.gmra.mxu0 %v2187
        %v3137 = vpop.f32.mrf.mxu0
        %v3138 = vadd.f32 0.0, %v3137
        %v3139 = vpop.f32.mrf.mxu0
        %v3140 = vadd.f32 0.0, %v3139
        %3141 = vmatmul.bf16.gmra.mxu0 %v2190
        %v3142 = vpop.f32.mrf.mxu0
        %v3143 = vadd.f32 0.0, %v3142
        %v3144 = vpop.f32.mrf.mxu0
        %v3145 = vadd.f32 0.0, %v3144
        %3146 = vmatmul.bf16.gmra.mxu0 %v2193
        %v3147 = vpop.f32.mrf.mxu0
        %v3148 = vadd.f32 0.0, %v3147
        %v3149 = vpop.f32.mrf.mxu0
        %v3150 = vadd.f32 0.0, %v3149
        %3151 = vmatmul.bf16.gmra.mxu0 %v2196
        %v3152 = vpop.f32.mrf.mxu0
        %v3153 = vadd.f32 0.0, %v3152
        %v3154 = vpop.f32.mrf.mxu0
        %v3155 = vadd.f32 0.0, %v3154
        %3156 = vmatmul.bf16.gmra.mxu0 %v2199
        %v3157 = vpop.f32.mrf.mxu0
        %v3158 = vadd.f32 0.0, %v3157
        %v3159 = vpop.f32.mrf.mxu0
        %v3160 = vadd.f32 0.0, %v3159
        %3161 = vmatmul.bf16.gmra.mxu0 %v2202
        %v3162 = vpop.f32.mrf.mxu0
        %v3163 = vadd.f32 0.0, %v3162
        %v3164 = vpop.f32.mrf.mxu0
        %v3165 = vadd.f32 0.0, %v3164
        %3166 = vmatmul.bf16.gmra.mxu0 %v2205
        %v3167 = vpop.f32.mrf.mxu0
        %v3168 = vadd.f32 0.0, %v3167
        %v3169 = vpop.f32.mrf.mxu0
        %v3170 = vadd.f32 0.0, %v3169
        %3171 = vmatmul.bf16.gmra.mxu0 %v2208
        %v3172 = vpop.f32.mrf.mxu0
        %v3173 = vadd.f32 0.0, %v3172
        %v3174 = vpop.f32.mrf.mxu0
        %v3175 = vadd.f32 0.0, %v3174
        %3176 = vmatmul.bf16.gmra.mxu0 %v2663
        %v3177 = vpop.f32.mrf.mxu0
        %v3178 = vadd.f32 0.0, %v3177
        %v3179 = vpop.f32.mrf.mxu0
        %v3180 = vadd.f32 0.0, %v3179
        %3181 = vmatmul.bf16.gmra.mxu0 %v3093
        %v3182 = vpop.f32.mrf.mxu0
        %v3183 = vadd.f32 0.0, %v3182
        %v3184 = vpop.f32.mrf.mxu0
        %v3185 = vadd.f32 0.0, %v3184
        %3186 = vdwg.mxu0
        %v3187 = vadd.f32 %v3053, %v3108
        %v3188 = vadd.f32 %v3054, %v3110
        %v3189 = vadd.f32 %v3055, %v3113
        %v3190 = vadd.f32 %v3056, %v3115
        %v3191 = vadd.f32 %v3057, %v3118
        %v3192 = vadd.f32 %v3058, %v3120
        %v3193 = vadd.f32 %v3059, %v3123
        %v3194 = vadd.f32 %v3060, %v3125
        %v3195 = vadd.f32 %v3061, %v3128
        %v3196 = vadd.f32 %v3062, %v3130
        %v3197 = vadd.f32 %v3063, %v3133
        %v3198 = vadd.f32 %v3064, %v3135
        %v3199 = vadd.f32 %v3065, %v3138
        %v3200 = vadd.f32 %v3066, %v3140
        %v3201 = vadd.f32 %v3067, %v3143
        %v3202 = vadd.f32 %v3068, %v3145
        %v3203 = vadd.f32 %v3069, %v3148
        %v3204 = vadd.f32 %v3070, %v3150
        %v3205 = vadd.f32 %v3071, %v3153
        %v3206 = vadd.f32 %v3072, %v3155
        %v3207 = vadd.f32 %v3073, %v3158
        %v3208 = vadd.f32 %v3074, %v3160
        %v3209 = vadd.f32 %v3075, %v3163
        %v3210 = vadd.f32 %v3076, %v3165
        %v3211 = vadd.f32 %v3077, %v3168
        %v3212 = vadd.f32 %v3078, %v3170
        %v3213 = vadd.f32 %v3079, %v3173
        %v3214 = vadd.f32 %v3080, %v3175
        %v3215 = vadd.f32 %v3081, %v3178
        %v3216 = vadd.f32 %v3082, %v3180
        %v3217 = vadd.f32 %v3083, %v3183
        %v3218 = vadd.f32 %v3084, %v3185
        %v3220 = vshrl.u32 %v1499, 16
        %v3222 = vrot.slane %v3220, 4
        %v3223 = vshll.u32 %v1499, 16
        %v3225 = vrot.slane %v3223, 5
        %v3226 = vor.u32 %v3222, %v3225
        %v3227 = vrot.slane %v3226, 4
        %v3229 = vshll.u32 %v1500, 16
        %v3231 = vrot.slane %v3229, 5
        %v3232 = vsel %vm1505, %v3227, %v3231
        %v3233 = vshrl.u32 %v1500, 16
        %v3235 = vrot.slane %v3233, 4
        %v3236 = vor.u32 %v3235, %v3231
        %v3237 = vrot.slane %v3236, 4
        %v3239 = vshll.u32 %v1501, 16
        %v3241 = vrot.slane %v3239, 5
        %v3242 = vsel %vm1505, %v3237, %v3241
        %s3243 = scalar_lea.vmem %s0, 28
        %v3244 = vld [vmem:[%s3243] sm:$0xf]
        %v3245 = vunpack.c.l.b16 %v3232
        %v3246 = vunpack.c.l.b16 %v3242
        %v3247 = vpack.c.b16 %v3246, %v3245
        %v3249 = vsel %vm1940, %v3247, 0
        %v3252 = vsel %vm1989, %v3244, 0
        %3254 = vmatpush.bf16.msra.mxu0 0
        %3255 = vmatpush.bf16.msra.mxu0 0
        %3256 = vmatpush.bf16.msra.mxu0 0
        %3257 = vmatpush.bf16.msra.mxu0 0
        %3258 = vmatpush.bf16.msra.mxu0 0
        %3259 = vmatpush.bf16.msra.mxu0 0
        %3260 = vmatpush.bf16.msra.mxu0 0
        %3261 = vmatpush.bf16.msra.mxu0 %v3252
        %3262 = vmatmul.bf16.gmra.mxu0 %v1948
        %v3263 = vpop.f32.mrf.mxu0
        %v3264 = vadd.f32 0.0, %v3263
        %v3265 = vpop.f32.mrf.mxu0
        %v3266 = vadd.f32 0.0, %v3265
        %3267 = vmatmul.bf16.gmra.mxu0 %v1951
        %v3268 = vpop.f32.mrf.mxu0
        %v3269 = vadd.f32 0.0, %v3268
        %v3270 = vpop.f32.mrf.mxu0
        %v3271 = vadd.f32 0.0, %v3270
        %3272 = vmatmul.bf16.gmra.mxu0 %v1954
        %v3273 = vpop.f32.mrf.mxu0
        %v3274 = vadd.f32 0.0, %v3273
        %v3275 = vpop.f32.mrf.mxu0
        %v3276 = vadd.f32 0.0, %v3275
        %3277 = vmatmul.bf16.gmra.mxu0 %v1957
        %v3278 = vpop.f32.mrf.mxu0
        %v3279 = vadd.f32 0.0, %v3278
        %v3280 = vpop.f32.mrf.mxu0
        %v3281 = vadd.f32 0.0, %v3280
        %3282 = vmatmul.bf16.gmra.mxu0 %v1960
        %v3283 = vpop.f32.mrf.mxu0
        %v3284 = vadd.f32 0.0, %v3283
        %v3285 = vpop.f32.mrf.mxu0
        %v3286 = vadd.f32 0.0, %v3285
        %3287 = vmatmul.bf16.gmra.mxu0 %v1963
        %v3288 = vpop.f32.mrf.mxu0
        %v3289 = vadd.f32 0.0, %v3288
        %v3290 = vpop.f32.mrf.mxu0
        %v3291 = vadd.f32 0.0, %v3290
        %3292 = vmatmul.bf16.gmra.mxu0 %v1966
        %v3293 = vpop.f32.mrf.mxu0
        %v3294 = vadd.f32 0.0, %v3293
        %v3295 = vpop.f32.mrf.mxu0
        %v3296 = vadd.f32 0.0, %v3295
        %3297 = vmatmul.bf16.gmra.mxu0 %v1969
        %v3298 = vpop.f32.mrf.mxu0
        %v3299 = vadd.f32 0.0, %v3298
        %v3300 = vpop.f32.mrf.mxu0
        %v3301 = vadd.f32 0.0, %v3300
        %3302 = vmatmul.bf16.gmra.mxu0 %v1972
        %v3303 = vpop.f32.mrf.mxu0
        %v3304 = vadd.f32 0.0, %v3303
        %v3305 = vpop.f32.mrf.mxu0
        %v3306 = vadd.f32 0.0, %v3305
        %3307 = vmatmul.bf16.gmra.mxu0 %v1975
        %v3308 = vpop.f32.mrf.mxu0
        %v3309 = vadd.f32 0.0, %v3308
        %v3310 = vpop.f32.mrf.mxu0
        %v3311 = vadd.f32 0.0, %v3310
        %3312 = vmatmul.bf16.gmra.mxu0 %v1978
        %v3313 = vpop.f32.mrf.mxu0
        %v3314 = vadd.f32 0.0, %v3313
        %v3315 = vpop.f32.mrf.mxu0
        %v3316 = vadd.f32 0.0, %v3315
        %3317 = vmatmul.bf16.gmra.mxu0 %v1981
        %v3318 = vpop.f32.mrf.mxu0
        %v3319 = vadd.f32 0.0, %v3318
        %v3320 = vpop.f32.mrf.mxu0
        %v3321 = vadd.f32 0.0, %v3320
        %3322 = vmatmul.bf16.gmra.mxu0 %v1984
        %v3323 = vpop.f32.mrf.mxu0
        %v3324 = vadd.f32 0.0, %v3323
        %v3325 = vpop.f32.mrf.mxu0
        %v3326 = vadd.f32 0.0, %v3325
        %3327 = vmatmul.bf16.gmra.mxu0 %v1987
        %v3328 = vpop.f32.mrf.mxu0
        %v3329 = vadd.f32 0.0, %v3328
        %v3330 = vpop.f32.mrf.mxu0
        %v3331 = vadd.f32 0.0, %v3330
        %3332 = vmatmul.bf16.gmra.mxu0 %v2819
        %v3333 = vpop.f32.mrf.mxu0
        %v3334 = vadd.f32 0.0, %v3333
        %v3335 = vpop.f32.mrf.mxu0
        %v3336 = vadd.f32 0.0, %v3335
        %3337 = vmatmul.bf16.gmra.mxu0 %v3249
        %v3338 = vpop.f32.mrf.mxu0
        %v3339 = vadd.f32 0.0, %v3338
        %v3340 = vpop.f32.mrf.mxu0
        %v3341 = vadd.f32 0.0, %v3340
        %3342 = vdwg.mxu0
        %v3343 = vadd.f32 %v3187, %v3264
        %v3344 = vadd.f32 %v3188, %v3266
        %v3345 = vadd.f32 %v3189, %v3269
        %v3346 = vadd.f32 %v3190, %v3271
        %v3347 = vadd.f32 %v3191, %v3274
        %v3348 = vadd.f32 %v3192, %v3276
        %v3349 = vadd.f32 %v3193, %v3279
        %v3350 = vadd.f32 %v3194, %v3281
        %v3351 = vadd.f32 %v3195, %v3284
        %v3352 = vadd.f32 %v3196, %v3286
        %v3353 = vadd.f32 %v3197, %v3289
        %v3354 = vadd.f32 %v3198, %v3291
        %v3355 = vadd.f32 %v3199, %v3294
        %v3356 = vadd.f32 %v3200, %v3296
        %v3357 = vadd.f32 %v3201, %v3299
        %v3358 = vadd.f32 %v3202, %v3301
        %v3359 = vadd.f32 %v3203, %v3304
        %v3360 = vadd.f32 %v3204, %v3306
        %v3361 = vadd.f32 %v3205, %v3309
        %v3362 = vadd.f32 %v3206, %v3311
        %v3363 = vadd.f32 %v3207, %v3314
        %v3364 = vadd.f32 %v3208, %v3316
        %v3365 = vadd.f32 %v3209, %v3319
        %v3366 = vadd.f32 %v3210, %v3321
        %v3367 = vadd.f32 %v3211, %v3324
        %v3368 = vadd.f32 %v3212, %v3326
        %v3369 = vadd.f32 %v3213, %v3329
        %v3370 = vadd.f32 %v3214, %v3331
        %v3371 = vadd.f32 %v3215, %v3334
        %v3372 = vadd.f32 %v3216, %v3336
        %v3373 = vadd.f32 %v3217, %v3339
        %v3374 = vadd.f32 %v3218, %v3341
        %v3376 = vrot.slane %v1499, 5
        %v3377 = vrot.slane %v3376, 4
        %v3378 = vrot.slane %v1500, 5
        %v3379 = vsel %vm2320, %v3377, %v3378
        %v3380 = vrot.slane %v3378, 4
        %v3381 = vrot.slane %v1501, 5
        %v3382 = vsel %vm2320, %v3380, %v3381
        %s3383 = scalar_lea.vmem %s0, 32
        %v3384 = vld [vmem:[%s3383] sm:$0xf]
        %v3385 = vunpack.c.l.b16 %v3379
        %v3386 = vunpack.c.l.b16 %v3382
        %v3387 = vpack.c.b16 %v3386, %v3385
        %v3389 = vsel %vm1940, %v3387, 0
        %v3392 = vsel %vm1989, %v3384, 0
        %3394 = vmatpush.bf16.msra.mxu0 0
        %3395 = vmatpush.bf16.msra.mxu0 0
        %3396 = vmatpush.bf16.msra.mxu0 0
        %3397 = vmatpush.bf16.msra.mxu0 0
        %3398 = vmatpush.bf16.msra.mxu0 0
        %3399 = vmatpush.bf16.msra.mxu0 0
        %3400 = vmatpush.bf16.msra.mxu0 0
        %3401 = vmatpush.bf16.msra.mxu0 %v3392
        %3402 = vmatmul.bf16.gmra.mxu0 %v2490
        %v3403 = vpop.f32.mrf.mxu0
        %v3404 = vadd.f32 0.0, %v3403
        %v3405 = vpop.f32.mrf.mxu0
        %v3406 = vadd.f32 0.0, %v3405
        %3407 = vmatmul.bf16.gmra.mxu0 %v2493
        %v3408 = vpop.f32.mrf.mxu0
        %v3409 = vadd.f32 0.0, %v3408
        %v3410 = vpop.f32.mrf.mxu0
        %v3411 = vadd.f32 0.0, %v3410
        %3412 = vmatmul.bf16.gmra.mxu0 %v2496
        %v3413 = vpop.f32.mrf.mxu0
        %v3414 = vadd.f32 0.0, %v3413
        %v3415 = vpop.f32.mrf.mxu0
        %v3416 = vadd.f32 0.0, %v3415
        %3417 = vmatmul.bf16.gmra.mxu0 %v2499
        %v3418 = vpop.f32.mrf.mxu0
        %v3419 = vadd.f32 0.0, %v3418
        %v3420 = vpop.f32.mrf.mxu0
        %v3421 = vadd.f32 0.0, %v3420
        %3422 = vmatmul.bf16.gmra.mxu0 %v2502
        %v3423 = vpop.f32.mrf.mxu0
        %v3424 = vadd.f32 0.0, %v3423
        %v3425 = vpop.f32.mrf.mxu0
        %v3426 = vadd.f32 0.0, %v3425
        %3427 = vmatmul.bf16.gmra.mxu0 %v2505
        %v3428 = vpop.f32.mrf.mxu0
        %v3429 = vadd.f32 0.0, %v3428
        %v3430 = vpop.f32.mrf.mxu0
        %v3431 = vadd.f32 0.0, %v3430
        %3432 = vmatmul.bf16.gmra.mxu0 %v2508
        %v3433 = vpop.f32.mrf.mxu0
        %v3434 = vadd.f32 0.0, %v3433
        %v3435 = vpop.f32.mrf.mxu0
        %v3436 = vadd.f32 0.0, %v3435
        %3437 = vmatmul.bf16.gmra.mxu0 %v2511
        %v3438 = vpop.f32.mrf.mxu0
        %v3439 = vadd.f32 0.0, %v3438
        %v3440 = vpop.f32.mrf.mxu0
        %v3441 = vadd.f32 0.0, %v3440
        %3442 = vmatmul.bf16.gmra.mxu0 %v2514
        %v3443 = vpop.f32.mrf.mxu0
        %v3444 = vadd.f32 0.0, %v3443
        %v3445 = vpop.f32.mrf.mxu0
        %v3446 = vadd.f32 0.0, %v3445
        %3447 = vmatmul.bf16.gmra.mxu0 %v2517
        %v3448 = vpop.f32.mrf.mxu0
        %v3449 = vadd.f32 0.0, %v3448
        %v3450 = vpop.f32.mrf.mxu0
        %v3451 = vadd.f32 0.0, %v3450
        %3452 = vmatmul.bf16.gmra.mxu0 %v2520
        %v3453 = vpop.f32.mrf.mxu0
        %v3454 = vadd.f32 0.0, %v3453
        %v3455 = vpop.f32.mrf.mxu0
        %v3456 = vadd.f32 0.0, %v3455
        %3457 = vmatmul.bf16.gmra.mxu0 %v2523
        %v3458 = vpop.f32.mrf.mxu0
        %v3459 = vadd.f32 0.0, %v3458
        %v3460 = vpop.f32.mrf.mxu0
        %v3461 = vadd.f32 0.0, %v3460
        %3462 = vmatmul.bf16.gmra.mxu0 %v2526
        %v3463 = vpop.f32.mrf.mxu0
        %v3464 = vadd.f32 0.0, %v3463
        %v3465 = vpop.f32.mrf.mxu0
        %v3466 = vadd.f32 0.0, %v3465
        %3467 = vmatmul.bf16.gmra.mxu0 %v2529
        %v3468 = vpop.f32.mrf.mxu0
        %v3469 = vadd.f32 0.0, %v3468
        %v3470 = vpop.f32.mrf.mxu0
        %v3471 = vadd.f32 0.0, %v3470
        %3472 = vmatmul.bf16.gmra.mxu0 %v2959
        %v3473 = vpop.f32.mrf.mxu0
        %v3474 = vadd.f32 0.0, %v3473
        %v3475 = vpop.f32.mrf.mxu0
        %v3476 = vadd.f32 0.0, %v3475
        %3477 = vmatmul.bf16.gmra.mxu0 %v3389
        %v3478 = vpop.f32.mrf.mxu0
        %v3479 = vadd.f32 0.0, %v3478
        %v3480 = vpop.f32.mrf.mxu0
        %v3481 = vadd.f32 0.0, %v3480
        %3482 = vdwg.mxu0
        %v3483 = vadd.f32 %v3343, %v3404
        %v3484 = vadd.f32 %v3344, %v3406
        %v3485 = vadd.f32 %v3345, %v3409
        %v3486 = vadd.f32 %v3346, %v3411
        %v3487 = vadd.f32 %v3347, %v3414
        %v3488 = vadd.f32 %v3348, %v3416
        %v3489 = vadd.f32 %v3349, %v3419
        %v3490 = vadd.f32 %v3350, %v3421
        %v3491 = vadd.f32 %v3351, %v3424
        %v3492 = vadd.f32 %v3352, %v3426
        %v3493 = vadd.f32 %v3353, %v3429
        %v3494 = vadd.f32 %v3354, %v3431
        %v3495 = vadd.f32 %v3355, %v3434
        %v3496 = vadd.f32 %v3356, %v3436
        %v3497 = vadd.f32 %v3357, %v3439
        %v3498 = vadd.f32 %v3358, %v3441
        %v3499 = vadd.f32 %v3359, %v3444
        %v3500 = vadd.f32 %v3360, %v3446
        %v3501 = vadd.f32 %v3361, %v3449
        %v3502 = vadd.f32 %v3362, %v3451
        %v3503 = vadd.f32 %v3363, %v3454
        %v3504 = vadd.f32 %v3364, %v3456
        %v3505 = vadd.f32 %v3365, %v3459
        %v3506 = vadd.f32 %v3366, %v3461
        %v3507 = vadd.f32 %v3367, %v3464
        %v3508 = vadd.f32 %v3368, %v3466
        %v3509 = vadd.f32 %v3369, %v3469
        %v3510 = vadd.f32 %v3370, %v3471
        %v3511 = vadd.f32 %v3371, %v3474
        %v3512 = vadd.f32 %v3372, %v3476
        %v3513 = vadd.f32 %v3373, %v3479
        %v3514 = vadd.f32 %v3374, %v3481
        %v3515 = vld [vmem:[%s1] sm:$0x1]
        %v3517 = vperm.slane %v3515, 0
        %v3519 = vadd.f32 %v3483, %v3517
        %v3520 = vadd.f32 %v3484, %v3517
        %v3521 = vadd.f32 %v3485, %v3517
        %v3522 = vadd.f32 %v3486, %v3517
        %v3523 = vadd.f32 %v3487, %v3517
        %v3524 = vadd.f32 %v3488, %v3517
        %v3525 = vadd.f32 %v3489, %v3517
        %v3526 = vadd.f32 %v3490, %v3517
        %v3527 = vadd.f32 %v3491, %v3517
        %v3528 = vadd.f32 %v3492, %v3517
        %v3529 = vadd.f32 %v3493, %v3517
        %v3530 = vadd.f32 %v3494, %v3517
        %v3531 = vadd.f32 %v3495, %v3517
        %v3532 = vadd.f32 %v3496, %v3517
        %v3533 = vadd.f32 %v3497, %v3517
        %v3534 = vadd.f32 %v3498, %v3517
        %v3535 = vadd.f32 %v3499, %v3517
        %v3536 = vadd.f32 %v3500, %v3517
        %v3537 = vadd.f32 %v3501, %v3517
        %v3538 = vadd.f32 %v3502, %v3517
        %v3539 = vadd.f32 %v3503, %v3517
        %v3540 = vadd.f32 %v3504, %v3517
        %v3541 = vadd.f32 %v3505, %v3517
        %v3542 = vadd.f32 %v3506, %v3517
        %v3543 = vadd.f32 %v3507, %v3517
        %v3544 = vadd.f32 %v3508, %v3517
        %v3545 = vadd.f32 %v3509, %v3517
        %v3546 = vadd.f32 %v3510, %v3517
        %v3547 = vadd.f32 %v3511, %v3517
        %v3548 = vadd.f32 %v3512, %v3517
        %v3549 = vadd.f32 %v3513, %v3517
        %v3550 = vadd.f32 %v3514, %v3517
        %v3551 = vmax.f32 %v3519, 0.0
        %v3552 = vmax.f32 %v3520, 0.0
        %v3553 = vmax.f32 %v3521, 0.0
        %v3554 = vmax.f32 %v3522, 0.0
        %v3555 = vmax.f32 %v3523, 0.0
        %v3556 = vmax.f32 %v3524, 0.0
        %v3557 = vmax.f32 %v3525, 0.0
        %v3558 = vmax.f32 %v3526, 0.0
        %v3559 = vmax.f32 %v3527, 0.0
        %v3560 = vmax.f32 %v3528, 0.0
        %v3561 = vmax.f32 %v3529, 0.0
        %v3562 = vmax.f32 %v3530, 0.0
        %v3563 = vmax.f32 %v3531, 0.0
        %v3564 = vmax.f32 %v3532, 0.0
        %v3565 = vmax.f32 %v3533, 0.0
        %v3566 = vmax.f32 %v3534, 0.0
        %v3567 = vmax.f32 %v3535, 0.0
        %v3568 = vmax.f32 %v3536, 0.0
        %v3569 = vmax.f32 %v3537, 0.0
        %v3570 = vmax.f32 %v3538, 0.0
        %v3571 = vmax.f32 %v3539, 0.0
        %v3572 = vmax.f32 %v3540, 0.0
        %v3573 = vmax.f32 %v3541, 0.0
        %v3574 = vmax.f32 %v3542, 0.0
        %v3575 = vmax.f32 %v3543, 0.0
        %v3576 = vmax.f32 %v3544, 0.0
        %v3577 = vmax.f32 %v3545, 0.0
        %v3578 = vmax.f32 %v3546, 0.0
        %v3579 = vmax.f32 %v3547, 0.0
        %v3580 = vmax.f32 %v3548, 0.0
        %v3581 = vmax.f32 %v3549, 0.0
        %v3582 = vmax.f32 %v3550, 0.0
        %v3583 = vadd.f32 %v3551, %v3552
        %v3584 = vadd.f32 %v3583, %v3553
        %v3585 = vadd.f32 %v3584, %v3554
        %v3586 = vadd.f32 %v3585, %v3555
        %v3587 = vadd.f32 %v3586, %v3556
        %v3588 = vadd.f32 %v3587, %v3557
        %v3589 = vadd.f32 %v3588, %v3558
        %v3590 = vadd.f32 %v3589, %v3559
        %v3591 = vadd.f32 %v3590, %v3560
        %v3592 = vadd.f32 %v3591, %v3561
        %v3593 = vadd.f32 %v3592, %v3562
        %v3594 = vadd.f32 %v3593, %v3563
        %v3595 = vadd.f32 %v3594, %v3564
        %v3596 = vadd.f32 %v3595, %v3565
        %v3597 = vadd.f32 %v3596, %v3566
        %v3598 = vadd.f32 %v3597, %v3567
        %v3599 = vadd.f32 %v3598, %v3568
        %v3600 = vadd.f32 %v3599, %v3569
        %v3601 = vadd.f32 %v3600, %v3570
        %v3602 = vadd.f32 %v3601, %v3571
        %v3603 = vadd.f32 %v3602, %v3572
        %v3604 = vadd.f32 %v3603, %v3573
        %v3605 = vadd.f32 %v3604, %v3574
        %v3606 = vadd.f32 %v3605, %v3575
        %v3607 = vadd.f32 %v3606, %v3576
        %v3608 = vadd.f32 %v3607, %v3577
        %v3609 = vadd.f32 %v3608, %v3578
        %v3610 = vadd.f32 %v3609, %v3579
        %v3611 = vadd.f32 %v3610, %v3580
        %v3612 = vadd.f32 %v3611, %v3581
        %v3613 = vadd.f32 %v3612, %v3582
        %v3614 = vrot.slane %v3613, 4
        %v3615 = vadd.f32 %v3613, %v3614
        %v3616 = vrot.slane %v3615, 2
        %v3617 = vadd.f32 %v3615, %v3616
        %v3618 = vrot.slane %v3617, 1
        %v3619 = vadd.f32 %v3617, %v3618
        %v3620 = vadd.f32 %v3619, 0.0
        %v3621 = vmul.f32 %v3620, 0.00390625
        %v3622 = vpack.c.bf16 %v3621, %v3621
        %v3623 = vld [vmem:[%s2] sm:$0xf]
        %v3624 = vld [vmem:[%s2 + $0x4] sm:$0xf]
        %v3625 = vld [vmem:[%s2 + $0x8] sm:$0xf]
        %v3626 = vld [vmem:[%s2 + $0xc] sm:$0xf]
        %v3627 = vld [vmem:[%s2 + $0x10] sm:$0xf]
        %v3628 = vld [vmem:[%s2 + $0x14] sm:$0xf]
        %v3629 = vld [vmem:[%s2 + $0x18] sm:$0xf]
        %v3630 = vld [vmem:[%s2 + $0x1c] sm:$0xf]
        %v3631 = vld [vmem:[%s2 + $0x20] sm:$0xf]
        %v3632 = vld [vmem:[%s2 + $0x24] sm:$0xf]
        %v3633 = vld [vmem:[%s2 + $0x28] sm:$0xf]
        %v3634 = vld [vmem:[%s2 + $0x2c] sm:$0xf]
        %v3635 = vld [vmem:[%s2 + $0x30] sm:$0xf]
        %v3636 = vld [vmem:[%s2 + $0x34] sm:$0xf]
        %v3637 = vld [vmem:[%s2 + $0x38] sm:$0xf]
        %v3638 = vld [vmem:[%s2 + $0x3c] sm:$0xf]
        %v3639 = vld [vmem:[%s3] sm:$0x1]
        %v3656 = vunpack.c.l.b16 %v3623
        %v3657 = vunpack.c.l.b16 %v3624
        %v3658 = vunpack.c.l.b16 %v3625
        %v3659 = vunpack.c.l.b16 %v3626
        %v3660 = vunpack.c.l.b16 %v3627
        %v3661 = vunpack.c.l.b16 %v3628
        %v3662 = vunpack.c.l.b16 %v3629
        %v3663 = vunpack.c.l.b16 %v3630
        %v3664 = vunpack.c.l.b16 %v3631
        %v3665 = vunpack.c.l.b16 %v3632
        %v3666 = vunpack.c.l.b16 %v3633
        %v3667 = vunpack.c.l.b16 %v3634
        %v3668 = vunpack.c.l.b16 %v3635
        %v3669 = vunpack.c.l.b16 %v3636
        %v3670 = vunpack.c.l.b16 %v3637
        %v3671 = vunpack.c.l.b16 %v3638
        %v3672 = vpack.c.b16 %v3657, %v3656
        %v3673 = vpack.c.b16 %v3659, %v3658
        %v3674 = vpack.c.b16 %v3661, %v3660
        %v3675 = vpack.c.b16 %v3663, %v3662
        %v3676 = vpack.c.b16 %v3665, %v3664
        %v3677 = vpack.c.b16 %v3667, %v3666
        %v3678 = vpack.c.b16 %v3669, %v3668
        %v3679 = vpack.c.b16 %v3671, %v3670
        %3688 = vmatpush.bf16.msra.mxu0 %v3679
        %3689 = vmatpush.bf16.msra.mxu0 %v3678
        %3690 = vmatpush.bf16.msra.mxu0 %v3677
        %3691 = vmatpush.bf16.msra.mxu0 %v3676
        %3692 = vmatpush.bf16.msra.mxu0 %v3675
        %3693 = vmatpush.bf16.msra.mxu0 %v3674
        %3694 = vmatpush.bf16.msra.mxu0 %v3673
        %3695 = vmatpush.bf16.msra.mxu0 %v3672
        %3696 = vmatmul.bf16.gmra.mxu0 %v3622
        %v3697 = vpop.f32.mrf.mxu0
        %v3698 = vadd.f32 %v3639, %v3697
        %v3699 = vpop.f32.mrf.mxu0
        %3700 = vdwg.mxu0
        %3701 = vst [vmem:[%s224] sm:$0x1] %v3698
        %s3702 = sand.u32 %s143, 1
        %s3703 = scalar_lea.sflag [#allocation8], %s3702
        %s3704 = sand.u32 %s143, 1
        %s3705 = scalar_lea.vmem [#allocation7], %s3704
        // Predicated region
        $region41: #{_packed_forward.2} parent=39 // pred_check
          %p3706 = pneg %p153
        $region42: #{_packed_forward.2} parent=39 // pred_check_branch
          %3708 = sbr.rel (%p3706) target = $region44
        $region43: #{_packed_forward.2} parent=39 // pred_region
          %3710 = vsyncadd %s3703, 0
          %s3711 = scalar_lea.hbm %s6, %s25
          %s3713 = sshll.u32 %s3705, 4
          %s3714 = int_to_ptr.vmem [resolvable:$true] %s3713
          %s3715 = sshll.u32 %s3711, 4
          %s3716 = int_to_ptr.hbm [resolvable:$true] %s3715
          %3718 = dma.vmem_to_hbm [thread:$0]  %s3714, 16, %s3716, %s3703
        $region44: #{_packed_forward.2} parent=39 // pred_fallthru
          _
      $region40: #{_packed_forward.2} parent=5 // pred_fallthru
        _
      %p3719 = scmp.le.s32.totalorder 2, %s20
      // Predicated region
      $region45: #{_packed_forward.2} parent=5 // pred_check
        %p3720 = pneg %p3719
      $region46: #{_packed_forward.2} parent=5 // pred_check_branch
        %3722 = sbr.rel (%p3720) target = $region48
      $region47: #{_packed_forward.2} parent=5 // pred_region
        %s3723 = ssub.s32 %s20, 2
        // Predicated region
        $region49: #{_packed_forward.2} parent=47 // pred_check
          %p3724 = pneg %p159
        $region50: #{_packed_forward.2} parent=47 // pred_check_branch
          %3726 = sbr.rel (%p3724) target = $region52
        $region51: #{_packed_forward.2} parent=47 // pred_region
          %s3727 = sand.u32 %s144, 1
          %s3728 = scalar_lea.sflag [#allocation8], %s3727
          %s3729 = sand.u32 %s144, 1
          %s3730 = scalar_lea.vmem [#allocation7], %s3729
          %3732 = dma.done %s3728, 16
        $region52: #{_packed_forward.2} parent=47 // pred_fallthru
          _
      $region48: #{_packed_forward.2} parent=5 // pred_fallthru
        _
    $region6: #{_packed_forward.2} parent=1 // loop_footer
      %s24 = sadd.s32 1, %s20
    $region7: #{_packed_forward.2} parent=1 // loop_footer_branch
      %19 = sbr.rel target = $region3
    $region8: #{_packed_forward.2} parent=1 // loop_exit
      _
    %3733 = vsyncpa [#allocation8], 1
    %s3734 = scalar_lea.sflag [#allocation8], 1
    %3735 = vsyncpa %s3734, 1

</llo_original>
